<compile_context>
chip_gen: v6e
topology: v6e:2x2x1
jax: 0.10.0
libtpu: 0.0.40
codegen_flags: <defaults>
</compile_context>

<pallas_src>
import functools

import jax
import jax.numpy as jnp
from jax.experimental import pallas as pl
from jax.experimental.pallas import tpu as pltpu


def critic_kernel(x_ref, enc_w_ref, proc_w_ref, attn_w_ref, dec_w_ref, b2_ref,
                  out_ref, enc_scr, *, num_blocks):
    """Fused Critic_ forward: encoder + process blocks + decoder, one grid point."""
    B, S, F = x_ref.shape
    H = attn_w_ref.shape[1]
    G = 4 * H
    Fp = ((F + 7) // 8) * 8        # row padding used by pack_params (8-aligned slabs)
    f32 = jnp.float32

    # ---- unpack packed weight slabs (static, 8-aligned sublane slices) ----
    w_in = enc_w_ref[0:F, :]                      # (F, 4H)  Conv1d folded into W_ih
    ew_hh = enc_w_ref[Fp:Fp + H, :]               # (H, 4H)
    e_b = enc_w_ref[Fp + H:Fp + H + 1, :]         # (1, 4H)  b_emb@W_ih + b_ih + b_hh

    pw = proc_w_ref[0:2 * H, :]                   # (2H, 4H) [W_ih ; W_hh] stacked
    p_b = proc_w_ref[2 * H:2 * H + 1, :]          # (1, 4H)

    w_r = attn_w_ref[0:H, :]                      # (H, H)   W_ref
    w_q = attn_w_ref[H:2 * H, :]                  # (H, H)   W_q
    v_row = attn_w_ref[2 * H:2 * H + 1, :]        # (1, H)   v weight as a row

    w1 = dec_w_ref[0:H, :]                        # (H, H)
    b1 = dec_w_ref[H:H + 1, :]                    # (1, H)
    w2 = dec_w_ref[H + 8:H + 9, :]                # (1, H)   final Linear(H,1) as a row
    b2 = b2_ref[0, 0]                             # scalar bias (SMEM)

    def gates_to_hc(gates, c):
        """PyTorch LSTM cell combine; gates packed [i | f | o | g] along 4H."""
        ifo = jax.nn.sigmoid(gates[:, :3 * H])    # one wide EUP call (i, f, o)
        g = jnp.tanh(gates[:, 3 * H:])
        i, f, o = ifo[:, :H], ifo[:, H:2 * H], ifo[:, 2 * H:]
        c_new = (i * g) if c is None else (f * c + i * g)
        h_new = o * jnp.tanh(c_new)
        return h_new, c_new

    # ---- encoder: all S input-gate projections in ONE dot, outside the serial loop ----
    x2d = x_ref[...].reshape(B * S, F)
    pre = (jnp.dot(x2d, w_in, preferred_element_type=f32) + e_b).reshape(B, S, G)

    h, c = gates_to_hc(pre[:, 0, :], None)        # t = 0: h = c = 0, skip the h-dot
    enc_scr[:, 0, :] = h
    for t in range(1, S):                         # static unroll (S is small)
        gates = pre[:, t, :] + jnp.dot(h, ew_hh, preferred_element_type=f32)
        h, c = gates_to_hc(gates, c)
        enc_scr[:, t, :] = h
    enc = enc_scr[...]                            # (B, S, H) == Enc;  (h, c) == (hn, cn)

    # ---- process blocks: fused Processor-LSTM step + pointer attention ----
    ref_proj = jnp.dot(enc.reshape(B * S, H), w_r,
                       preferred_element_type=f32).reshape(B, S, H)   # loop-invariant
    x_in = jnp.zeros((B, H), f32)                 # processor_input = zeros(B, 1, H)
    for blk in range(num_blocks):                 # static unroll (fixed trip count)
        xh = jnp.concatenate([x_in, h], axis=1)                       # (B, 2H)
        gates = jnp.dot(xh, pw, preferred_element_type=f32) + p_b     # ONE dot / block
        h, c = gates_to_hc(gates, c)              # processor_output == h
        if blk + 1 < num_blocks:                  # last block's attention is unused
            q_proj = jnp.dot(h, w_q, preferred_element_type=f32)      # (B, H)
            t_act = jnp.tanh(ref_proj + q_proj[:, None, :])           # (B, S, H)
            # v bias dropped: softmax(u + const) == softmax(u).
            u = jnp.sum(t_act * v_row[None, :, :], axis=-1, keepdims=True)  # (B, S, 1)
            e = jnp.exp(u - jnp.max(u, axis=1, keepdims=True))
            attn = e * pl.reciprocal(jnp.sum(e, axis=1, keepdims=True), approx=True)
            x_in = jnp.sum(attn * enc, axis=1)                        # einsum('ij,ijk->ik')

    # ---- last_layer: Linear(H, H) -> ReLU -> Linear(H, 1) on the final h ----
    z = jnp.maximum(jnp.dot(h, w1, preferred_element_type=f32) + b1, 0.0)
    out_ref[...] = jnp.sum(z * w2, axis=-1, keepdims=True) + b2


def init_params(key, in_features, hidden_size):
    """Deterministic synthetic parameters (shapes from Critic_.__init__).

    Weight-import mapping from PyTorch (if real weights are loaded):
      * Conv1d weight (H, F, 1) -> squeeze -> transpose -> (F, H); bias -> (1, H).
      * LSTM W_ih/W_hh (4H, H) -> transpose -> (H, 4H); reorder gate column blocks from
        [i, f, g, o] to [i, f, o, g]; bias = (b_ih + b_hh) with the same reorder.
      * nn.Linear weight (out, in) -> transpose -> (in, out).
    """
    H, F = hidden_size, in_features
    ks = iter(jax.random.split(key, 20))

    def w(shape, scale=0.1):
        return jax.random.normal(next(ks), shape, jnp.float32) * scale

    return dict(
        # nn.Conv1d(F, H, 1)
        w_emb=w((F, H)), b_emb=w((1, H)),
        # encoder LSTM (input H, hidden H): fused gates [i | f | o | g]
        enc_w_ih=w((H, 4 * H)), enc_w_hh=w((H, 4 * H)), enc_b=w((1, 4 * H)),
        # Processor LSTM (input H, hidden H): fused gates [i | f | o | g]
        proc_w_ih=w((H, 4 * H)), proc_w_hh=w((H, 4 * H)), proc_b=w((1, 4 * H)),
        # attention: W_ref, W_q (H->H, no bias), v (H->1, bias)
        w_ref=w((H, H)), w_q=w((H, H)), v_w=w((H, 1)), v_b=w((1, 1)),
        # last_layer: Linear(H,H)+bias, Linear(H,1)+bias
        last_w1=w((H, H)), last_b1=w((1, H)), last_w2=w((H, 1)), last_b2=w((1, 1)),
    )


def _pad_rows(a, multiple=8):
    r = (-a.shape[0]) % multiple
    if r:
        a = jnp.concatenate([a, jnp.zeros((r,) + a.shape[1:], a.dtype)], axis=0)
    return a


def pack_params(p):
    """One-time host-side fold + pack into 4 weight slabs + 1 SMEM scalar.

    * Conv1d is folded into the encoder input projection: W_comb = w_emb @ W_ih,
      b_comb = b_emb @ W_ih + (b_ih + b_hh).
    * Processor W_ih / W_hh are stacked so one dot handles [x_in | h].
    * v_b is dropped: softmax is invariant to a constant shift of u.
    """
    w_comb = p['w_emb'] @ p['enc_w_ih']                       # (F, 4H)
    b_comb = p['b_emb'] @ p['enc_w_ih'] + p['enc_b']          # (1, 4H)
    enc_pack = jnp.concatenate([_pad_rows(w_comb), p['enc_w_hh'], b_comb], axis=0)
    proc_pack = jnp.concatenate([p['proc_w_ih'], p['proc_w_hh'], p['proc_b']], axis=0)
    attn_pack = jnp.concatenate([p['w_ref'], p['w_q'], p['v_w'].T], axis=0)
    dec_pack = jnp.concatenate([p['last_w1'], _pad_rows(p['last_b1']),
                                p['last_w2'].T], axis=0)
    return dict(enc=enc_pack, proc=proc_pack, attn=attn_pack, dec=dec_pack,
                b2=p['last_b2'].astype(jnp.float32))


def critic_forward(state, packed, num_process_blocks=10):
    """state: (B, in_features, S) -- PyTorch Conv1d NCW layout."""
    B, _, S = state.shape
    H = packed['attn'].shape[1]
    x = jnp.transpose(state, (0, 2, 1)).astype(jnp.float32)   # glue: NCW -> (B, S, F)

    vmem = pl.BlockSpec(memory_space=pltpu.MemorySpace.VMEM)
    smem = pl.BlockSpec(memory_space=pltpu.MemorySpace.SMEM)

    out = pl.pallas_call(
        functools.partial(critic_kernel, num_blocks=num_process_blocks),
        out_shape=jax.ShapeDtypeStruct((B, 1), jnp.float32),
        in_specs=[vmem, vmem, vmem, vmem, vmem, smem],
        out_specs=vmem,
        scratch_shapes=[pltpu.VMEM((B, S, H), jnp.float32)],   # Enc stays on-chip
        compiler_params=pltpu.CompilerParams(
            vmem_limit_bytes=8 * 1024 * 1024),                 # tiny footprint; safe everywhere
    )(x, packed['enc'], packed['proc'], packed['attn'], packed['dec'], packed['b2'])

    # torch.squeeze(last_layer(processor_output)): (B, 1, 1) -> (B,) (scalar if B==1)
    return jnp.squeeze(out)


def critic_reference(state, params, num_process_blocks=10):
    """Pure-JAX reference of Critic_.forward (unfused, raw params)."""
    x = jnp.transpose(state, (0, 2, 1)).astype(jnp.float32)   # (B, S, F)
    B, S, _ = x.shape
    H = params['w_q'].shape[0]

    def cell(h, c, x_t, w_ih, w_hh, b):
        gates = x_t @ w_ih + h @ w_hh + b
        i = jax.nn.sigmoid(gates[:, :H]); f = jax.nn.sigmoid(gates[:, H:2 * H])
        o = jax.nn.sigmoid(gates[:, 2 * H:3 * H]); g = jnp.tanh(gates[:, 3 * H:])
        c = f * c + i * g
        return o * jnp.tanh(c), c

    emb = x @ params['w_emb'] + params['b_emb']
    h = jnp.zeros((B, H), jnp.float32); c = jnp.zeros((B, H), jnp.float32)
    encs = []
    for t in range(S):
        h, c = cell(h, c, emb[:, t, :], params['enc_w_ih'], params['enc_w_hh'], params['enc_b'])
        encs.append(h)
    enc = jnp.stack(encs, axis=1)
    x_in = jnp.zeros((B, H), jnp.float32)
    for _ in range(num_process_blocks):
        h, c = cell(h, c, x_in, params['proc_w_ih'], params['proc_w_hh'], params['proc_b'])
        u = jnp.tanh(enc @ params['w_ref'] + (h @ params['w_q'])[:, None, :]) @ params['v_w'] \
            + params['v_b']
        attn = jax.nn.softmax(u[..., 0], axis=1)
        x_in = jnp.einsum('ij,ijk->ik', attn, enc)
    z = jnp.maximum(h @ params['last_w1'] + params['last_b1'], 0.0)
    return jnp.squeeze(z @ params['last_w2'] + params['last_b2'])


if __name__ == "__main__":
    key = jax.random.PRNGKey(0)
    B, F, S, H = 2, 4, 8, 32  # batch, in_features, seq, hidden_size
    pkey, skey = jax.random.split(key)
    params = init_params(pkey, F, H)
    packed = pack_params(params)            # one-time host-side fold / pack
    state = jax.random.normal(skey, (B, F, S), jnp.float32)

    fwd = jax.jit(functools.partial(critic_forward, num_process_blocks=10))
    out = fwd(state, packed)
    jax.block_until_ready(out)
    assert out.shape == (B,)

    ref = critic_reference(state, params, num_process_blocks=10)
    assert jnp.allclose(out, ref, atol=5e-2, rtol=5e-2), (out, ref)
    print("KERNEL_OK")
</pallas_src>

<mosaic_0001>
module attributes {stable_mosaic.version = 11 : i64} {
  func.func @critic_kernel(%arg0: memref<2x8x4xf32, #tpu.memory_space<vmem>>, %arg1: memref<41x128xf32, #tpu.memory_space<vmem>>, %arg2: memref<65x128xf32, #tpu.memory_space<vmem>>, %arg3: memref<65x32xf32, #tpu.memory_space<vmem>>, %arg4: memref<41x32xf32, #tpu.memory_space<vmem>>, %arg5: memref<1x1xf32, #tpu.memory_space<smem>>, %arg6: memref<2x1xf32, #tpu.memory_space<vmem>>, %arg7: memref<2x8x32xf32, #tpu.memory_space<vmem>>) attributes {dimension_semantics = [], scalar_prefetch = 0 : i64, scratch_operands = 1 : i64, tpu.core_type = #tpu.core_type<tc>} {
    %c0 = arith.constant 0 : index
    %c0_0 = arith.constant 0 : index
    %0 = vector.load %arg1[%c0, %c0_0] : memref<41x128xf32, #tpu.memory_space<vmem>>, vector<4x128xf32>
    %c8 = arith.constant 8 : index
    %c0_1 = arith.constant 0 : index
    %1 = vector.load %arg1[%c8, %c0_1] : memref<41x128xf32, #tpu.memory_space<vmem>>, vector<32x128xf32>
    %c40 = arith.constant 40 : index
    %c0_2 = arith.constant 0 : index
    %2 = vector.load %arg1[%c40, %c0_2] : memref<41x128xf32, #tpu.memory_space<vmem>>, vector<1x128xf32>
    %c0_3 = arith.constant 0 : index
    %c0_4 = arith.constant 0 : index
    %3 = vector.load %arg2[%c0_3, %c0_4] : memref<65x128xf32, #tpu.memory_space<vmem>>, vector<64x128xf32>
    %c64 = arith.constant 64 : index
    %c0_5 = arith.constant 0 : index
    %4 = vector.load %arg2[%c64, %c0_5] : memref<65x128xf32, #tpu.memory_space<vmem>>, vector<1x128xf32>
    %c0_6 = arith.constant 0 : index
    %c0_7 = arith.constant 0 : index
    %5 = vector.load %arg3[%c0_6, %c0_7] : memref<65x32xf32, #tpu.memory_space<vmem>>, vector<32x32xf32>
    %c32 = arith.constant 32 : index
    %c0_8 = arith.constant 0 : index
    %6 = vector.load %arg3[%c32, %c0_8] : memref<65x32xf32, #tpu.memory_space<vmem>>, vector<32x32xf32>
    %c64_9 = arith.constant 64 : index
    %c0_10 = arith.constant 0 : index
    %7 = vector.load %arg3[%c64_9, %c0_10] : memref<65x32xf32, #tpu.memory_space<vmem>>, vector<1x32xf32>
    %c0_11 = arith.constant 0 : index
    %c0_12 = arith.constant 0 : index
    %8 = vector.load %arg4[%c0_11, %c0_12] : memref<41x32xf32, #tpu.memory_space<vmem>>, vector<32x32xf32>
    %c32_13 = arith.constant 32 : index
    %c0_14 = arith.constant 0 : index
    %9 = vector.load %arg4[%c32_13, %c0_14] : memref<41x32xf32, #tpu.memory_space<vmem>>, vector<1x32xf32>
    %c40_15 = arith.constant 40 : index
    %c0_16 = arith.constant 0 : index
    %10 = vector.load %arg4[%c40_15, %c0_16] : memref<41x32xf32, #tpu.memory_space<vmem>>, vector<1x32xf32>
    %c0_17 = arith.constant 0 : index
    %c0_18 = arith.constant 0 : index
    %11 = memref.load %arg5[%c0_17, %c0_18] : memref<1x1xf32, #tpu.memory_space<smem>>
    %c0_19 = arith.constant 0 : index
    %c0_20 = arith.constant 0 : index
    %c0_21 = arith.constant 0 : index
    %12 = vector.load %arg0[%c0_19, %c0_20, %c0_21] : memref<2x8x4xf32, #tpu.memory_space<vmem>>, vector<2x8x4xf32>
    %13 = vector.shape_cast %12 : vector<2x8x4xf32> to vector<16x4xf32>
    %cst = arith.constant dense<0.000000e+00> : vector<16x128xf32>
    %14 = tpu.matmul %13, %0, %cst {dimension_numbers = #tpu.dot_dimension_numbers<[1], [0], [0], [1], [0, 0, 1, 1], [], []>} : vector<16x4xf32>, vector<4x128xf32>, vector<16x128xf32> -> vector<16x128xf32>
    %15 = vector.broadcast %2 : vector<1x128xf32> to vector<16x128xf32>
    %16 = arith.addf %14, %15 : vector<16x128xf32>
    %17 = vector.shape_cast %16 : vector<16x128xf32> to vector<2x8x128xf32>
    %18 = vector.extract_strided_slice %17 {offsets = [0, 0, 0], sizes = [2, 1, 128], strides = [1, 1, 1]} : vector<2x8x128xf32> to vector<2x1x128xf32>
    %19 = vector.shape_cast %18 : vector<2x1x128xf32> to vector<2x128xf32>
    %20 = vector.extract_strided_slice %19 {offsets = [0, 0], sizes = [2, 96], strides = [1, 1]} : vector<2x128xf32> to vector<2x96xf32>
    %21 = arith.negf %20 : vector<2x96xf32>
    %22 = math.exp %21 : vector<2x96xf32>
    %cst_22 = arith.constant 1.000000e+00 : f32
    %23 = vector.broadcast %cst_22 : f32 to vector<2x96xf32>
    %24 = arith.addf %23, %22 : vector<2x96xf32>
    %25 = arith.divf %23, %24 : vector<2x96xf32>
    %26 = vector.extract_strided_slice %19 {offsets = [0, 96], sizes = [2, 32], strides = [1, 1]} : vector<2x128xf32> to vector<2x32xf32>
    %27 = math.tanh %26 : vector<2x32xf32>
    %28 = vector.extract_strided_slice %25 {offsets = [0, 0], sizes = [2, 32], strides = [1, 1]} : vector<2x96xf32> to vector<2x32xf32>
    %29 = vector.extract_strided_slice %25 {offsets = [0, 64], sizes = [2, 32], strides = [1, 1]} : vector<2x96xf32> to vector<2x32xf32>
    %30 = arith.mulf %28, %27 : vector<2x32xf32>
    %31 = math.tanh %30 : vector<2x32xf32>
    %32 = arith.mulf %29, %31 : vector<2x32xf32>
    %c0_23 = arith.constant 0 : index
    %c0_24 = arith.constant 0 : index
    %c0_25 = arith.constant 0 : index
    %33 = vector.load %arg7[%c0_23, %c0_24, %c0_25] : memref<2x8x32xf32, #tpu.memory_space<vmem>>, vector<2x1x32xf32>
    %34 = vector.shape_cast %33 : vector<2x1x32xf32> to vector<2x32xf32>
    %35 = vector.shape_cast %32 : vector<2x32xf32> to vector<2x1x32xf32>
    tpu.vector_store %arg7[%c0_23, %c0_24, %c0_25], %35 {strides = array<i32>} : memref<2x8x32xf32, #tpu.memory_space<vmem>>, vector<2x1x32xf32>,
    %36 = vector.extract_strided_slice %17 {offsets = [0, 1, 0], sizes = [2, 1, 128], strides = [1, 1, 1]} : vector<2x8x128xf32> to vector<2x1x128xf32>
    %37 = vector.shape_cast %36 : vector<2x1x128xf32> to vector<2x128xf32>
    %cst_26 = arith.constant dense<0.000000e+00> : vector<2x128xf32>
    %38 = tpu.matmul %32, %1, %cst_26 {dimension_numbers = #tpu.dot_dimension_numbers<[1], [0], [0], [1], [0, 0, 1, 1], [], []>} : vector<2x32xf32>, vector<32x128xf32>, vector<2x128xf32> -> vector<2x128xf32>
    %39 = arith.addf %37, %38 : vector<2x128xf32>
    %40 = vector.extract_strided_slice %39 {offsets = [0, 0], sizes = [2, 96], strides = [1, 1]} : vector<2x128xf32> to vector<2x96xf32>
    %41 = arith.negf %40 : vector<2x96xf32>
    %42 = math.exp %41 : vector<2x96xf32>
    %cst_27 = arith.constant 1.000000e+00 : f32
    %43 = vector.broadcast %cst_27 : f32 to vector<2x96xf32>
    %44 = arith.addf %43, %42 : vector<2x96xf32>
    %45 = arith.divf %43, %44 : vector<2x96xf32>
    %46 = vector.extract_strided_slice %39 {offsets = [0, 96], sizes = [2, 32], strides = [1, 1]} : vector<2x128xf32> to vector<2x32xf32>
    %47 = math.tanh %46 : vector<2x32xf32>
    %48 = vector.extract_strided_slice %45 {offsets = [0, 0], sizes = [2, 32], strides = [1, 1]} : vector<2x96xf32> to vector<2x32xf32>
    %49 = vector.extract_strided_slice %45 {offsets = [0, 32], sizes = [2, 32], strides = [1, 1]} : vector<2x96xf32> to vector<2x32xf32>
    %50 = vector.extract_strided_slice %45 {offsets = [0, 64], sizes = [2, 32], strides = [1, 1]} : vector<2x96xf32> to vector<2x32xf32>
    %51 = arith.mulf %49, %30 : vector<2x32xf32>
    %52 = arith.mulf %48, %47 : vector<2x32xf32>
    %53 = arith.addf %51, %52 : vector<2x32xf32>
    %54 = math.tanh %53 : vector<2x32xf32>
    %55 = arith.mulf %50, %54 : vector<2x32xf32>
    %c0_28 = arith.constant 0 : index
    %c1 = arith.constant 1 : index
    %c0_29 = arith.constant 0 : index
    %56 = vector.load %arg7[%c0_28, %c1, %c0_29] : memref<2x8x32xf32, #tpu.memory_space<vmem>>, vector<2x1x32xf32>
    %57 = vector.shape_cast %56 : vector<2x1x32xf32> to vector<2x32xf32>
    %58 = vector.shape_cast %55 : vector<2x32xf32> to vector<2x1x32xf32>
    tpu.vector_store %arg7[%c0_28, %c1, %c0_29], %58 {strides = array<i32>} : memref<2x8x32xf32, #tpu.memory_space<vmem>>, vector<2x1x32xf32>,
    %59 = vector.extract_strided_slice %17 {offsets = [0, 2, 0], sizes = [2, 1, 128], strides = [1, 1, 1]} : vector<2x8x128xf32> to vector<2x1x128xf32>
    %60 = vector.shape_cast %59 : vector<2x1x128xf32> to vector<2x128xf32>
    %cst_30 = arith.constant dense<0.000000e+00> : vector<2x128xf32>
    %61 = tpu.matmul %55, %1, %cst_30 {dimension_numbers = #tpu.dot_dimension_numbers<[1], [0], [0], [1], [0, 0, 1, 1], [], []>} : vector<2x32xf32>, vector<32x128xf32>, vector<2x128xf32> -> vector<2x128xf32>
    %62 = arith.addf %60, %61 : vector<2x128xf32>
    %63 = vector.extract_strided_slice %62 {offsets = [0, 0], sizes = [2, 96], strides = [1, 1]} : vector<2x128xf32> to vector<2x96xf32>
    %64 = arith.negf %63 : vector<2x96xf32>
    %65 = math.exp %64 : vector<2x96xf32>
    %cst_31 = arith.constant 1.000000e+00 : f32
    %66 = vector.broadcast %cst_31 : f32 to vector<2x96xf32>
    %67 = arith.addf %66, %65 : vector<2x96xf32>
    %68 = arith.divf %66, %67 : vector<2x96xf32>
    %69 = vector.extract_strided_slice %62 {offsets = [0, 96], sizes = [2, 32], strides = [1, 1]} : vector<2x128xf32> to vector<2x32xf32>
    %70 = math.tanh %69 : vector<2x32xf32>
    %71 = vector.extract_strided_slice %68 {offsets = [0, 0], sizes = [2, 32], strides = [1, 1]} : vector<2x96xf32> to vector<2x32xf32>
    %72 = vector.extract_strided_slice %68 {offsets = [0, 32], sizes = [2, 32], strides = [1, 1]} : vector<2x96xf32> to vector<2x32xf32>
    %73 = vector.extract_strided_slice %68 {offsets = [0, 64], sizes = [2, 32], strides = [1, 1]} : vector<2x96xf32> to vector<2x32xf32>
    %74 = arith.mulf %72, %53 : vector<2x32xf32>
    %75 = arith.mulf %71, %70 : vector<2x32xf32>
    %76 = arith.addf %74, %75 : vector<2x32xf32>
    %77 = math.tanh %76 : vector<2x32xf32>
    %78 = arith.mulf %73, %77 : vector<2x32xf32>
    %c0_32 = arith.constant 0 : index
    %c2 = arith.constant 2 : index
    %c0_33 = arith.constant 0 : index
    %79 = vector.load %arg7[%c0_32, %c2, %c0_33] : memref<2x8x32xf32, #tpu.memory_space<vmem>>, vector<2x1x32xf32>
    %80 = vector.shape_cast %79 : vector<2x1x32xf32> to vector<2x32xf32>
    %81 = vector.shape_cast %78 : vector<2x32xf32> to vector<2x1x32xf32>
    tpu.vector_store %arg7[%c0_32, %c2, %c0_33], %81 {strides = array<i32>} : memref<2x8x32xf32, #tpu.memory_space<vmem>>, vector<2x1x32xf32>,
    %82 = vector.extract_strided_slice %17 {offsets = [0, 3, 0], sizes = [2, 1, 128], strides = [1, 1, 1]} : vector<2x8x128xf32> to vector<2x1x128xf32>
    %83 = vector.shape_cast %82 : vector<2x1x128xf32> to vector<2x128xf32>
    %cst_34 = arith.constant dense<0.000000e+00> : vector<2x128xf32>
    %84 = tpu.matmul %78, %1, %cst_34 {dimension_numbers = #tpu.dot_dimension_numbers<[1], [0], [0], [1], [0, 0, 1, 1], [], []>} : vector<2x32xf32>, vector<32x128xf32>, vector<2x128xf32> -> vector<2x128xf32>
    %85 = arith.addf %83, %84 : vector<2x128xf32>
    %86 = vector.extract_strided_slice %85 {offsets = [0, 0], sizes = [2, 96], strides = [1, 1]} : vector<2x128xf32> to vector<2x96xf32>
    %87 = arith.negf %86 : vector<2x96xf32>
    %88 = math.exp %87 : vector<2x96xf32>
    %cst_35 = arith.constant 1.000000e+00 : f32
    %89 = vector.broadcast %cst_35 : f32 to vector<2x96xf32>
    %90 = arith.addf %89, %88 : vector<2x96xf32>
    %91 = arith.divf %89, %90 : vector<2x96xf32>
    %92 = vector.extract_strided_slice %85 {offsets = [0, 96], sizes = [2, 32], strides = [1, 1]} : vector<2x128xf32> to vector<2x32xf32>
    %93 = math.tanh %92 : vector<2x32xf32>
    %94 = vector.extract_strided_slice %91 {offsets = [0, 0], sizes = [2, 32], strides = [1, 1]} : vector<2x96xf32> to vector<2x32xf32>
    %95 = vector.extract_strided_slice %91 {offsets = [0, 32], sizes = [2, 32], strides = [1, 1]} : vector<2x96xf32> to vector<2x32xf32>
    %96 = vector.extract_strided_slice %91 {offsets = [0, 64], sizes = [2, 32], strides = [1, 1]} : vector<2x96xf32> to vector<2x32xf32>
    %97 = arith.mulf %95, %76 : vector<2x32xf32>
    %98 = arith.mulf %94, %93 : vector<2x32xf32>
    %99 = arith.addf %97, %98 : vector<2x32xf32>
    %100 = math.tanh %99 : vector<2x32xf32>
    %101 = arith.mulf %96, %100 : vector<2x32xf32>
    %c0_36 = arith.constant 0 : index
    %c3 = arith.constant 3 : index
    %c0_37 = arith.constant 0 : index
    %102 = vector.load %arg7[%c0_36, %c3, %c0_37] : memref<2x8x32xf32, #tpu.memory_space<vmem>>, vector<2x1x32xf32>
    %103 = vector.shape_cast %102 : vector<2x1x32xf32> to vector<2x32xf32>
    %104 = vector.shape_cast %101 : vector<2x32xf32> to vector<2x1x32xf32>
    tpu.vector_store %arg7[%c0_36, %c3, %c0_37], %104 {strides = array<i32>} : memref<2x8x32xf32, #tpu.memory_space<vmem>>, vector<2x1x32xf32>,
    %105 = vector.extract_strided_slice %17 {offsets = [0, 4, 0], sizes = [2, 1, 128], strides = [1, 1, 1]} : vector<2x8x128xf32> to vector<2x1x128xf32>
    %106 = vector.shape_cast %105 : vector<2x1x128xf32> to vector<2x128xf32>
    %cst_38 = arith.constant dense<0.000000e+00> : vector<2x128xf32>
    %107 = tpu.matmul %101, %1, %cst_38 {dimension_numbers = #tpu.dot_dimension_numbers<[1], [0], [0], [1], [0, 0, 1, 1], [], []>} : vector<2x32xf32>, vector<32x128xf32>, vector<2x128xf32> -> vector<2x128xf32>
    %108 = arith.addf %106, %107 : vector<2x128xf32>
    %109 = vector.extract_strided_slice %108 {offsets = [0, 0], sizes = [2, 96], strides = [1, 1]} : vector<2x128xf32> to vector<2x96xf32>
    %110 = arith.negf %109 : vector<2x96xf32>
    %111 = math.exp %110 : vector<2x96xf32>
    %cst_39 = arith.constant 1.000000e+00 : f32
    %112 = vector.broadcast %cst_39 : f32 to vector<2x96xf32>
    %113 = arith.addf %112, %111 : vector<2x96xf32>
    %114 = arith.divf %112, %113 : vector<2x96xf32>
    %115 = vector.extract_strided_slice %108 {offsets = [0, 96], sizes = [2, 32], strides = [1, 1]} : vector<2x128xf32> to vector<2x32xf32>
    %116 = math.tanh %115 : vector<2x32xf32>
    %117 = vector.extract_strided_slice %114 {offsets = [0, 0], sizes = [2, 32], strides = [1, 1]} : vector<2x96xf32> to vector<2x32xf32>
    %118 = vector.extract_strided_slice %114 {offsets = [0, 32], sizes = [2, 32], strides = [1, 1]} : vector<2x96xf32> to vector<2x32xf32>
    %119 = vector.extract_strided_slice %114 {offsets = [0, 64], sizes = [2, 32], strides = [1, 1]} : vector<2x96xf32> to vector<2x32xf32>
    %120 = arith.mulf %118, %99 : vector<2x32xf32>
    %121 = arith.mulf %117, %116 : vector<2x32xf32>
    %122 = arith.addf %120, %121 : vector<2x32xf32>
    %123 = math.tanh %122 : vector<2x32xf32>
    %124 = arith.mulf %119, %123 : vector<2x32xf32>
    %c0_40 = arith.constant 0 : index
    %c4 = arith.constant 4 : index
    %c0_41 = arith.constant 0 : index
    %125 = vector.load %arg7[%c0_40, %c4, %c0_41] : memref<2x8x32xf32, #tpu.memory_space<vmem>>, vector<2x1x32xf32>
    %126 = vector.shape_cast %125 : vector<2x1x32xf32> to vector<2x32xf32>
    %127 = vector.shape_cast %124 : vector<2x32xf32> to vector<2x1x32xf32>
    tpu.vector_store %arg7[%c0_40, %c4, %c0_41], %127 {strides = array<i32>} : memref<2x8x32xf32, #tpu.memory_space<vmem>>, vector<2x1x32xf32>,
    %128 = vector.extract_strided_slice %17 {offsets = [0, 5, 0], sizes = [2, 1, 128], strides = [1, 1, 1]} : vector<2x8x128xf32> to vector<2x1x128xf32>
    %129 = vector.shape_cast %128 : vector<2x1x128xf32> to vector<2x128xf32>
    %cst_42 = arith.constant dense<0.000000e+00> : vector<2x128xf32>
    %130 = tpu.matmul %124, %1, %cst_42 {dimension_numbers = #tpu.dot_dimension_numbers<[1], [0], [0], [1], [0, 0, 1, 1], [], []>} : vector<2x32xf32>, vector<32x128xf32>, vector<2x128xf32> -> vector<2x128xf32>
    %131 = arith.addf %129, %130 : vector<2x128xf32>
    %132 = vector.extract_strided_slice %131 {offsets = [0, 0], sizes = [2, 96], strides = [1, 1]} : vector<2x128xf32> to vector<2x96xf32>
    %133 = arith.negf %132 : vector<2x96xf32>
    %134 = math.exp %133 : vector<2x96xf32>
    %cst_43 = arith.constant 1.000000e+00 : f32
    %135 = vector.broadcast %cst_43 : f32 to vector<2x96xf32>
    %136 = arith.addf %135, %134 : vector<2x96xf32>
    %137 = arith.divf %135, %136 : vector<2x96xf32>
    %138 = vector.extract_strided_slice %131 {offsets = [0, 96], sizes = [2, 32], strides = [1, 1]} : vector<2x128xf32> to vector<2x32xf32>
    %139 = math.tanh %138 : vector<2x32xf32>
    %140 = vector.extract_strided_slice %137 {offsets = [0, 0], sizes = [2, 32], strides = [1, 1]} : vector<2x96xf32> to vector<2x32xf32>
    %141 = vector.extract_strided_slice %137 {offsets = [0, 32], sizes = [2, 32], strides = [1, 1]} : vector<2x96xf32> to vector<2x32xf32>
    %142 = vector.extract_strided_slice %137 {offsets = [0, 64], sizes = [2, 32], strides = [1, 1]} : vector<2x96xf32> to vector<2x32xf32>
    %143 = arith.mulf %141, %122 : vector<2x32xf32>
    %144 = arith.mulf %140, %139 : vector<2x32xf32>
    %145 = arith.addf %143, %144 : vector<2x32xf32>
    %146 = math.tanh %145 : vector<2x32xf32>
    %147 = arith.mulf %142, %146 : vector<2x32xf32>
    %c0_44 = arith.constant 0 : index
    %c5 = arith.constant 5 : index
    %c0_45 = arith.constant 0 : index
    %148 = vector.load %arg7[%c0_44, %c5, %c0_45] : memref<2x8x32xf32, #tpu.memory_space<vmem>>, vector<2x1x32xf32>
    %149 = vector.shape_cast %148 : vector<2x1x32xf32> to vector<2x32xf32>
    %150 = vector.shape_cast %147 : vector<2x32xf32> to vector<2x1x32xf32>
    tpu.vector_store %arg7[%c0_44, %c5, %c0_45], %150 {strides = array<i32>} : memref<2x8x32xf32, #tpu.memory_space<vmem>>, vector<2x1x32xf32>,
    %151 = vector.extract_strided_slice %17 {offsets = [0, 6, 0], sizes = [2, 1, 128], strides = [1, 1, 1]} : vector<2x8x128xf32> to vector<2x1x128xf32>
    %152 = vector.shape_cast %151 : vector<2x1x128xf32> to vector<2x128xf32>
    %cst_46 = arith.constant dense<0.000000e+00> : vector<2x128xf32>
    %153 = tpu.matmul %147, %1, %cst_46 {dimension_numbers = #tpu.dot_dimension_numbers<[1], [0], [0], [1], [0, 0, 1, 1], [], []>} : vector<2x32xf32>, vector<32x128xf32>, vector<2x128xf32> -> vector<2x128xf32>
    %154 = arith.addf %152, %153 : vector<2x128xf32>
    %155 = vector.extract_strided_slice %154 {offsets = [0, 0], sizes = [2, 96], strides = [1, 1]} : vector<2x128xf32> to vector<2x96xf32>
    %156 = arith.negf %155 : vector<2x96xf32>
    %157 = math.exp %156 : vector<2x96xf32>
    %cst_47 = arith.constant 1.000000e+00 : f32
    %158 = vector.broadcast %cst_47 : f32 to vector<2x96xf32>
    %159 = arith.addf %158, %157 : vector<2x96xf32>
    %160 = arith.divf %158, %159 : vector<2x96xf32>
    %161 = vector.extract_strided_slice %154 {offsets = [0, 96], sizes = [2, 32], strides = [1, 1]} : vector<2x128xf32> to vector<2x32xf32>
    %162 = math.tanh %161 : vector<2x32xf32>
    %163 = vector.extract_strided_slice %160 {offsets = [0, 0], sizes = [2, 32], strides = [1, 1]} : vector<2x96xf32> to vector<2x32xf32>
    %164 = vector.extract_strided_slice %160 {offsets = [0, 32], sizes = [2, 32], strides = [1, 1]} : vector<2x96xf32> to vector<2x32xf32>
    %165 = vector.extract_strided_slice %160 {offsets = [0, 64], sizes = [2, 32], strides = [1, 1]} : vector<2x96xf32> to vector<2x32xf32>
    %166 = arith.mulf %164, %145 : vector<2x32xf32>
    %167 = arith.mulf %163, %162 : vector<2x32xf32>
    %168 = arith.addf %166, %167 : vector<2x32xf32>
    %169 = math.tanh %168 : vector<2x32xf32>
    %170 = arith.mulf %165, %169 : vector<2x32xf32>
    %c0_48 = arith.constant 0 : index
    %c6 = arith.constant 6 : index
    %c0_49 = arith.constant 0 : index
    %171 = vector.load %arg7[%c0_48, %c6, %c0_49] : memref<2x8x32xf32, #tpu.memory_space<vmem>>, vector<2x1x32xf32>
    %172 = vector.shape_cast %171 : vector<2x1x32xf32> to vector<2x32xf32>
    %173 = vector.shape_cast %170 : vector<2x32xf32> to vector<2x1x32xf32>
    tpu.vector_store %arg7[%c0_48, %c6, %c0_49], %173 {strides = array<i32>} : memref<2x8x32xf32, #tpu.memory_space<vmem>>, vector<2x1x32xf32>,
    %174 = vector.extract_strided_slice %17 {offsets = [0, 7, 0], sizes = [2, 1, 128], strides = [1, 1, 1]} : vector<2x8x128xf32> to vector<2x1x128xf32>
    %175 = vector.shape_cast %174 : vector<2x1x128xf32> to vector<2x128xf32>
    %cst_50 = arith.constant dense<0.000000e+00> : vector<2x128xf32>
    %176 = tpu.matmul %170, %1, %cst_50 {dimension_numbers = #tpu.dot_dimension_numbers<[1], [0], [0], [1], [0, 0, 1, 1], [], []>} : vector<2x32xf32>, vector<32x128xf32>, vector<2x128xf32> -> vector<2x128xf32>
    %177 = arith.addf %175, %176 : vector<2x128xf32>
    %178 = vector.extract_strided_slice %177 {offsets = [0, 0], sizes = [2, 96], strides = [1, 1]} : vector<2x128xf32> to vector<2x96xf32>
    %179 = arith.negf %178 : vector<2x96xf32>
    %180 = math.exp %179 : vector<2x96xf32>
    %cst_51 = arith.constant 1.000000e+00 : f32
    %181 = vector.broadcast %cst_51 : f32 to vector<2x96xf32>
    %182 = arith.addf %181, %180 : vector<2x96xf32>
    %183 = arith.divf %181, %182 : vector<2x96xf32>
    %184 = vector.extract_strided_slice %177 {offsets = [0, 96], sizes = [2, 32], strides = [1, 1]} : vector<2x128xf32> to vector<2x32xf32>
    %185 = math.tanh %184 : vector<2x32xf32>
    %186 = vector.extract_strided_slice %183 {offsets = [0, 0], sizes = [2, 32], strides = [1, 1]} : vector<2x96xf32> to vector<2x32xf32>
    %187 = vector.extract_strided_slice %183 {offsets = [0, 32], sizes = [2, 32], strides = [1, 1]} : vector<2x96xf32> to vector<2x32xf32>
    %188 = vector.extract_strided_slice %183 {offsets = [0, 64], sizes = [2, 32], strides = [1, 1]} : vector<2x96xf32> to vector<2x32xf32>
    %189 = arith.mulf %187, %168 : vector<2x32xf32>
    %190 = arith.mulf %186, %185 : vector<2x32xf32>
    %191 = arith.addf %189, %190 : vector<2x32xf32>
    %192 = math.tanh %191 : vector<2x32xf32>
    %193 = arith.mulf %188, %192 : vector<2x32xf32>
    %c0_52 = arith.constant 0 : index
    %c7 = arith.constant 7 : index
    %c0_53 = arith.constant 0 : index
    %194 = vector.load %arg7[%c0_52, %c7, %c0_53] : memref<2x8x32xf32, #tpu.memory_space<vmem>>, vector<2x1x32xf32>
    %195 = vector.shape_cast %194 : vector<2x1x32xf32> to vector<2x32xf32>
    %196 = vector.shape_cast %193 : vector<2x32xf32> to vector<2x1x32xf32>
    tpu.vector_store %arg7[%c0_52, %c7, %c0_53], %196 {strides = array<i32>} : memref<2x8x32xf32, #tpu.memory_space<vmem>>, vector<2x1x32xf32>,
    %c0_54 = arith.constant 0 : index
    %c0_55 = arith.constant 0 : index
    %c0_56 = arith.constant 0 : index
    %197 = vector.load %arg7[%c0_54, %c0_55, %c0_56] : memref<2x8x32xf32, #tpu.memory_space<vmem>>, vector<2x8x32xf32>
    %198 = vector.shape_cast %197 : vector<2x8x32xf32> to vector<16x32xf32>
    %cst_57 = arith.constant dense<0.000000e+00> : vector<16x32xf32>
    %199 = tpu.matmul %198, %5, %cst_57 {dimension_numbers = #tpu.dot_dimension_numbers<[1], [0], [0], [1], [0, 0, 1, 1], [], []>} : vector<16x32xf32>, vector<32x32xf32>, vector<16x32xf32> -> vector<16x32xf32>
    %200 = vector.shape_cast %199 : vector<16x32xf32> to vector<2x8x32xf32>
    %cst_58 = arith.constant 0.000000e+00 : f32
    %201 = vector.broadcast %cst_58 : f32 to vector<2x32xf32>
    %202 = tpu.concatenate %201, %193 in 1 : vector<2x32xf32>, vector<2x32xf32> -> vector<2x64xf32>
    %cst_59 = arith.constant dense<0.000000e+00> : vector<2x128xf32>
    %203 = tpu.matmul %202, %3, %cst_59 {dimension_numbers = #tpu.dot_dimension_numbers<[1], [0], [0], [1], [0, 0, 1, 1], [], []>} : vector<2x64xf32>, vector<64x128xf32>, vector<2x128xf32> -> vector<2x128xf32>
    %204 = vector.broadcast %4 : vector<1x128xf32> to vector<2x128xf32>
    %205 = arith.addf %203, %204 : vector<2x128xf32>
    %206 = vector.extract_strided_slice %205 {offsets = [0, 0], sizes = [2, 96], strides = [1, 1]} : vector<2x128xf32> to vector<2x96xf32>
    %207 = arith.negf %206 : vector<2x96xf32>
    %208 = math.exp %207 : vector<2x96xf32>
    %cst_60 = arith.constant 1.000000e+00 : f32
    %209 = vector.broadcast %cst_60 : f32 to vector<2x96xf32>
    %210 = arith.addf %209, %208 : vector<2x96xf32>
    %211 = arith.divf %209, %210 : vector<2x96xf32>
    %212 = vector.extract_strided_slice %205 {offsets = [0, 96], sizes = [2, 32], strides = [1, 1]} : vector<2x128xf32> to vector<2x32xf32>
    %213 = math.tanh %212 : vector<2x32xf32>
    %214 = vector.extract_strided_slice %211 {offsets = [0, 0], sizes = [2, 32], strides = [1, 1]} : vector<2x96xf32> to vector<2x32xf32>
    %215 = vector.extract_strided_slice %211 {offsets = [0, 32], sizes = [2, 32], strides = [1, 1]} : vector<2x96xf32> to vector<2x32xf32>
    %216 = vector.extract_strided_slice %211 {offsets = [0, 64], sizes = [2, 32], strides = [1, 1]} : vector<2x96xf32> to vector<2x32xf32>
    %217 = arith.mulf %215, %191 : vector<2x32xf32>
    %218 = arith.mulf %214, %213 : vector<2x32xf32>
    %219 = arith.addf %217, %218 : vector<2x32xf32>
    %220 = math.tanh %219 : vector<2x32xf32>
    %221 = arith.mulf %216, %220 : vector<2x32xf32>
    %cst_61 = arith.constant dense<0.000000e+00> : vector<2x32xf32>
    %222 = tpu.matmul %221, %6, %cst_61 {dimension_numbers = #tpu.dot_dimension_numbers<[1], [0], [0], [1], [0, 0, 1, 1], [], []>} : vector<2x32xf32>, vector<32x32xf32>, vector<2x32xf32> -> vector<2x32xf32>
    %223 = vector.shape_cast %222 : vector<2x32xf32> to vector<2x1x32xf32>
    %224 = vector.broadcast %223 : vector<2x1x32xf32> to vector<2x8x32xf32>
    %225 = arith.addf %200, %224 : vector<2x8x32xf32>
    %226 = math.tanh %225 : vector<2x8x32xf32>
    %227 = vector.shape_cast %7 : vector<1x32xf32> to vector<1x1x32xf32>
    %228 = vector.broadcast %227 : vector<1x1x32xf32> to vector<2x8x32xf32>
    %229 = arith.mulf %226, %228 : vector<2x8x32xf32>
    %cst_62 = arith.constant dense<0.000000e+00> : vector<2x8xf32>
    %230 = vector.multi_reduction <add>, %229, %cst_62 [2] : vector<2x8x32xf32> to vector<2x8xf32>
    %231 = vector.shape_cast %230 : vector<2x8xf32> to vector<2x8x1xf32>
    %cst_63 = arith.constant dense<0xFF800000> : vector<2x1xf32>
    %232 = vector.multi_reduction <maximumf>, %231, %cst_63 [1] : vector<2x8x1xf32> to vector<2x1xf32>
    %233 = vector.shape_cast %232 : vector<2x1xf32> to vector<2x1x1xf32>
    %234 = vector.broadcast %233 : vector<2x1x1xf32> to vector<2x8x1xf32>
    %235 = arith.subf %231, %234 : vector<2x8x1xf32>
    %236 = math.exp %235 : vector<2x8x1xf32>
    %cst_64 = arith.constant dense<0.000000e+00> : vector<2x1xf32>
    %237 = vector.multi_reduction <add>, %236, %cst_64 [1] : vector<2x8x1xf32> to vector<2x1xf32>
    %238 = vector.shape_cast %237 : vector<2x1xf32> to vector<2x1x1xf32>
    %239 = tpu.reciprocal %238 {approx = true} : vector<2x1x1xf32> -> vector<2x1x1xf32>
    %240 = vector.broadcast %239 : vector<2x1x1xf32> to vector<2x8x1xf32>
    %241 = arith.mulf %236, %240 : vector<2x8x1xf32>
    %242 = vector.broadcast %241 : vector<2x8x1xf32> to vector<2x8x32xf32>
    %243 = arith.mulf %242, %197 : vector<2x8x32xf32>
    %cst_65 = arith.constant dense<0.000000e+00> : vector<2x32xf32>
    %244 = vector.multi_reduction <add>, %243, %cst_65 [1] : vector<2x8x32xf32> to vector<2x32xf32>
    %245 = tpu.concatenate %244, %221 in 1 : vector<2x32xf32>, vector<2x32xf32> -> vector<2x64xf32>
    %cst_66 = arith.constant dense<0.000000e+00> : vector<2x128xf32>
    %246 = tpu.matmul %245, %3, %cst_66 {dimension_numbers = #tpu.dot_dimension_numbers<[1], [0], [0], [1], [0, 0, 1, 1], [], []>} : vector<2x64xf32>, vector<64x128xf32>, vector<2x128xf32> -> vector<2x128xf32>
    %247 = vector.broadcast %4 : vector<1x128xf32> to vector<2x128xf32>
    %248 = arith.addf %246, %247 : vector<2x128xf32>
    %249 = vector.extract_strided_slice %248 {offsets = [0, 0], sizes = [2, 96], strides = [1, 1]} : vector<2x128xf32> to vector<2x96xf32>
    %250 = arith.negf %249 : vector<2x96xf32>
    %251 = math.exp %250 : vector<2x96xf32>
    %cst_67 = arith.constant 1.000000e+00 : f32
    %252 = vector.broadcast %cst_67 : f32 to vector<2x96xf32>
    %253 = arith.addf %252, %251 : vector<2x96xf32>
    %254 = arith.divf %252, %253 : vector<2x96xf32>
    %255 = vector.extract_strided_slice %248 {offsets = [0, 96], sizes = [2, 32], strides = [1, 1]} : vector<2x128xf32> to vector<2x32xf32>
    %256 = math.tanh %255 : vector<2x32xf32>
    %257 = vector.extract_strided_slice %254 {offsets = [0, 0], sizes = [2, 32], strides = [1, 1]} : vector<2x96xf32> to vector<2x32xf32>
    %258 = vector.extract_strided_slice %254 {offsets = [0, 32], sizes = [2, 32], strides = [1, 1]} : vector<2x96xf32> to vector<2x32xf32>
    %259 = vector.extract_strided_slice %254 {offsets = [0, 64], sizes = [2, 32], strides = [1, 1]} : vector<2x96xf32> to vector<2x32xf32>
    %260 = arith.mulf %258, %219 : vector<2x32xf32>
    %261 = arith.mulf %257, %256 : vector<2x32xf32>
    %262 = arith.addf %260, %261 : vector<2x32xf32>
    %263 = math.tanh %262 : vector<2x32xf32>
    %264 = arith.mulf %259, %263 : vector<2x32xf32>
    %cst_68 = arith.constant dense<0.000000e+00> : vector<2x32xf32>
    %265 = tpu.matmul %264, %6, %cst_68 {dimension_numbers = #tpu.dot_dimension_numbers<[1], [0], [0], [1], [0, 0, 1, 1], [], []>} : vector<2x32xf32>, vector<32x32xf32>, vector<2x32xf32> -> vector<2x32xf32>
    %266 = vector.shape_cast %265 : vector<2x32xf32> to vector<2x1x32xf32>
    %267 = vector.broadcast %266 : vector<2x1x32xf32> to vector<2x8x32xf32>
    %268 = arith.addf %200, %267 : vector<2x8x32xf32>
    %269 = math.tanh %268 : vector<2x8x32xf32>
    %270 = vector.shape_cast %7 : vector<1x32xf32> to vector<1x1x32xf32>
    %271 = vector.broadcast %270 : vector<1x1x32xf32> to vector<2x8x32xf32>
    %272 = arith.mulf %269, %271 : vector<2x8x32xf32>
    %cst_69 = arith.constant dense<0.000000e+00> : vector<2x8xf32>
    %273 = vector.multi_reduction <add>, %272, %cst_69 [2] : vector<2x8x32xf32> to vector<2x8xf32>
    %274 = vector.shape_cast %273 : vector<2x8xf32> to vector<2x8x1xf32>
    %cst_70 = arith.constant dense<0xFF800000> : vector<2x1xf32>
    %275 = vector.multi_reduction <maximumf>, %274, %cst_70 [1] : vector<2x8x1xf32> to vector<2x1xf32>
    %276 = vector.shape_cast %275 : vector<2x1xf32> to vector<2x1x1xf32>
    %277 = vector.broadcast %276 : vector<2x1x1xf32> to vector<2x8x1xf32>
    %278 = arith.subf %274, %277 : vector<2x8x1xf32>
    %279 = math.exp %278 : vector<2x8x1xf32>
    %cst_71 = arith.constant dense<0.000000e+00> : vector<2x1xf32>
    %280 = vector.multi_reduction <add>, %279, %cst_71 [1] : vector<2x8x1xf32> to vector<2x1xf32>
    %281 = vector.shape_cast %280 : vector<2x1xf32> to vector<2x1x1xf32>
    %282 = tpu.reciprocal %281 {approx = true} : vector<2x1x1xf32> -> vector<2x1x1xf32>
    %283 = vector.broadcast %282 : vector<2x1x1xf32> to vector<2x8x1xf32>
    %284 = arith.mulf %279, %283 : vector<2x8x1xf32>
    %285 = vector.broadcast %284 : vector<2x8x1xf32> to vector<2x8x32xf32>
    %286 = arith.mulf %285, %197 : vector<2x8x32xf32>
    %cst_72 = arith.constant dense<0.000000e+00> : vector<2x32xf32>
    %287 = vector.multi_reduction <add>, %286, %cst_72 [1] : vector<2x8x32xf32> to vector<2x32xf32>
    %288 = tpu.concatenate %287, %264 in 1 : vector<2x32xf32>, vector<2x32xf32> -> vector<2x64xf32>
    %cst_73 = arith.constant dense<0.000000e+00> : vector<2x128xf32>
    %289 = tpu.matmul %288, %3, %cst_73 {dimension_numbers = #tpu.dot_dimension_numbers<[1], [0], [0], [1], [0, 0, 1, 1], [], []>} : vector<2x64xf32>, vector<64x128xf32>, vector<2x128xf32> -> vector<2x128xf32>
    %290 = vector.broadcast %4 : vector<1x128xf32> to vector<2x128xf32>
    %291 = arith.addf %289, %290 : vector<2x128xf32>
    %292 = vector.extract_strided_slice %291 {offsets = [0, 0], sizes = [2, 96], strides = [1, 1]} : vector<2x128xf32> to vector<2x96xf32>
    %293 = arith.negf %292 : vector<2x96xf32>
    %294 = math.exp %293 : vector<2x96xf32>
    %cst_74 = arith.constant 1.000000e+00 : f32
    %295 = vector.broadcast %cst_74 : f32 to vector<2x96xf32>
    %296 = arith.addf %295, %294 : vector<2x96xf32>
    %297 = arith.divf %295, %296 : vector<2x96xf32>
    %298 = vector.extract_strided_slice %291 {offsets = [0, 96], sizes = [2, 32], strides = [1, 1]} : vector<2x128xf32> to vector<2x32xf32>
    %299 = math.tanh %298 : vector<2x32xf32>
    %300 = vector.extract_strided_slice %297 {offsets = [0, 0], sizes = [2, 32], strides = [1, 1]} : vector<2x96xf32> to vector<2x32xf32>
    %301 = vector.extract_strided_slice %297 {offsets = [0, 32], sizes = [2, 32], strides = [1, 1]} : vector<2x96xf32> to vector<2x32xf32>
    %302 = vector.extract_strided_slice %297 {offsets = [0, 64], sizes = [2, 32], strides = [1, 1]} : vector<2x96xf32> to vector<2x32xf32>
    %303 = arith.mulf %301, %262 : vector<2x32xf32>
    %304 = arith.mulf %300, %299 : vector<2x32xf32>
    %305 = arith.addf %303, %304 : vector<2x32xf32>
    %306 = math.tanh %305 : vector<2x32xf32>
    %307 = arith.mulf %302, %306 : vector<2x32xf32>
    %cst_75 = arith.constant dense<0.000000e+00> : vector<2x32xf32>
    %308 = tpu.matmul %307, %6, %cst_75 {dimension_numbers = #tpu.dot_dimension_numbers<[1], [0], [0], [1], [0, 0, 1, 1], [], []>} : vector<2x32xf32>, vector<32x32xf32>, vector<2x32xf32> -> vector<2x32xf32>
    %309 = vector.shape_cast %308 : vector<2x32xf32> to vector<2x1x32xf32>
    %310 = vector.broadcast %309 : vector<2x1x32xf32> to vector<2x8x32xf32>
    %311 = arith.addf %200, %310 : vector<2x8x32xf32>
    %312 = math.tanh %311 : vector<2x8x32xf32>
    %313 = vector.shape_cast %7 : vector<1x32xf32> to vector<1x1x32xf32>
    %314 = vector.broadcast %313 : vector<1x1x32xf32> to vector<2x8x32xf32>
    %315 = arith.mulf %312, %314 : vector<2x8x32xf32>
    %cst_76 = arith.constant dense<0.000000e+00> : vector<2x8xf32>
    %316 = vector.multi_reduction <add>, %315, %cst_76 [2] : vector<2x8x32xf32> to vector<2x8xf32>
    %317 = vector.shape_cast %316 : vector<2x8xf32> to vector<2x8x1xf32>
    %cst_77 = arith.constant dense<0xFF800000> : vector<2x1xf32>
    %318 = vector.multi_reduction <maximumf>, %317, %cst_77 [1] : vector<2x8x1xf32> to vector<2x1xf32>
    %319 = vector.shape_cast %318 : vector<2x1xf32> to vector<2x1x1xf32>
    %320 = vector.broadcast %319 : vector<2x1x1xf32> to vector<2x8x1xf32>
    %321 = arith.subf %317, %320 : vector<2x8x1xf32>
    %322 = math.exp %321 : vector<2x8x1xf32>
    %cst_78 = arith.constant dense<0.000000e+00> : vector<2x1xf32>
    %323 = vector.multi_reduction <add>, %322, %cst_78 [1] : vector<2x8x1xf32> to vector<2x1xf32>
    %324 = vector.shape_cast %323 : vector<2x1xf32> to vector<2x1x1xf32>
    %325 = tpu.reciprocal %324 {approx = true} : vector<2x1x1xf32> -> vector<2x1x1xf32>
    %326 = vector.broadcast %325 : vector<2x1x1xf32> to vector<2x8x1xf32>
    %327 = arith.mulf %322, %326 : vector<2x8x1xf32>
    %328 = vector.broadcast %327 : vector<2x8x1xf32> to vector<2x8x32xf32>
    %329 = arith.mulf %328, %197 : vector<2x8x32xf32>
    %cst_79 = arith.constant dense<0.000000e+00> : vector<2x32xf32>
    %330 = vector.multi_reduction <add>, %329, %cst_79 [1] : vector<2x8x32xf32> to vector<2x32xf32>
    %331 = tpu.concatenate %330, %307 in 1 : vector<2x32xf32>, vector<2x32xf32> -> vector<2x64xf32>
    %cst_80 = arith.constant dense<0.000000e+00> : vector<2x128xf32>
    %332 = tpu.matmul %331, %3, %cst_80 {dimension_numbers = #tpu.dot_dimension_numbers<[1], [0], [0], [1], [0, 0, 1, 1], [], []>} : vector<2x64xf32>, vector<64x128xf32>, vector<2x128xf32> -> vector<2x128xf32>
    %333 = vector.broadcast %4 : vector<1x128xf32> to vector<2x128xf32>
    %334 = arith.addf %332, %333 : vector<2x128xf32>
    %335 = vector.extract_strided_slice %334 {offsets = [0, 0], sizes = [2, 96], strides = [1, 1]} : vector<2x128xf32> to vector<2x96xf32>
    %336 = arith.negf %335 : vector<2x96xf32>
    %337 = math.exp %336 : vector<2x96xf32>
    %cst_81 = arith.constant 1.000000e+00 : f32
    %338 = vector.broadcast %cst_81 : f32 to vector<2x96xf32>
    %339 = arith.addf %338, %337 : vector<2x96xf32>
    %340 = arith.divf %338, %339 : vector<2x96xf32>
    %341 = vector.extract_strided_slice %334 {offsets = [0, 96], sizes = [2, 32], strides = [1, 1]} : vector<2x128xf32> to vector<2x32xf32>
    %342 = math.tanh %341 : vector<2x32xf32>
    %343 = vector.extract_strided_slice %340 {offsets = [0, 0], sizes = [2, 32], strides = [1, 1]} : vector<2x96xf32> to vector<2x32xf32>
    %344 = vector.extract_strided_slice %340 {offsets = [0, 32], sizes = [2, 32], strides = [1, 1]} : vector<2x96xf32> to vector<2x32xf32>
    %345 = vector.extract_strided_slice %340 {offsets = [0, 64], sizes = [2, 32], strides = [1, 1]} : vector<2x96xf32> to vector<2x32xf32>
    %346 = arith.mulf %344, %305 : vector<2x32xf32>
    %347 = arith.mulf %343, %342 : vector<2x32xf32>
    %348 = arith.addf %346, %347 : vector<2x32xf32>
    %349 = math.tanh %348 : vector<2x32xf32>
    %350 = arith.mulf %345, %349 : vector<2x32xf32>
    %cst_82 = arith.constant dense<0.000000e+00> : vector<2x32xf32>
    %351 = tpu.matmul %350, %6, %cst_82 {dimension_numbers = #tpu.dot_dimension_numbers<[1], [0], [0], [1], [0, 0, 1, 1], [], []>} : vector<2x32xf32>, vector<32x32xf32>, vector<2x32xf32> -> vector<2x32xf32>
    %352 = vector.shape_cast %351 : vector<2x32xf32> to vector<2x1x32xf32>
    %353 = vector.broadcast %352 : vector<2x1x32xf32> to vector<2x8x32xf32>
    %354 = arith.addf %200, %353 : vector<2x8x32xf32>
    %355 = math.tanh %354 : vector<2x8x32xf32>
    %356 = vector.shape_cast %7 : vector<1x32xf32> to vector<1x1x32xf32>
    %357 = vector.broadcast %356 : vector<1x1x32xf32> to vector<2x8x32xf32>
    %358 = arith.mulf %355, %357 : vector<2x8x32xf32>
    %cst_83 = arith.constant dense<0.000000e+00> : vector<2x8xf32>
    %359 = vector.multi_reduction <add>, %358, %cst_83 [2] : vector<2x8x32xf32> to vector<2x8xf32>
    %360 = vector.shape_cast %359 : vector<2x8xf32> to vector<2x8x1xf32>
    %cst_84 = arith.constant dense<0xFF800000> : vector<2x1xf32>
    %361 = vector.multi_reduction <maximumf>, %360, %cst_84 [1] : vector<2x8x1xf32> to vector<2x1xf32>
    %362 = vector.shape_cast %361 : vector<2x1xf32> to vector<2x1x1xf32>
    %363 = vector.broadcast %362 : vector<2x1x1xf32> to vector<2x8x1xf32>
    %364 = arith.subf %360, %363 : vector<2x8x1xf32>
    %365 = math.exp %364 : vector<2x8x1xf32>
    %cst_85 = arith.constant dense<0.000000e+00> : vector<2x1xf32>
    %366 = vector.multi_reduction <add>, %365, %cst_85 [1] : vector<2x8x1xf32> to vector<2x1xf32>
    %367 = vector.shape_cast %366 : vector<2x1xf32> to vector<2x1x1xf32>
    %368 = tpu.reciprocal %367 {approx = true} : vector<2x1x1xf32> -> vector<2x1x1xf32>
    %369 = vector.broadcast %368 : vector<2x1x1xf32> to vector<2x8x1xf32>
    %370 = arith.mulf %365, %369 : vector<2x8x1xf32>
    %371 = vector.broadcast %370 : vector<2x8x1xf32> to vector<2x8x32xf32>
    %372 = arith.mulf %371, %197 : vector<2x8x32xf32>
    %cst_86 = arith.constant dense<0.000000e+00> : vector<2x32xf32>
    %373 = vector.multi_reduction <add>, %372, %cst_86 [1] : vector<2x8x32xf32> to vector<2x32xf32>
    %374 = tpu.concatenate %373, %350 in 1 : vector<2x32xf32>, vector<2x32xf32> -> vector<2x64xf32>
    %cst_87 = arith.constant dense<0.000000e+00> : vector<2x128xf32>
    %375 = tpu.matmul %374, %3, %cst_87 {dimension_numbers = #tpu.dot_dimension_numbers<[1], [0], [0], [1], [0, 0, 1, 1], [], []>} : vector<2x64xf32>, vector<64x128xf32>, vector<2x128xf32> -> vector<2x128xf32>
    %376 = vector.broadcast %4 : vector<1x128xf32> to vector<2x128xf32>
    %377 = arith.addf %375, %376 : vector<2x128xf32>
    %378 = vector.extract_strided_slice %377 {offsets = [0, 0], sizes = [2, 96], strides = [1, 1]} : vector<2x128xf32> to vector<2x96xf32>
    %379 = arith.negf %378 : vector<2x96xf32>
    %380 = math.exp %379 : vector<2x96xf32>
    %cst_88 = arith.constant 1.000000e+00 : f32
    %381 = vector.broadcast %cst_88 : f32 to vector<2x96xf32>
    %382 = arith.addf %381, %380 : vector<2x96xf32>
    %383 = arith.divf %381, %382 : vector<2x96xf32>
    %384 = vector.extract_strided_slice %377 {offsets = [0, 96], sizes = [2, 32], strides = [1, 1]} : vector<2x128xf32> to vector<2x32xf32>
    %385 = math.tanh %384 : vector<2x32xf32>
    %386 = vector.extract_strided_slice %383 {offsets = [0, 0], sizes = [2, 32], strides = [1, 1]} : vector<2x96xf32> to vector<2x32xf32>
    %387 = vector.extract_strided_slice %383 {offsets = [0, 32], sizes = [2, 32], strides = [1, 1]} : vector<2x96xf32> to vector<2x32xf32>
    %388 = vector.extract_strided_slice %383 {offsets = [0, 64], sizes = [2, 32], strides = [1, 1]} : vector<2x96xf32> to vector<2x32xf32>
    %389 = arith.mulf %387, %348 : vector<2x32xf32>
    %390 = arith.mulf %386, %385 : vector<2x32xf32>
    %391 = arith.addf %389, %390 : vector<2x32xf32>
    %392 = math.tanh %391 : vector<2x32xf32>
    %393 = arith.mulf %388, %392 : vector<2x32xf32>
    %cst_89 = arith.constant dense<0.000000e+00> : vector<2x32xf32>
    %394 = tpu.matmul %393, %6, %cst_89 {dimension_numbers = #tpu.dot_dimension_numbers<[1], [0], [0], [1], [0, 0, 1, 1], [], []>} : vector<2x32xf32>, vector<32x32xf32>, vector<2x32xf32> -> vector<2x32xf32>
    %395 = vector.shape_cast %394 : vector<2x32xf32> to vector<2x1x32xf32>
    %396 = vector.broadcast %395 : vector<2x1x32xf32> to vector<2x8x32xf32>
    %397 = arith.addf %200, %396 : vector<2x8x32xf32>
    %398 = math.tanh %397 : vector<2x8x32xf32>
    %399 = vector.shape_cast %7 : vector<1x32xf32> to vector<1x1x32xf32>
    %400 = vector.broadcast %399 : vector<1x1x32xf32> to vector<2x8x32xf32>
    %401 = arith.mulf %398, %400 : vector<2x8x32xf32>
    %cst_90 = arith.constant dense<0.000000e+00> : vector<2x8xf32>
    %402 = vector.multi_reduction <add>, %401, %cst_90 [2] : vector<2x8x32xf32> to vector<2x8xf32>
    %403 = vector.shape_cast %402 : vector<2x8xf32> to vector<2x8x1xf32>
    %cst_91 = arith.constant dense<0xFF800000> : vector<2x1xf32>
    %404 = vector.multi_reduction <maximumf>, %403, %cst_91 [1] : vector<2x8x1xf32> to vector<2x1xf32>
    %405 = vector.shape_cast %404 : vector<2x1xf32> to vector<2x1x1xf32>
    %406 = vector.broadcast %405 : vector<2x1x1xf32> to vector<2x8x1xf32>
    %407 = arith.subf %403, %406 : vector<2x8x1xf32>
    %408 = math.exp %407 : vector<2x8x1xf32>
    %cst_92 = arith.constant dense<0.000000e+00> : vector<2x1xf32>
    %409 = vector.multi_reduction <add>, %408, %cst_92 [1] : vector<2x8x1xf32> to vector<2x1xf32>
    %410 = vector.shape_cast %409 : vector<2x1xf32> to vector<2x1x1xf32>
    %411 = tpu.reciprocal %410 {approx = true} : vector<2x1x1xf32> -> vector<2x1x1xf32>
    %412 = vector.broadcast %411 : vector<2x1x1xf32> to vector<2x8x1xf32>
    %413 = arith.mulf %408, %412 : vector<2x8x1xf32>
    %414 = vector.broadcast %413 : vector<2x8x1xf32> to vector<2x8x32xf32>
    %415 = arith.mulf %414, %197 : vector<2x8x32xf32>
    %cst_93 = arith.constant dense<0.000000e+00> : vector<2x32xf32>
    %416 = vector.multi_reduction <add>, %415, %cst_93 [1] : vector<2x8x32xf32> to vector<2x32xf32>
    %417 = tpu.concatenate %416, %393 in 1 : vector<2x32xf32>, vector<2x32xf32> -> vector<2x64xf32>
    %cst_94 = arith.constant dense<0.000000e+00> : vector<2x128xf32>
    %418 = tpu.matmul %417, %3, %cst_94 {dimension_numbers = #tpu.dot_dimension_numbers<[1], [0], [0], [1], [0, 0, 1, 1], [], []>} : vector<2x64xf32>, vector<64x128xf32>, vector<2x128xf32> -> vector<2x128xf32>
    %419 = vector.broadcast %4 : vector<1x128xf32> to vector<2x128xf32>
    %420 = arith.addf %418, %419 : vector<2x128xf32>
    %421 = vector.extract_strided_slice %420 {offsets = [0, 0], sizes = [2, 96], strides = [1, 1]} : vector<2x128xf32> to vector<2x96xf32>
    %422 = arith.negf %421 : vector<2x96xf32>
    %423 = math.exp %422 : vector<2x96xf32>
    %cst_95 = arith.constant 1.000000e+00 : f32
    %424 = vector.broadcast %cst_95 : f32 to vector<2x96xf32>
    %425 = arith.addf %424, %423 : vector<2x96xf32>
    %426 = arith.divf %424, %425 : vector<2x96xf32>
    %427 = vector.extract_strided_slice %420 {offsets = [0, 96], sizes = [2, 32], strides = [1, 1]} : vector<2x128xf32> to vector<2x32xf32>
    %428 = math.tanh %427 : vector<2x32xf32>
    %429 = vector.extract_strided_slice %426 {offsets = [0, 0], sizes = [2, 32], strides = [1, 1]} : vector<2x96xf32> to vector<2x32xf32>
    %430 = vector.extract_strided_slice %426 {offsets = [0, 32], sizes = [2, 32], strides = [1, 1]} : vector<2x96xf32> to vector<2x32xf32>
    %431 = vector.extract_strided_slice %426 {offsets = [0, 64], sizes = [2, 32], strides = [1, 1]} : vector<2x96xf32> to vector<2x32xf32>
    %432 = arith.mulf %430, %391 : vector<2x32xf32>
    %433 = arith.mulf %429, %428 : vector<2x32xf32>
    %434 = arith.addf %432, %433 : vector<2x32xf32>
    %435 = math.tanh %434 : vector<2x32xf32>
    %436 = arith.mulf %431, %435 : vector<2x32xf32>
    %cst_96 = arith.constant dense<0.000000e+00> : vector<2x32xf32>
    %437 = tpu.matmul %436, %6, %cst_96 {dimension_numbers = #tpu.dot_dimension_numbers<[1], [0], [0], [1], [0, 0, 1, 1], [], []>} : vector<2x32xf32>, vector<32x32xf32>, vector<2x32xf32> -> vector<2x32xf32>
    %438 = vector.shape_cast %437 : vector<2x32xf32> to vector<2x1x32xf32>
    %439 = vector.broadcast %438 : vector<2x1x32xf32> to vector<2x8x32xf32>
    %440 = arith.addf %200, %439 : vector<2x8x32xf32>
    %441 = math.tanh %440 : vector<2x8x32xf32>
    %442 = vector.shape_cast %7 : vector<1x32xf32> to vector<1x1x32xf32>
    %443 = vector.broadcast %442 : vector<1x1x32xf32> to vector<2x8x32xf32>
    %444 = arith.mulf %441, %443 : vector<2x8x32xf32>
    %cst_97 = arith.constant dense<0.000000e+00> : vector<2x8xf32>
    %445 = vector.multi_reduction <add>, %444, %cst_97 [2] : vector<2x8x32xf32> to vector<2x8xf32>
    %446 = vector.shape_cast %445 : vector<2x8xf32> to vector<2x8x1xf32>
    %cst_98 = arith.constant dense<0xFF800000> : vector<2x1xf32>
    %447 = vector.multi_reduction <maximumf>, %446, %cst_98 [1] : vector<2x8x1xf32> to vector<2x1xf32>
    %448 = vector.shape_cast %447 : vector<2x1xf32> to vector<2x1x1xf32>
    %449 = vector.broadcast %448 : vector<2x1x1xf32> to vector<2x8x1xf32>
    %450 = arith.subf %446, %449 : vector<2x8x1xf32>
    %451 = math.exp %450 : vector<2x8x1xf32>
    %cst_99 = arith.constant dense<0.000000e+00> : vector<2x1xf32>
    %452 = vector.multi_reduction <add>, %451, %cst_99 [1] : vector<2x8x1xf32> to vector<2x1xf32>
    %453 = vector.shape_cast %452 : vector<2x1xf32> to vector<2x1x1xf32>
    %454 = tpu.reciprocal %453 {approx = true} : vector<2x1x1xf32> -> vector<2x1x1xf32>
    %455 = vector.broadcast %454 : vector<2x1x1xf32> to vector<2x8x1xf32>
    %456 = arith.mulf %451, %455 : vector<2x8x1xf32>
    %457 = vector.broadcast %456 : vector<2x8x1xf32> to vector<2x8x32xf32>
    %458 = arith.mulf %457, %197 : vector<2x8x32xf32>
    %cst_100 = arith.constant dense<0.000000e+00> : vector<2x32xf32>
    %459 = vector.multi_reduction <add>, %458, %cst_100 [1] : vector<2x8x32xf32> to vector<2x32xf32>
    %460 = tpu.concatenate %459, %436 in 1 : vector<2x32xf32>, vector<2x32xf32> -> vector<2x64xf32>
    %cst_101 = arith.constant dense<0.000000e+00> : vector<2x128xf32>
    %461 = tpu.matmul %460, %3, %cst_101 {dimension_numbers = #tpu.dot_dimension_numbers<[1], [0], [0], [1], [0, 0, 1, 1], [], []>} : vector<2x64xf32>, vector<64x128xf32>, vector<2x128xf32> -> vector<2x128xf32>
    %462 = vector.broadcast %4 : vector<1x128xf32> to vector<2x128xf32>
    %463 = arith.addf %461, %462 : vector<2x128xf32>
    %464 = vector.extract_strided_slice %463 {offsets = [0, 0], sizes = [2, 96], strides = [1, 1]} : vector<2x128xf32> to vector<2x96xf32>
    %465 = arith.negf %464 : vector<2x96xf32>
    %466 = math.exp %465 : vector<2x96xf32>
    %cst_102 = arith.constant 1.000000e+00 : f32
    %467 = vector.broadcast %cst_102 : f32 to vector<2x96xf32>
    %468 = arith.addf %467, %466 : vector<2x96xf32>
    %469 = arith.divf %467, %468 : vector<2x96xf32>
    %470 = vector.extract_strided_slice %463 {offsets = [0, 96], sizes = [2, 32], strides = [1, 1]} : vector<2x128xf32> to vector<2x32xf32>
    %471 = math.tanh %470 : vector<2x32xf32>
    %472 = vector.extract_strided_slice %469 {offsets = [0, 0], sizes = [2, 32], strides = [1, 1]} : vector<2x96xf32> to vector<2x32xf32>
    %473 = vector.extract_strided_slice %469 {offsets = [0, 32], sizes = [2, 32], strides = [1, 1]} : vector<2x96xf32> to vector<2x32xf32>
    %474 = vector.extract_strided_slice %469 {offsets = [0, 64], sizes = [2, 32], strides = [1, 1]} : vector<2x96xf32> to vector<2x32xf32>
    %475 = arith.mulf %473, %434 : vector<2x32xf32>
    %476 = arith.mulf %472, %471 : vector<2x32xf32>
    %477 = arith.addf %475, %476 : vector<2x32xf32>
    %478 = math.tanh %477 : vector<2x32xf32>
    %479 = arith.mulf %474, %478 : vector<2x32xf32>
    %cst_103 = arith.constant dense<0.000000e+00> : vector<2x32xf32>
    %480 = tpu.matmul %479, %6, %cst_103 {dimension_numbers = #tpu.dot_dimension_numbers<[1], [0], [0], [1], [0, 0, 1, 1], [], []>} : vector<2x32xf32>, vector<32x32xf32>, vector<2x32xf32> -> vector<2x32xf32>
    %481 = vector.shape_cast %480 : vector<2x32xf32> to vector<2x1x32xf32>
    %482 = vector.broadcast %481 : vector<2x1x32xf32> to vector<2x8x32xf32>
    %483 = arith.addf %200, %482 : vector<2x8x32xf32>
    %484 = math.tanh %483 : vector<2x8x32xf32>
    %485 = vector.shape_cast %7 : vector<1x32xf32> to vector<1x1x32xf32>
    %486 = vector.broadcast %485 : vector<1x1x32xf32> to vector<2x8x32xf32>
    %487 = arith.mulf %484, %486 : vector<2x8x32xf32>
    %cst_104 = arith.constant dense<0.000000e+00> : vector<2x8xf32>
    %488 = vector.multi_reduction <add>, %487, %cst_104 [2] : vector<2x8x32xf32> to vector<2x8xf32>
    %489 = vector.shape_cast %488 : vector<2x8xf32> to vector<2x8x1xf32>
    %cst_105 = arith.constant dense<0xFF800000> : vector<2x1xf32>
    %490 = vector.multi_reduction <maximumf>, %489, %cst_105 [1] : vector<2x8x1xf32> to vector<2x1xf32>
    %491 = vector.shape_cast %490 : vector<2x1xf32> to vector<2x1x1xf32>
    %492 = vector.broadcast %491 : vector<2x1x1xf32> to vector<2x8x1xf32>
    %493 = arith.subf %489, %492 : vector<2x8x1xf32>
    %494 = math.exp %493 : vector<2x8x1xf32>
    %cst_106 = arith.constant dense<0.000000e+00> : vector<2x1xf32>
    %495 = vector.multi_reduction <add>, %494, %cst_106 [1] : vector<2x8x1xf32> to vector<2x1xf32>
    %496 = vector.shape_cast %495 : vector<2x1xf32> to vector<2x1x1xf32>
    %497 = tpu.reciprocal %496 {approx = true} : vector<2x1x1xf32> -> vector<2x1x1xf32>
    %498 = vector.broadcast %497 : vector<2x1x1xf32> to vector<2x8x1xf32>
    %499 = arith.mulf %494, %498 : vector<2x8x1xf32>
    %500 = vector.broadcast %499 : vector<2x8x1xf32> to vector<2x8x32xf32>
    %501 = arith.mulf %500, %197 : vector<2x8x32xf32>
    %cst_107 = arith.constant dense<0.000000e+00> : vector<2x32xf32>
    %502 = vector.multi_reduction <add>, %501, %cst_107 [1] : vector<2x8x32xf32> to vector<2x32xf32>
    %503 = tpu.concatenate %502, %479 in 1 : vector<2x32xf32>, vector<2x32xf32> -> vector<2x64xf32>
    %cst_108 = arith.constant dense<0.000000e+00> : vector<2x128xf32>
    %504 = tpu.matmul %503, %3, %cst_108 {dimension_numbers = #tpu.dot_dimension_numbers<[1], [0], [0], [1], [0, 0, 1, 1], [], []>} : vector<2x64xf32>, vector<64x128xf32>, vector<2x128xf32> -> vector<2x128xf32>
    %505 = vector.broadcast %4 : vector<1x128xf32> to vector<2x128xf32>
    %506 = arith.addf %504, %505 : vector<2x128xf32>
    %507 = vector.extract_strided_slice %506 {offsets = [0, 0], sizes = [2, 96], strides = [1, 1]} : vector<2x128xf32> to vector<2x96xf32>
    %508 = arith.negf %507 : vector<2x96xf32>
    %509 = math.exp %508 : vector<2x96xf32>
    %cst_109 = arith.constant 1.000000e+00 : f32
    %510 = vector.broadcast %cst_109 : f32 to vector<2x96xf32>
    %511 = arith.addf %510, %509 : vector<2x96xf32>
    %512 = arith.divf %510, %511 : vector<2x96xf32>
    %513 = vector.extract_strided_slice %506 {offsets = [0, 96], sizes = [2, 32], strides = [1, 1]} : vector<2x128xf32> to vector<2x32xf32>
    %514 = math.tanh %513 : vector<2x32xf32>
    %515 = vector.extract_strided_slice %512 {offsets = [0, 0], sizes = [2, 32], strides = [1, 1]} : vector<2x96xf32> to vector<2x32xf32>
    %516 = vector.extract_strided_slice %512 {offsets = [0, 32], sizes = [2, 32], strides = [1, 1]} : vector<2x96xf32> to vector<2x32xf32>
    %517 = vector.extract_strided_slice %512 {offsets = [0, 64], sizes = [2, 32], strides = [1, 1]} : vector<2x96xf32> to vector<2x32xf32>
    %518 = arith.mulf %516, %477 : vector<2x32xf32>
    %519 = arith.mulf %515, %514 : vector<2x32xf32>
    %520 = arith.addf %518, %519 : vector<2x32xf32>
    %521 = math.tanh %520 : vector<2x32xf32>
    %522 = arith.mulf %517, %521 : vector<2x32xf32>
    %cst_110 = arith.constant dense<0.000000e+00> : vector<2x32xf32>
    %523 = tpu.matmul %522, %6, %cst_110 {dimension_numbers = #tpu.dot_dimension_numbers<[1], [0], [0], [1], [0, 0, 1, 1], [], []>} : vector<2x32xf32>, vector<32x32xf32>, vector<2x32xf32> -> vector<2x32xf32>
    %524 = vector.shape_cast %523 : vector<2x32xf32> to vector<2x1x32xf32>
    %525 = vector.broadcast %524 : vector<2x1x32xf32> to vector<2x8x32xf32>
    %526 = arith.addf %200, %525 : vector<2x8x32xf32>
    %527 = math.tanh %526 : vector<2x8x32xf32>
    %528 = vector.shape_cast %7 : vector<1x32xf32> to vector<1x1x32xf32>
    %529 = vector.broadcast %528 : vector<1x1x32xf32> to vector<2x8x32xf32>
    %530 = arith.mulf %527, %529 : vector<2x8x32xf32>
    %cst_111 = arith.constant dense<0.000000e+00> : vector<2x8xf32>
    %531 = vector.multi_reduction <add>, %530, %cst_111 [2] : vector<2x8x32xf32> to vector<2x8xf32>
    %532 = vector.shape_cast %531 : vector<2x8xf32> to vector<2x8x1xf32>
    %cst_112 = arith.constant dense<0xFF800000> : vector<2x1xf32>
    %533 = vector.multi_reduction <maximumf>, %532, %cst_112 [1] : vector<2x8x1xf32> to vector<2x1xf32>
    %534 = vector.shape_cast %533 : vector<2x1xf32> to vector<2x1x1xf32>
    %535 = vector.broadcast %534 : vector<2x1x1xf32> to vector<2x8x1xf32>
    %536 = arith.subf %532, %535 : vector<2x8x1xf32>
    %537 = math.exp %536 : vector<2x8x1xf32>
    %cst_113 = arith.constant dense<0.000000e+00> : vector<2x1xf32>
    %538 = vector.multi_reduction <add>, %537, %cst_113 [1] : vector<2x8x1xf32> to vector<2x1xf32>
    %539 = vector.shape_cast %538 : vector<2x1xf32> to vector<2x1x1xf32>
    %540 = tpu.reciprocal %539 {approx = true} : vector<2x1x1xf32> -> vector<2x1x1xf32>
    %541 = vector.broadcast %540 : vector<2x1x1xf32> to vector<2x8x1xf32>
    %542 = arith.mulf %537, %541 : vector<2x8x1xf32>
    %543 = vector.broadcast %542 : vector<2x8x1xf32> to vector<2x8x32xf32>
    %544 = arith.mulf %543, %197 : vector<2x8x32xf32>
    %cst_114 = arith.constant dense<0.000000e+00> : vector<2x32xf32>
    %545 = vector.multi_reduction <add>, %544, %cst_114 [1] : vector<2x8x32xf32> to vector<2x32xf32>
    %546 = tpu.concatenate %545, %522 in 1 : vector<2x32xf32>, vector<2x32xf32> -> vector<2x64xf32>
    %cst_115 = arith.constant dense<0.000000e+00> : vector<2x128xf32>
    %547 = tpu.matmul %546, %3, %cst_115 {dimension_numbers = #tpu.dot_dimension_numbers<[1], [0], [0], [1], [0, 0, 1, 1], [], []>} : vector<2x64xf32>, vector<64x128xf32>, vector<2x128xf32> -> vector<2x128xf32>
    %548 = vector.broadcast %4 : vector<1x128xf32> to vector<2x128xf32>
    %549 = arith.addf %547, %548 : vector<2x128xf32>
    %550 = vector.extract_strided_slice %549 {offsets = [0, 0], sizes = [2, 96], strides = [1, 1]} : vector<2x128xf32> to vector<2x96xf32>
    %551 = arith.negf %550 : vector<2x96xf32>
    %552 = math.exp %551 : vector<2x96xf32>
    %cst_116 = arith.constant 1.000000e+00 : f32
    %553 = vector.broadcast %cst_116 : f32 to vector<2x96xf32>
    %554 = arith.addf %553, %552 : vector<2x96xf32>
    %555 = arith.divf %553, %554 : vector<2x96xf32>
    %556 = vector.extract_strided_slice %549 {offsets = [0, 96], sizes = [2, 32], strides = [1, 1]} : vector<2x128xf32> to vector<2x32xf32>
    %557 = math.tanh %556 : vector<2x32xf32>
    %558 = vector.extract_strided_slice %555 {offsets = [0, 0], sizes = [2, 32], strides = [1, 1]} : vector<2x96xf32> to vector<2x32xf32>
    %559 = vector.extract_strided_slice %555 {offsets = [0, 32], sizes = [2, 32], strides = [1, 1]} : vector<2x96xf32> to vector<2x32xf32>
    %560 = vector.extract_strided_slice %555 {offsets = [0, 64], sizes = [2, 32], strides = [1, 1]} : vector<2x96xf32> to vector<2x32xf32>
    %561 = arith.mulf %559, %520 : vector<2x32xf32>
    %562 = arith.mulf %558, %557 : vector<2x32xf32>
    %563 = arith.addf %561, %562 : vector<2x32xf32>
    %564 = math.tanh %563 : vector<2x32xf32>
    %565 = arith.mulf %560, %564 : vector<2x32xf32>
    %cst_117 = arith.constant dense<0.000000e+00> : vector<2x32xf32>
    %566 = tpu.matmul %565, %6, %cst_117 {dimension_numbers = #tpu.dot_dimension_numbers<[1], [0], [0], [1], [0, 0, 1, 1], [], []>} : vector<2x32xf32>, vector<32x32xf32>, vector<2x32xf32> -> vector<2x32xf32>
    %567 = vector.shape_cast %566 : vector<2x32xf32> to vector<2x1x32xf32>
    %568 = vector.broadcast %567 : vector<2x1x32xf32> to vector<2x8x32xf32>
    %569 = arith.addf %200, %568 : vector<2x8x32xf32>
    %570 = math.tanh %569 : vector<2x8x32xf32>
    %571 = vector.shape_cast %7 : vector<1x32xf32> to vector<1x1x32xf32>
    %572 = vector.broadcast %571 : vector<1x1x32xf32> to vector<2x8x32xf32>
    %573 = arith.mulf %570, %572 : vector<2x8x32xf32>
    %cst_118 = arith.constant dense<0.000000e+00> : vector<2x8xf32>
    %574 = vector.multi_reduction <add>, %573, %cst_118 [2] : vector<2x8x32xf32> to vector<2x8xf32>
    %575 = vector.shape_cast %574 : vector<2x8xf32> to vector<2x8x1xf32>
    %cst_119 = arith.constant dense<0xFF800000> : vector<2x1xf32>
    %576 = vector.multi_reduction <maximumf>, %575, %cst_119 [1] : vector<2x8x1xf32> to vector<2x1xf32>
    %577 = vector.shape_cast %576 : vector<2x1xf32> to vector<2x1x1xf32>
    %578 = vector.broadcast %577 : vector<2x1x1xf32> to vector<2x8x1xf32>
    %579 = arith.subf %575, %578 : vector<2x8x1xf32>
    %580 = math.exp %579 : vector<2x8x1xf32>
    %cst_120 = arith.constant dense<0.000000e+00> : vector<2x1xf32>
    %581 = vector.multi_reduction <add>, %580, %cst_120 [1] : vector<2x8x1xf32> to vector<2x1xf32>
    %582 = vector.shape_cast %581 : vector<2x1xf32> to vector<2x1x1xf32>
    %583 = tpu.reciprocal %582 {approx = true} : vector<2x1x1xf32> -> vector<2x1x1xf32>
    %584 = vector.broadcast %583 : vector<2x1x1xf32> to vector<2x8x1xf32>
    %585 = arith.mulf %580, %584 : vector<2x8x1xf32>
    %586 = vector.broadcast %585 : vector<2x8x1xf32> to vector<2x8x32xf32>
    %587 = arith.mulf %586, %197 : vector<2x8x32xf32>
    %cst_121 = arith.constant dense<0.000000e+00> : vector<2x32xf32>
    %588 = vector.multi_reduction <add>, %587, %cst_121 [1] : vector<2x8x32xf32> to vector<2x32xf32>
    %589 = tpu.concatenate %588, %565 in 1 : vector<2x32xf32>, vector<2x32xf32> -> vector<2x64xf32>
    %cst_122 = arith.constant dense<0.000000e+00> : vector<2x128xf32>
    %590 = tpu.matmul %589, %3, %cst_122 {dimension_numbers = #tpu.dot_dimension_numbers<[1], [0], [0], [1], [0, 0, 1, 1], [], []>} : vector<2x64xf32>, vector<64x128xf32>, vector<2x128xf32> -> vector<2x128xf32>
    %591 = vector.broadcast %4 : vector<1x128xf32> to vector<2x128xf32>
    %592 = arith.addf %590, %591 : vector<2x128xf32>
    %593 = vector.extract_strided_slice %592 {offsets = [0, 0], sizes = [2, 96], strides = [1, 1]} : vector<2x128xf32> to vector<2x96xf32>
    %594 = arith.negf %593 : vector<2x96xf32>
    %595 = math.exp %594 : vector<2x96xf32>
    %cst_123 = arith.constant 1.000000e+00 : f32
    %596 = vector.broadcast %cst_123 : f32 to vector<2x96xf32>
    %597 = arith.addf %596, %595 : vector<2x96xf32>
    %598 = arith.divf %596, %597 : vector<2x96xf32>
    %599 = vector.extract_strided_slice %592 {offsets = [0, 96], sizes = [2, 32], strides = [1, 1]} : vector<2x128xf32> to vector<2x32xf32>
    %600 = math.tanh %599 : vector<2x32xf32>
    %601 = vector.extract_strided_slice %598 {offsets = [0, 0], sizes = [2, 32], strides = [1, 1]} : vector<2x96xf32> to vector<2x32xf32>
    %602 = vector.extract_strided_slice %598 {offsets = [0, 32], sizes = [2, 32], strides = [1, 1]} : vector<2x96xf32> to vector<2x32xf32>
    %603 = vector.extract_strided_slice %598 {offsets = [0, 64], sizes = [2, 32], strides = [1, 1]} : vector<2x96xf32> to vector<2x32xf32>
    %604 = arith.mulf %602, %563 : vector<2x32xf32>
    %605 = arith.mulf %601, %600 : vector<2x32xf32>
    %606 = arith.addf %604, %605 : vector<2x32xf32>
    %607 = math.tanh %606 : vector<2x32xf32>
    %608 = arith.mulf %603, %607 : vector<2x32xf32>
    %cst_124 = arith.constant dense<0.000000e+00> : vector<2x32xf32>
    %609 = tpu.matmul %608, %8, %cst_124 {dimension_numbers = #tpu.dot_dimension_numbers<[1], [0], [0], [1], [0, 0, 1, 1], [], []>} : vector<2x32xf32>, vector<32x32xf32>, vector<2x32xf32> -> vector<2x32xf32>
    %610 = vector.broadcast %9 : vector<1x32xf32> to vector<2x32xf32>
    %611 = arith.addf %609, %610 : vector<2x32xf32>
    %cst_125 = arith.constant 0.000000e+00 : f32
    %612 = vector.broadcast %cst_125 : f32 to vector<2x32xf32>
    %613 = arith.maximumf %611, %612 : vector<2x32xf32>
    %614 = vector.broadcast %10 : vector<1x32xf32> to vector<2x32xf32>
    %615 = arith.mulf %613, %614 : vector<2x32xf32>
    %cst_126 = arith.constant dense<0.000000e+00> : vector<2xf32>
    %616 = vector.multi_reduction <add>, %615, %cst_126 [1] : vector<2x32xf32> to vector<2xf32>
    %617 = vector.shape_cast %616 : vector<2xf32> to vector<2x1xf32>
    %618 = vector.broadcast %11 : f32 to vector<2x1xf32>
    %619 = arith.addf %617, %618 : vector<2x1xf32>
    %c0_127 = arith.constant 0 : index
    %c0_128 = arith.constant 0 : index
    %620 = vector.load %arg6[%c0_127, %c0_128] : memref<2x1xf32, #tpu.memory_space<vmem>>, vector<2x1xf32>
    tpu.vector_store %arg6[%c0_127, %c0_128], %619 {strides = array<i32>} : memref<2x1xf32, #tpu.memory_space<vmem>>, vector<2x1xf32>,
    return
  }
}

</mosaic_0001>

<llo_original>
// kernel: critic_forward.1
$region0: #{critic_forward.1}
  #allocation0 [shape = 'u32[]', space=smem, size = 0x4, offset = 0x4, fixed_abs, tag = 'smem constant byte address 0x4 - core index']
  #allocation1 [shape = 'u32[144,128]{1,0:T(1,128)}', space=vmem, size = 0x12000, scoped, tag = 'internal scratch']
  #allocation2 [shape = 'f32[2,8,32]{2,1,0:T(8,128)}', space=vmem, size = 0x2000, scoped, tag = 'scratch operand']
  #allocation3 [shape = 'f32[1,1]{1,0:T(1,128)S(6)}', space=smem, size = 0x200, scoped, tag = 'scoped memory for critic_forward.1']
  %s0 = inlined_call_operand.vmem [shape: f32[2,8,4], index: 0, kind: input, shape index: {}]
  %s1 = inlined_call_operand.vmem [shape: f32[41,128], index: 1, kind: input, shape index: {}]
  %s2 = inlined_call_operand.vmem [shape: f32[65,128], index: 2, kind: input, shape index: {}]
  %s3 = inlined_call_operand.vmem [shape: f32[65,32], index: 3, kind: input, shape index: {}]
  %s4 = inlined_call_operand.vmem [shape: f32[41,32], index: 4, kind: input, shape index: {}]
  %s5 = inlined_call_operand.<no memory space> [shape: f32[1,1], index: 5, kind: input, shape index: {}]
  %s6 = inlined_call_operand.vmem [shape: f32[2,1], index: 6, kind: output, shape index: {}]
  %s7 = sld [smem:[#allocation0]]
  $region34: #{critic_forward.1} parent=0
    _
  %s9 = ssub.s32 1, %s7
  %s10 = scalar_select 0, %s9, %s7
  %11 = sst [smem:[#allocation3]] %s5
  // Predicated region
  $region2: #{critic_forward.1} parent=0 // pred_check
    _
  $region3: #{critic_forward.1} parent=0 // pred_check_branch
    %13 = sbr.rel (0) target = $region5
  $region4: #{critic_forward.1} parent=0 // pred_region
    _
  $region5: #{critic_forward.1} parent=0 // pred_fallthru
    _
  // Predicated region
  $region6: #{critic_forward.1} parent=0 // pred_check
    _
  $region7: #{critic_forward.1} parent=0 // pred_check_branch
    %15 = sbr.rel (0) target = $region9
  $region8: #{critic_forward.1} parent=0 // pred_region
    _
  $region9: #{critic_forward.1} parent=0 // pred_fallthru
    _
  // Predicated region
  $region10: #{critic_forward.1} parent=0 // pred_check
    _
  $region11: #{critic_forward.1} parent=0 // pred_check_branch
    %17 = sbr.rel (0) target = $region13
  $region12: #{critic_forward.1} parent=0 // pred_region
    _
  $region13: #{critic_forward.1} parent=0 // pred_fallthru
    _
  // Predicated region
  $region14: #{critic_forward.1} parent=0 // pred_check
    _
  $region15: #{critic_forward.1} parent=0 // pred_check_branch
    %19 = sbr.rel (0) target = $region17
  $region16: #{critic_forward.1} parent=0 // pred_region
    _
  $region17: #{critic_forward.1} parent=0 // pred_fallthru
    _
  // Predicated region
  $region18: #{critic_forward.1} parent=0 // pred_check
    _
  $region19: #{critic_forward.1} parent=0 // pred_check_branch
    %21 = sbr.rel (0) target = $region21
  $region20: #{critic_forward.1} parent=0 // pred_region
    _
  $region21: #{critic_forward.1} parent=0 // pred_fallthru
    _
  // Predicated region
  $region22: #{critic_forward.1} parent=0 // pred_check
    _
  $region23: #{critic_forward.1} parent=0 // pred_check_branch
    %23 = sbr.rel (0) target = $region25
  $region24: #{critic_forward.1} parent=0 // pred_region
    _
  $region25: #{critic_forward.1} parent=0 // pred_fallthru
    _
  %v24 = vld [vmem:[%s1] sm:$0xf]
  %v25 = vld [vmem:[%s1 + $0x8] sm:$0xff]
  %v26 = vld [vmem:[%s1 + $0x10] sm:$0xff]
  %v27 = vld [vmem:[%s1 + $0x18] sm:$0xff]
  %v28 = vld [vmem:[%s1 + $0x20] sm:$0xff]
  %v29 = vld [vmem:[%s1 + $0x28] sm:$0x1]
  %v30 = vld [vmem:[%s2] sm:$0xff]
  %v31 = vld [vmem:[%s2 + $0x8] sm:$0xff]
  %v32 = vld [vmem:[%s2 + $0x10] sm:$0xff]
  %v33 = vld [vmem:[%s2 + $0x18] sm:$0xff]
  %v34 = vld [vmem:[%s2 + $0x20] sm:$0xff]
  %v35 = vld [vmem:[%s2 + $0x28] sm:$0xff]
  %v36 = vld [vmem:[%s2 + $0x30] sm:$0xff]
  %v37 = vld [vmem:[%s2 + $0x38] sm:$0xff]
  %v38 = vld [vmem:[%s2 + $0x40] sm:$0x1]
  %v39 = vld [vmem:[%s3] sm:$0xff]
  %v40 = vld [vmem:[%s3 + $0x8] sm:$0xff]
  %v41 = vld [vmem:[%s3 + $0x10] sm:$0xff]
  %v42 = vld [vmem:[%s3 + $0x18] sm:$0xff]
  %v43 = vld [vmem:[%s3 + $0x20] sm:$0xff]
  %v44 = vld [vmem:[%s3 + $0x28] sm:$0xff]
  %v45 = vld [vmem:[%s3 + $0x30] sm:$0xff]
  %v46 = vld [vmem:[%s3 + $0x38] sm:$0xff]
  %v47 = vld [vmem:[%s3 + $0x40] sm:$0x1]
  %v48 = vld [vmem:[%s4] sm:$0xff]
  %v49 = vld [vmem:[%s4 + $0x8] sm:$0xff]
  %v50 = vld [vmem:[%s4 + $0x10] sm:$0xff]
  %v51 = vld [vmem:[%s4 + $0x18] sm:$0xff]
  %v52 = vld [vmem:[%s4 + $0x20] sm:$0x1]
  %v53 = vld [vmem:[%s4 + $0x28] sm:$0x1]
  %s54 = sld [smem:[#allocation3]]
  %v55 = vld [vmem:[%s0] sm:$0xff]
  %v56 = vld [vmem:[%s0 + $0x8] sm:$0xff]
  %v57 = vlaneseq
  %v58 = vshrl.u32 %v57, 7
  %v59 = vsub.s32 0, %v58
  %v60 = vrot.slane %v29, %v59
  %vm61 = vcmask 31744
  %v63 = vsel %vm61, %v55, 0
  %v66 = vsel %vm61, %v56, 0
  %vm68 = vcmask 1043456
  %v70 = vsel %vm68, %v24, 0
  %72 = vmatprep.subr.mxu0 0.0
  %73 = vmatpush1.msra.mxu0 0.0
  %74 = vmatprep.subr.mxu0 0.0
  %75 = vmatpush1.msra.mxu0 0.0
  %76 = vmatprep.subr.mxu0 0.0
  %77 = vmatpush1.msra.mxu0 0.0
  %78 = vmatprep.subr.mxu0 0.0
  %79 = vmatpush1.msra.mxu0 0.0
  %80 = vmatprep.subr.mxu0 0.0
  %81 = vmatpush1.msra.mxu0 0.0
  %82 = vmatprep.subr.mxu0 0.0
  %83 = vmatpush1.msra.mxu0 0.0
  %84 = vmatprep.subr.mxu0 0.0
  %85 = vmatpush1.msra.mxu0 0.0
  %86 = vmatprep.subr.mxu0 0.0
  %87 = vmatpush1.msra.mxu0 0.0
  %88 = vmatprep.subr.mxu0 0.0
  %89 = vmatpush1.msra.mxu0 0.0
  %90 = vmatprep.subr.mxu0 0.0
  %91 = vmatpush1.msra.mxu0 0.0
  %92 = vmatprep.subr.mxu0 0.0
  %93 = vmatpush1.msra.mxu0 0.0
  %94 = vmatprep.subr.mxu0 0.0
  %95 = vmatpush1.msra.mxu0 0.0
  %96 = vmatprep.subr.mxu0 0.0
  %97 = vmatpush1.msra.mxu0 0.0
  %98 = vmatprep.subr.mxu0 0.0
  %99 = vmatpush1.msra.mxu0 0.0
  %100 = vmatprep.subr.mxu0 0.0
  %101 = vmatpush1.msra.mxu0 0.0
  %102 = vmatprep.subr.mxu0 0.0
  %103 = vmatpush1.msra.mxu0 %v70
  %104 = vmatprep.subr.mxu0 0.0
  %105 = vmatpush2.msra.mxu0 0.0
  %106 = vmatprep.subr.mxu0 0.0
  %107 = vmatpush2.msra.mxu0 0.0
  %108 = vmatprep.subr.mxu0 0.0
  %109 = vmatpush2.msra.mxu0 0.0
  %110 = vmatprep.subr.mxu0 0.0
  %111 = vmatpush2.msra.mxu0 0.0
  %112 = vmatprep.subr.mxu0 0.0
  %113 = vmatpush2.msra.mxu0 0.0
  %114 = vmatprep.subr.mxu0 0.0
  %115 = vmatpush2.msra.mxu0 0.0
  %116 = vmatprep.subr.mxu0 0.0
  %117 = vmatpush2.msra.mxu0 0.0
  %118 = vmatprep.subr.mxu0 0.0
  %119 = vmatpush2.msra.mxu0 0.0
  %120 = vmatprep.subr.mxu0 0.0
  %121 = vmatpush2.msra.mxu0 0.0
  %122 = vmatprep.subr.mxu0 0.0
  %123 = vmatpush2.msra.mxu0 0.0
  %124 = vmatprep.subr.mxu0 0.0
  %125 = vmatpush2.msra.mxu0 0.0
  %126 = vmatprep.subr.mxu0 0.0
  %127 = vmatpush2.msra.mxu0 0.0
  %128 = vmatprep.subr.mxu0 0.0
  %129 = vmatpush2.msra.mxu0 0.0
  %130 = vmatprep.subr.mxu0 0.0
  %131 = vmatpush2.msra.mxu0 0.0
  %132 = vmatprep.subr.mxu0 0.0
  %133 = vmatpush2.msra.mxu0 0.0
  %134 = vmatprep.subr.mxu0 0.0
  %135 = vmatpush2.msra.mxu0 0.0
  %136 = vmatprep.mubr.f32.mxu0 0.0
  %137 = vmatmul.mubr.f32.gmra.mxu0 %v63
  %v138 = vpop.f32.mrf.mxu0
  %v139 = vadd.f32 %v60, %v138
  %v140 = vpop.f32.mrf.mxu0
  %141 = vmatprep.mubr.f32.mxu0 0.0
  %142 = vmatmul.mubr.f32.gmra.mxu0 %v66
  %v143 = vpop.f32.mrf.mxu0
  %v144 = vadd.f32 %v60, %v143
  %v145 = vpop.f32.mrf.mxu0
  %146 = vdwg.mxu0
  %v147 = vxor.u32 %v139, 2147483648
  %v148 = vxor.u32 %v144, 2147483648
  %v149 = vmul.f32 %v147, 1.442695
  %v150 = vpow.pop %v149
  %v151 = vmul.f32 %v148, 1.442695
  %v152 = vpow.pop %v151
  %v153 = vadd.f32 %v150, 1.0
  %v154 = vadd.f32 %v152, 1.0
  %v155 = vrcp.pop %v153
  %v156 = vmul.f32 1.0, %v155
  %v157 = vrcp.pop %v154
  %v158 = vmul.f32 1.0, %v157
  %v159 = vtanh.pop %v139
  %v160 = vtanh.pop %v144
  %163 = vrot.lane.b32.xlu0 %v159, 32
  %v164 = vpop.permute.xlu0 %163
  %165 = vrot.lane.b32.xlu0 %v160, 32
  %v166 = vpop.permute.xlu0 %165
  %v169 = vmul.f32 %v156, %v164
  %v170 = vmul.f32 %v158, %v166
  %v171 = vtanh.pop %v169
  %v172 = vtanh.pop %v170
  %175 = vrot.lane.b32.xlu0 %v171, 64
  %v176 = vpop.permute.xlu0 %175
  %177 = vrot.lane.b32.xlu0 %v172, 64
  %v178 = vpop.permute.xlu0 %177
  %v181 = vmul.f32 %v156, %v176
  %v182 = vmul.f32 %v158, %v178
  %185 = vrot.lane.b32.xlu0 %v181, 64
  %v186 = vpop.permute.xlu0 %185
  %187 = vrot.lane.b32.xlu0 %v182, 64
  %v188 = vpop.permute.xlu0 %187
  %vm191 = vcmask 253952
  %192 = vst.msk [vmem:[#allocation2] sm:$0x1] %vm191, %v186
  %193 = vst.msk [vmem:[#allocation2 + $0x8] sm:$0x1] %vm191, %v188
  %v194 = vrot.slane %v182, 7
  %vm195 = vcmask 1041409
  %v196 = vsel %vm195, %v194, %v181
  %197 = vrot.lane.b32.xlu0 %v196, 64
  %v198 = vpop.permute.xlu0 %197
  %vm199 = vcmask 261120
  %v200 = vsel %vm199, %v198, 0
  %202 = vmatprep.subr.mxu0 0.0
  %203 = vmatpush1.msra.mxu0 0.0
  %204 = vmatprep.subr.mxu0 0.0
  %205 = vmatpush1.msra.mxu0 0.0
  %206 = vmatprep.subr.mxu0 0.0
  %207 = vmatpush1.msra.mxu0 0.0
  %208 = vmatprep.subr.mxu0 0.0
  %209 = vmatpush1.msra.mxu0 0.0
  %210 = vmatprep.subr.mxu0 0.0
  %211 = vmatpush1.msra.mxu0 0.0
  %212 = vmatprep.subr.mxu0 0.0
  %213 = vmatpush1.msra.mxu0 0.0
  %214 = vmatprep.subr.mxu0 0.0
  %215 = vmatpush1.msra.mxu0 0.0
  %216 = vmatprep.subr.mxu0 0.0
  %217 = vmatpush1.msra.mxu0 0.0
  %218 = vmatprep.subr.mxu0 0.0
  %219 = vmatpush1.msra.mxu0 0.0
  %220 = vmatprep.subr.mxu0 0.0
  %221 = vmatpush1.msra.mxu0 0.0
  %222 = vmatprep.subr.mxu0 0.0
  %223 = vmatpush1.msra.mxu0 0.0
  %224 = vmatprep.subr.mxu0 0.0
  %225 = vmatpush1.msra.mxu0 0.0
  %226 = vmatprep.subr.mxu0 0.0
  %227 = vmatpush1.msra.mxu0 %v28
  %228 = vmatprep.subr.mxu0 0.0
  %229 = vmatpush1.msra.mxu0 %v27
  %230 = vmatprep.subr.mxu0 0.0
  %231 = vmatpush1.msra.mxu0 %v26
  %232 = vmatprep.subr.mxu0 0.0
  %233 = vmatpush1.msra.mxu0 %v25
  %234 = vmatprep.subr.mxu0 0.0
  %235 = vmatpush2.msra.mxu0 0.0
  %236 = vmatprep.subr.mxu0 0.0
  %237 = vmatpush2.msra.mxu0 0.0
  %238 = vmatprep.subr.mxu0 0.0
  %239 = vmatpush2.msra.mxu0 0.0
  %240 = vmatprep.subr.mxu0 0.0
  %241 = vmatpush2.msra.mxu0 0.0
  %242 = vmatprep.subr.mxu0 0.0
  %243 = vmatpush2.msra.mxu0 0.0
  %244 = vmatprep.subr.mxu0 0.0
  %245 = vmatpush2.msra.mxu0 0.0
  %246 = vmatprep.subr.mxu0 0.0
  %247 = vmatpush2.msra.mxu0 0.0
  %248 = vmatprep.subr.mxu0 0.0
  %249 = vmatpush2.msra.mxu0 0.0
  %250 = vmatprep.subr.mxu0 0.0
  %251 = vmatpush2.msra.mxu0 0.0
  %252 = vmatprep.subr.mxu0 0.0
  %253 = vmatpush2.msra.mxu0 0.0
  %254 = vmatprep.subr.mxu0 0.0
  %255 = vmatpush2.msra.mxu0 0.0
  %256 = vmatprep.subr.mxu0 0.0
  %257 = vmatpush2.msra.mxu0 0.0
  %258 = vmatprep.subr.mxu0 0.0
  %259 = vmatpush2.msra.mxu0 0.0
  %260 = vmatprep.subr.mxu0 0.0
  %261 = vmatpush2.msra.mxu0 0.0
  %262 = vmatprep.subr.mxu0 0.0
  %263 = vmatpush2.msra.mxu0 0.0
  %264 = vmatprep.subr.mxu0 0.0
  %265 = vmatpush2.msra.mxu0 0.0
  %266 = vmatprep.mubr.f32.mxu0 0.0
  %267 = vmatmul.mubr.f32.gmra.mxu0 %v200
  %v268 = vpop.f32.mrf.mxu0
  %v269 = vadd.f32 0.0, %v268
  %v270 = vpop.f32.mrf.mxu0
  %271 = vdwg.mxu0
  %v273 = vrot.slane %v269, 7
  %v276 = vadd.f32 %v139, %v273
  %v277 = vadd.f32 %v144, %v269
  %v278 = vxor.u32 %v276, 2147483648
  %v279 = vxor.u32 %v277, 2147483648
  %v280 = vmul.f32 %v278, 1.442695
  %v281 = vpow.pop %v280
  %v282 = vmul.f32 %v279, 1.442695
  %v283 = vpow.pop %v282
  %v284 = vadd.f32 %v281, 1.0
  %v285 = vadd.f32 %v283, 1.0
  %v286 = vrcp.pop %v284
  %v287 = vmul.f32 1.0, %v286
  %v288 = vrcp.pop %v285
  %v289 = vmul.f32 1.0, %v288
  %v290 = vtanh.pop %v276
  %v291 = vtanh.pop %v277
  %v294 = vrot.slane %v169, 7
  %v295 = vrot.slane %v170, 7
  %296 = vrot.lane.b32.xlu0 %v294, 32
  %v297 = vpop.permute.xlu0 %296
  %298 = vrot.lane.b32.xlu0 %v295, 32
  %v299 = vpop.permute.xlu0 %298
  %v302 = vmul.f32 %v287, %v297
  %v303 = vmul.f32 %v289, %v299
  %306 = vrot.lane.b32.xlu0 %v290, 32
  %v307 = vpop.permute.xlu0 %306
  %308 = vrot.lane.b32.xlu0 %v291, 32
  %v309 = vpop.permute.xlu0 %308
  %v312 = vmul.f32 %v287, %v307
  %v313 = vmul.f32 %v289, %v309
  %316 = vrot.lane.b32.xlu0 %v312, 32
  %v317 = vpop.permute.xlu0 %316
  %318 = vrot.lane.b32.xlu0 %v313, 32
  %v319 = vpop.permute.xlu0 %318
  %v322 = vadd.f32 %v302, %v317
  %v323 = vadd.f32 %v303, %v319
  %v324 = vtanh.pop %v322
  %v325 = vtanh.pop %v323
  %328 = vrot.lane.b32.xlu0 %v324, 32
  %v329 = vpop.permute.xlu0 %328
  %330 = vrot.lane.b32.xlu0 %v325, 32
  %v331 = vpop.permute.xlu0 %330
  %v334 = vmul.f32 %v287, %v329
  %v335 = vmul.f32 %v289, %v331
  %338 = vrot.lane.b32.xlu0 %v334, 64
  %v339 = vpop.permute.xlu0 %338
  %340 = vrot.lane.b32.xlu0 %v335, 64
  %v341 = vpop.permute.xlu0 %340
  %vm344 = vcmask 254977
  %345 = vst.msk [vmem:[#allocation2] sm:$0x2] %vm344, %v339
  %346 = vst.msk [vmem:[#allocation2 + $0x8] sm:$0x2] %vm344, %v341
  %v347 = vrot.slane %v334, 1
  %v348 = vsel %vm195, %v335, %v347
  %349 = vrot.lane.b32.xlu0 %v348, 64
  %v350 = vpop.permute.xlu0 %349
  %v351 = vsel %vm199, %v350, 0
  %353 = vmatprep.subr.mxu0 0.0
  %354 = vmatpush1.msra.mxu0 0.0
  %355 = vmatprep.subr.mxu0 0.0
  %356 = vmatpush1.msra.mxu0 0.0
  %357 = vmatprep.subr.mxu0 0.0
  %358 = vmatpush1.msra.mxu0 0.0
  %359 = vmatprep.subr.mxu0 0.0
  %360 = vmatpush1.msra.mxu0 0.0
  %361 = vmatprep.subr.mxu0 0.0
  %362 = vmatpush1.msra.mxu0 0.0
  %363 = vmatprep.subr.mxu0 0.0
  %364 = vmatpush1.msra.mxu0 0.0
  %365 = vmatprep.subr.mxu0 0.0
  %366 = vmatpush1.msra.mxu0 0.0
  %367 = vmatprep.subr.mxu0 0.0
  %368 = vmatpush1.msra.mxu0 0.0
  %369 = vmatprep.subr.mxu0 0.0
  %370 = vmatpush1.msra.mxu0 0.0
  %371 = vmatprep.subr.mxu0 0.0
  %372 = vmatpush1.msra.mxu0 0.0
  %373 = vmatprep.subr.mxu0 0.0
  %374 = vmatpush1.msra.mxu0 0.0
  %375 = vmatprep.subr.mxu0 0.0
  %376 = vmatpush1.msra.mxu0 0.0
  %377 = vmatprep.subr.mxu0 0.0
  %378 = vmatpush1.msra.mxu0 %v28
  %379 = vmatprep.subr.mxu0 0.0
  %380 = vmatpush1.msra.mxu0 %v27
  %381 = vmatprep.subr.mxu0 0.0
  %382 = vmatpush1.msra.mxu0 %v26
  %383 = vmatprep.subr.mxu0 0.0
  %384 = vmatpush1.msra.mxu0 %v25
  %385 = vmatprep.subr.mxu0 0.0
  %386 = vmatpush2.msra.mxu0 0.0
  %387 = vmatprep.subr.mxu0 0.0
  %388 = vmatpush2.msra.mxu0 0.0
  %389 = vmatprep.subr.mxu0 0.0
  %390 = vmatpush2.msra.mxu0 0.0
  %391 = vmatprep.subr.mxu0 0.0
  %392 = vmatpush2.msra.mxu0 0.0
  %393 = vmatprep.subr.mxu0 0.0
  %394 = vmatpush2.msra.mxu0 0.0
  %395 = vmatprep.subr.mxu0 0.0
  %396 = vmatpush2.msra.mxu0 0.0
  %397 = vmatprep.subr.mxu0 0.0
  %398 = vmatpush2.msra.mxu0 0.0
  %399 = vmatprep.subr.mxu0 0.0
  %400 = vmatpush2.msra.mxu0 0.0
  %401 = vmatprep.subr.mxu0 0.0
  %402 = vmatpush2.msra.mxu0 0.0
  %403 = vmatprep.subr.mxu0 0.0
  %404 = vmatpush2.msra.mxu0 0.0
  %405 = vmatprep.subr.mxu0 0.0
  %406 = vmatpush2.msra.mxu0 0.0
  %407 = vmatprep.subr.mxu0 0.0
  %408 = vmatpush2.msra.mxu0 0.0
  %409 = vmatprep.subr.mxu0 0.0
  %410 = vmatpush2.msra.mxu0 0.0
  %411 = vmatprep.subr.mxu0 0.0
  %412 = vmatpush2.msra.mxu0 0.0
  %413 = vmatprep.subr.mxu0 0.0
  %414 = vmatpush2.msra.mxu0 0.0
  %415 = vmatprep.subr.mxu0 0.0
  %416 = vmatpush2.msra.mxu0 0.0
  %417 = vmatprep.mubr.f32.mxu0 0.0
  %418 = vmatmul.mubr.f32.gmra.mxu0 %v351
  %v419 = vpop.f32.mrf.mxu0
  %v420 = vadd.f32 0.0, %v419
  %v421 = vpop.f32.mrf.mxu0
  %422 = vdwg.mxu0
  %v424 = vrot.slane %v420, 6
  %v425 = vrot.slane %v420, 7
  %v428 = vadd.f32 %v139, %v424
  %v429 = vadd.f32 %v144, %v425
  %v430 = vxor.u32 %v428, 2147483648
  %v431 = vxor.u32 %v429, 2147483648
  %v432 = vmul.f32 %v430, 1.442695
  %v433 = vpow.pop %v432
  %v434 = vmul.f32 %v431, 1.442695
  %v435 = vpow.pop %v434
  %v436 = vadd.f32 %v433, 1.0
  %v437 = vadd.f32 %v435, 1.0
  %v438 = vrcp.pop %v436
  %v439 = vmul.f32 1.0, %v438
  %v440 = vrcp.pop %v437
  %v441 = vmul.f32 1.0, %v440
  %v442 = vtanh.pop %v428
  %v443 = vtanh.pop %v429
  %v446 = vrot.slane %v322, 7
  %v447 = vrot.slane %v323, 7
  %v450 = vmul.f32 %v439, %v446
  %v451 = vmul.f32 %v441, %v447
  %454 = vrot.lane.b32.xlu0 %v442, 32
  %v455 = vpop.permute.xlu0 %454
  %456 = vrot.lane.b32.xlu0 %v443, 32
  %v457 = vpop.permute.xlu0 %456
  %v460 = vmul.f32 %v439, %v455
  %v461 = vmul.f32 %v441, %v457
  %464 = vrot.lane.b32.xlu0 %v460, 32
  %v465 = vpop.permute.xlu0 %464
  %466 = vrot.lane.b32.xlu0 %v461, 32
  %v467 = vpop.permute.xlu0 %466
  %v470 = vadd.f32 %v450, %v465
  %v471 = vadd.f32 %v451, %v467
  %v472 = vtanh.pop %v470
  %v473 = vtanh.pop %v471
  %476 = vrot.lane.b32.xlu0 %v472, 32
  %v477 = vpop.permute.xlu0 %476
  %478 = vrot.lane.b32.xlu0 %v473, 32
  %v479 = vpop.permute.xlu0 %478
  %v482 = vmul.f32 %v439, %v477
  %v483 = vmul.f32 %v441, %v479
  %486 = vrot.lane.b32.xlu0 %v482, 64
  %v487 = vpop.permute.xlu0 %486
  %488 = vrot.lane.b32.xlu0 %v483, 64
  %v489 = vpop.permute.xlu0 %488
  %vm492 = vcmask 256002
  %493 = vst.msk [vmem:[#allocation2] sm:$0x4] %vm492, %v487
  %494 = vst.msk [vmem:[#allocation2 + $0x8] sm:$0x4] %vm492, %v489
  %v495 = vrot.slane %v482, 2
  %v496 = vrot.slane %v483, 1
  %v497 = vsel %vm195, %v496, %v495
  %498 = vrot.lane.b32.xlu0 %v497, 64
  %v499 = vpop.permute.xlu0 %498
  %v500 = vsel %vm199, %v499, 0
  %502 = vmatprep.subr.mxu0 0.0
  %503 = vmatpush1.msra.mxu0 0.0
  %504 = vmatprep.subr.mxu0 0.0
  %505 = vmatpush1.msra.mxu0 0.0
  %506 = vmatprep.subr.mxu0 0.0
  %507 = vmatpush1.msra.mxu0 0.0
  %508 = vmatprep.subr.mxu0 0.0
  %509 = vmatpush1.msra.mxu0 0.0
  %510 = vmatprep.subr.mxu0 0.0
  %511 = vmatpush1.msra.mxu0 0.0
  %512 = vmatprep.subr.mxu0 0.0
  %513 = vmatpush1.msra.mxu0 0.0
  %514 = vmatprep.subr.mxu0 0.0
  %515 = vmatpush1.msra.mxu0 0.0
  %516 = vmatprep.subr.mxu0 0.0
  %517 = vmatpush1.msra.mxu0 0.0
  %518 = vmatprep.subr.mxu0 0.0
  %519 = vmatpush1.msra.mxu0 0.0
  %520 = vmatprep.subr.mxu0 0.0
  %521 = vmatpush1.msra.mxu0 0.0
  %522 = vmatprep.subr.mxu0 0.0
  %523 = vmatpush1.msra.mxu0 0.0
  %524 = vmatprep.subr.mxu0 0.0
  %525 = vmatpush1.msra.mxu0 0.0
  %526 = vmatprep.subr.mxu0 0.0
  %527 = vmatpush1.msra.mxu0 %v28
  %528 = vmatprep.subr.mxu0 0.0
  %529 = vmatpush1.msra.mxu0 %v27
  %530 = vmatprep.subr.mxu0 0.0
  %531 = vmatpush1.msra.mxu0 %v26
  %532 = vmatprep.subr.mxu0 0.0
  %533 = vmatpush1.msra.mxu0 %v25
  %534 = vmatprep.subr.mxu0 0.0
  %535 = vmatpush2.msra.mxu0 0.0
  %536 = vmatprep.subr.mxu0 0.0
  %537 = vmatpush2.msra.mxu0 0.0
  %538 = vmatprep.subr.mxu0 0.0
  %539 = vmatpush2.msra.mxu0 0.0
  %540 = vmatprep.subr.mxu0 0.0
  %541 = vmatpush2.msra.mxu0 0.0
  %542 = vmatprep.subr.mxu0 0.0
  %543 = vmatpush2.msra.mxu0 0.0
  %544 = vmatprep.subr.mxu0 0.0
  %545 = vmatpush2.msra.mxu0 0.0
  %546 = vmatprep.subr.mxu0 0.0
  %547 = vmatpush2.msra.mxu0 0.0
  %548 = vmatprep.subr.mxu0 0.0
  %549 = vmatpush2.msra.mxu0 0.0
  %550 = vmatprep.subr.mxu0 0.0
  %551 = vmatpush2.msra.mxu0 0.0
  %552 = vmatprep.subr.mxu0 0.0
  %553 = vmatpush2.msra.mxu0 0.0
  %554 = vmatprep.subr.mxu0 0.0
  %555 = vmatpush2.msra.mxu0 0.0
  %556 = vmatprep.subr.mxu0 0.0
  %557 = vmatpush2.msra.mxu0 0.0
  %558 = vmatprep.subr.mxu0 0.0
  %559 = vmatpush2.msra.mxu0 0.0
  %560 = vmatprep.subr.mxu0 0.0
  %561 = vmatpush2.msra.mxu0 0.0
  %562 = vmatprep.subr.mxu0 0.0
  %563 = vmatpush2.msra.mxu0 0.0
  %564 = vmatprep.subr.mxu0 0.0
  %565 = vmatpush2.msra.mxu0 0.0
  %566 = vmatprep.mubr.f32.mxu0 0.0
  %567 = vmatmul.mubr.f32.gmra.mxu0 %v500
  %v568 = vpop.f32.mrf.mxu0
  %v569 = vadd.f32 0.0, %v568
  %v570 = vpop.f32.mrf.mxu0
  %571 = vdwg.mxu0
  %v573 = vrot.slane %v569, 5
  %v574 = vrot.slane %v569, 6
  %v577 = vadd.f32 %v139, %v573
  %v578 = vadd.f32 %v144, %v574
  %v579 = vxor.u32 %v577, 2147483648
  %v580 = vxor.u32 %v578, 2147483648
  %v581 = vmul.f32 %v579, 1.442695
  %v582 = vpow.pop %v581
  %v583 = vmul.f32 %v580, 1.442695
  %v584 = vpow.pop %v583
  %v585 = vadd.f32 %v582, 1.0
  %v586 = vadd.f32 %v584, 1.0
  %v587 = vrcp.pop %v585
  %v588 = vmul.f32 1.0, %v587
  %v589 = vrcp.pop %v586
  %v590 = vmul.f32 1.0, %v589
  %v591 = vtanh.pop %v577
  %v592 = vtanh.pop %v578
  %v595 = vrot.slane %v470, 7
  %v596 = vrot.slane %v471, 7
  %v599 = vmul.f32 %v588, %v595
  %v600 = vmul.f32 %v590, %v596
  %603 = vrot.lane.b32.xlu0 %v591, 32
  %v604 = vpop.permute.xlu0 %603
  %605 = vrot.lane.b32.xlu0 %v592, 32
  %v606 = vpop.permute.xlu0 %605
  %v609 = vmul.f32 %v588, %v604
  %v610 = vmul.f32 %v590, %v606
  %613 = vrot.lane.b32.xlu0 %v609, 32
  %v614 = vpop.permute.xlu0 %613
  %615 = vrot.lane.b32.xlu0 %v610, 32
  %v616 = vpop.permute.xlu0 %615
  %v619 = vadd.f32 %v599, %v614
  %v620 = vadd.f32 %v600, %v616
  %v621 = vtanh.pop %v619
  %v622 = vtanh.pop %v620
  %625 = vrot.lane.b32.xlu0 %v621, 32
  %v626 = vpop.permute.xlu0 %625
  %627 = vrot.lane.b32.xlu0 %v622, 32
  %v628 = vpop.permute.xlu0 %627
  %v631 = vmul.f32 %v588, %v626
  %v632 = vmul.f32 %v590, %v628
  %635 = vrot.lane.b32.xlu0 %v631, 64
  %v636 = vpop.permute.xlu0 %635
  %637 = vrot.lane.b32.xlu0 %v632, 64
  %v638 = vpop.permute.xlu0 %637
  %vm641 = vcmask 257027
  %642 = vst.msk [vmem:[#allocation2] sm:$0x8] %vm641, %v636
  %643 = vst.msk [vmem:[#allocation2 + $0x8] sm:$0x8] %vm641, %v638
  %v644 = vrot.slane %v631, 3
  %v645 = vrot.slane %v632, 2
  %v646 = vsel %vm195, %v645, %v644
  %647 = vrot.lane.b32.xlu0 %v646, 64
  %v648 = vpop.permute.xlu0 %647
  %v649 = vsel %vm199, %v648, 0
  %651 = vmatprep.subr.mxu0 0.0
  %652 = vmatpush1.msra.mxu0 0.0
  %653 = vmatprep.subr.mxu0 0.0
  %654 = vmatpush1.msra.mxu0 0.0
  %655 = vmatprep.subr.mxu0 0.0
  %656 = vmatpush1.msra.mxu0 0.0
  %657 = vmatprep.subr.mxu0 0.0
  %658 = vmatpush1.msra.mxu0 0.0
  %659 = vmatprep.subr.mxu0 0.0
  %660 = vmatpush1.msra.mxu0 0.0
  %661 = vmatprep.subr.mxu0 0.0
  %662 = vmatpush1.msra.mxu0 0.0
  %663 = vmatprep.subr.mxu0 0.0
  %664 = vmatpush1.msra.mxu0 0.0
  %665 = vmatprep.subr.mxu0 0.0
  %666 = vmatpush1.msra.mxu0 0.0
  %667 = vmatprep.subr.mxu0 0.0
  %668 = vmatpush1.msra.mxu0 0.0
  %669 = vmatprep.subr.mxu0 0.0
  %670 = vmatpush1.msra.mxu0 0.0
  %671 = vmatprep.subr.mxu0 0.0
  %672 = vmatpush1.msra.mxu0 0.0
  %673 = vmatprep.subr.mxu0 0.0
  %674 = vmatpush1.msra.mxu0 0.0
  %675 = vmatprep.subr.mxu0 0.0
  %676 = vmatpush1.msra.mxu0 %v28
  %677 = vmatprep.subr.mxu0 0.0
  %678 = vmatpush1.msra.mxu0 %v27
  %679 = vmatprep.subr.mxu0 0.0
  %680 = vmatpush1.msra.mxu0 %v26
  %681 = vmatprep.subr.mxu0 0.0
  %682 = vmatpush1.msra.mxu0 %v25
  %683 = vmatprep.subr.mxu0 0.0
  %684 = vmatpush2.msra.mxu0 0.0
  %685 = vmatprep.subr.mxu0 0.0
  %686 = vmatpush2.msra.mxu0 0.0
  %687 = vmatprep.subr.mxu0 0.0
  %688 = vmatpush2.msra.mxu0 0.0
  %689 = vmatprep.subr.mxu0 0.0
  %690 = vmatpush2.msra.mxu0 0.0
  %691 = vmatprep.subr.mxu0 0.0
  %692 = vmatpush2.msra.mxu0 0.0
  %693 = vmatprep.subr.mxu0 0.0
  %694 = vmatpush2.msra.mxu0 0.0
  %695 = vmatprep.subr.mxu0 0.0
  %696 = vmatpush2.msra.mxu0 0.0
  %697 = vmatprep.subr.mxu0 0.0
  %698 = vmatpush2.msra.mxu0 0.0
  %699 = vmatprep.subr.mxu0 0.0
  %700 = vmatpush2.msra.mxu0 0.0
  %701 = vmatprep.subr.mxu0 0.0
  %702 = vmatpush2.msra.mxu0 0.0
  %703 = vmatprep.subr.mxu0 0.0
  %704 = vmatpush2.msra.mxu0 0.0
  %705 = vmatprep.subr.mxu0 0.0
  %706 = vmatpush2.msra.mxu0 0.0
  %707 = vmatprep.subr.mxu0 0.0
  %708 = vmatpush2.msra.mxu0 0.0
  %709 = vmatprep.subr.mxu0 0.0
  %710 = vmatpush2.msra.mxu0 0.0
  %711 = vmatprep.subr.mxu0 0.0
  %712 = vmatpush2.msra.mxu0 0.0
  %713 = vmatprep.subr.mxu0 0.0
  %714 = vmatpush2.msra.mxu0 0.0
  %715 = vmatprep.mubr.f32.mxu0 0.0
  %716 = vmatmul.mubr.f32.gmra.mxu0 %v649
  %v717 = vpop.f32.mrf.mxu0
  %v718 = vadd.f32 0.0, %v717
  %v719 = vpop.f32.mrf.mxu0
  %720 = vdwg.mxu0
  %v722 = vrot.slane %v718, 4
  %v723 = vrot.slane %v718, 5
  %v726 = vadd.f32 %v139, %v722
  %v727 = vadd.f32 %v144, %v723
  %v728 = vxor.u32 %v726, 2147483648
  %v729 = vxor.u32 %v727, 2147483648
  %v730 = vmul.f32 %v728, 1.442695
  %v731 = vpow.pop %v730
  %v732 = vmul.f32 %v729, 1.442695
  %v733 = vpow.pop %v732
  %v734 = vadd.f32 %v731, 1.0
  %v735 = vadd.f32 %v733, 1.0
  %v736 = vrcp.pop %v734
  %v737 = vmul.f32 1.0, %v736
  %v738 = vrcp.pop %v735
  %v739 = vmul.f32 1.0, %v738
  %v740 = vtanh.pop %v726
  %v741 = vtanh.pop %v727
  %v744 = vrot.slane %v619, 7
  %v745 = vrot.slane %v620, 7
  %v748 = vmul.f32 %v737, %v744
  %v749 = vmul.f32 %v739, %v745
  %752 = vrot.lane.b32.xlu0 %v740, 32
  %v753 = vpop.permute.xlu0 %752
  %754 = vrot.lane.b32.xlu0 %v741, 32
  %v755 = vpop.permute.xlu0 %754
  %v758 = vmul.f32 %v737, %v753
  %v759 = vmul.f32 %v739, %v755
  %762 = vrot.lane.b32.xlu0 %v758, 32
  %v763 = vpop.permute.xlu0 %762
  %764 = vrot.lane.b32.xlu0 %v759, 32
  %v765 = vpop.permute.xlu0 %764
  %v768 = vadd.f32 %v748, %v763
  %v769 = vadd.f32 %v749, %v765
  %v770 = vtanh.pop %v768
  %v771 = vtanh.pop %v769
  %774 = vrot.lane.b32.xlu0 %v770, 32
  %v775 = vpop.permute.xlu0 %774
  %776 = vrot.lane.b32.xlu0 %v771, 32
  %v777 = vpop.permute.xlu0 %776
  %v780 = vmul.f32 %v737, %v775
  %v781 = vmul.f32 %v739, %v777
  %784 = vrot.lane.b32.xlu0 %v780, 64
  %v785 = vpop.permute.xlu0 %784
  %786 = vrot.lane.b32.xlu0 %v781, 64
  %v787 = vpop.permute.xlu0 %786
  %vm790 = vcmask 258052
  %791 = vst.msk [vmem:[#allocation2] sm:$0x10] %vm790, %v785
  %792 = vst.msk [vmem:[#allocation2 + $0x8] sm:$0x10] %vm790, %v787
  %v793 = vrot.slane %v780, 4
  %v794 = vrot.slane %v781, 3
  %v795 = vsel %vm195, %v794, %v793
  %796 = vrot.lane.b32.xlu0 %v795, 64
  %v797 = vpop.permute.xlu0 %796
  %v798 = vsel %vm199, %v797, 0
  %800 = vmatprep.subr.mxu0 0.0
  %801 = vmatpush1.msra.mxu0 0.0
  %802 = vmatprep.subr.mxu0 0.0
  %803 = vmatpush1.msra.mxu0 0.0
  %804 = vmatprep.subr.mxu0 0.0
  %805 = vmatpush1.msra.mxu0 0.0
  %806 = vmatprep.subr.mxu0 0.0
  %807 = vmatpush1.msra.mxu0 0.0
  %808 = vmatprep.subr.mxu0 0.0
  %809 = vmatpush1.msra.mxu0 0.0
  %810 = vmatprep.subr.mxu0 0.0
  %811 = vmatpush1.msra.mxu0 0.0
  %812 = vmatprep.subr.mxu0 0.0
  %813 = vmatpush1.msra.mxu0 0.0
  %814 = vmatprep.subr.mxu0 0.0
  %815 = vmatpush1.msra.mxu0 0.0
  %816 = vmatprep.subr.mxu0 0.0
  %817 = vmatpush1.msra.mxu0 0.0
  %818 = vmatprep.subr.mxu0 0.0
  %819 = vmatpush1.msra.mxu0 0.0
  %820 = vmatprep.subr.mxu0 0.0
  %821 = vmatpush1.msra.mxu0 0.0
  %822 = vmatprep.subr.mxu0 0.0
  %823 = vmatpush1.msra.mxu0 0.0
  %824 = vmatprep.subr.mxu0 0.0
  %825 = vmatpush1.msra.mxu0 %v28
  %826 = vmatprep.subr.mxu0 0.0
  %827 = vmatpush1.msra.mxu0 %v27
  %828 = vmatprep.subr.mxu0 0.0
  %829 = vmatpush1.msra.mxu0 %v26
  %830 = vmatprep.subr.mxu0 0.0
  %831 = vmatpush1.msra.mxu0 %v25
  %832 = vmatprep.subr.mxu0 0.0
  %833 = vmatpush2.msra.mxu0 0.0
  %834 = vmatprep.subr.mxu0 0.0
  %835 = vmatpush2.msra.mxu0 0.0
  %836 = vmatprep.subr.mxu0 0.0
  %837 = vmatpush2.msra.mxu0 0.0
  %838 = vmatprep.subr.mxu0 0.0
  %839 = vmatpush2.msra.mxu0 0.0
  %840 = vmatprep.subr.mxu0 0.0
  %841 = vmatpush2.msra.mxu0 0.0
  %842 = vmatprep.subr.mxu0 0.0
  %843 = vmatpush2.msra.mxu0 0.0
  %844 = vmatprep.subr.mxu0 0.0
  %845 = vmatpush2.msra.mxu0 0.0
  %846 = vmatprep.subr.mxu0 0.0
  %847 = vmatpush2.msra.mxu0 0.0
  %848 = vmatprep.subr.mxu0 0.0
  %849 = vmatpush2.msra.mxu0 0.0
  %850 = vmatprep.subr.mxu0 0.0
  %851 = vmatpush2.msra.mxu0 0.0
  %852 = vmatprep.subr.mxu0 0.0
  %853 = vmatpush2.msra.mxu0 0.0
  %854 = vmatprep.subr.mxu0 0.0
  %855 = vmatpush2.msra.mxu0 0.0
  %856 = vmatprep.subr.mxu0 0.0
  %857 = vmatpush2.msra.mxu0 0.0
  %858 = vmatprep.subr.mxu0 0.0
  %859 = vmatpush2.msra.mxu0 0.0
  %860 = vmatprep.subr.mxu0 0.0
  %861 = vmatpush2.msra.mxu0 0.0
  %862 = vmatprep.subr.mxu0 0.0
  %863 = vmatpush2.msra.mxu0 0.0
  %864 = vmatprep.mubr.f32.mxu0 0.0
  %865 = vmatmul.mubr.f32.gmra.mxu0 %v798
  %v866 = vpop.f32.mrf.mxu0
  %v867 = vadd.f32 0.0, %v866
  %v868 = vpop.f32.mrf.mxu0
  %869 = vdwg.mxu0
  %v871 = vrot.slane %v867, 3
  %v872 = vrot.slane %v867, 4
  %v875 = vadd.f32 %v139, %v871
  %v876 = vadd.f32 %v144, %v872
  %v877 = vxor.u32 %v875, 2147483648
  %v878 = vxor.u32 %v876, 2147483648
  %v879 = vmul.f32 %v877, 1.442695
  %v880 = vpow.pop %v879
  %v881 = vmul.f32 %v878, 1.442695
  %v882 = vpow.pop %v881
  %v883 = vadd.f32 %v880, 1.0
  %v884 = vadd.f32 %v882, 1.0
  %v885 = vrcp.pop %v883
  %v886 = vmul.f32 1.0, %v885
  %v887 = vrcp.pop %v884
  %v888 = vmul.f32 1.0, %v887
  %v889 = vtanh.pop %v875
  %v890 = vtanh.pop %v876
  %v893 = vrot.slane %v768, 7
  %v894 = vrot.slane %v769, 7
  %v897 = vmul.f32 %v886, %v893
  %v898 = vmul.f32 %v888, %v894
  %901 = vrot.lane.b32.xlu0 %v889, 32
  %v902 = vpop.permute.xlu0 %901
  %903 = vrot.lane.b32.xlu0 %v890, 32
  %v904 = vpop.permute.xlu0 %903
  %v907 = vmul.f32 %v886, %v902
  %v908 = vmul.f32 %v888, %v904
  %911 = vrot.lane.b32.xlu0 %v907, 32
  %v912 = vpop.permute.xlu0 %911
  %913 = vrot.lane.b32.xlu0 %v908, 32
  %v914 = vpop.permute.xlu0 %913
  %v917 = vadd.f32 %v897, %v912
  %v918 = vadd.f32 %v898, %v914
  %v919 = vtanh.pop %v917
  %v920 = vtanh.pop %v918
  %923 = vrot.lane.b32.xlu0 %v919, 32
  %v924 = vpop.permute.xlu0 %923
  %925 = vrot.lane.b32.xlu0 %v920, 32
  %v926 = vpop.permute.xlu0 %925
  %v929 = vmul.f32 %v886, %v924
  %v930 = vmul.f32 %v888, %v926
  %933 = vrot.lane.b32.xlu0 %v929, 64
  %v934 = vpop.permute.xlu0 %933
  %935 = vrot.lane.b32.xlu0 %v930, 64
  %v936 = vpop.permute.xlu0 %935
  %vm939 = vcmask 259077
  %940 = vst.msk [vmem:[#allocation2] sm:$0x20] %vm939, %v934
  %941 = vst.msk [vmem:[#allocation2 + $0x8] sm:$0x20] %vm939, %v936
  %v942 = vrot.slane %v929, 5
  %v943 = vrot.slane %v930, 4
  %v944 = vsel %vm195, %v943, %v942
  %945 = vrot.lane.b32.xlu0 %v944, 64
  %v946 = vpop.permute.xlu0 %945
  %v947 = vsel %vm199, %v946, 0
  %949 = vmatprep.subr.mxu0 0.0
  %950 = vmatpush1.msra.mxu0 0.0
  %951 = vmatprep.subr.mxu0 0.0
  %952 = vmatpush1.msra.mxu0 0.0
  %953 = vmatprep.subr.mxu0 0.0
  %954 = vmatpush1.msra.mxu0 0.0
  %955 = vmatprep.subr.mxu0 0.0
  %956 = vmatpush1.msra.mxu0 0.0
  %957 = vmatprep.subr.mxu0 0.0
  %958 = vmatpush1.msra.mxu0 0.0
  %959 = vmatprep.subr.mxu0 0.0
  %960 = vmatpush1.msra.mxu0 0.0
  %961 = vmatprep.subr.mxu0 0.0
  %962 = vmatpush1.msra.mxu0 0.0
  %963 = vmatprep.subr.mxu0 0.0
  %964 = vmatpush1.msra.mxu0 0.0
  %965 = vmatprep.subr.mxu0 0.0
  %966 = vmatpush1.msra.mxu0 0.0
  %967 = vmatprep.subr.mxu0 0.0
  %968 = vmatpush1.msra.mxu0 0.0
  %969 = vmatprep.subr.mxu0 0.0
  %970 = vmatpush1.msra.mxu0 0.0
  %971 = vmatprep.subr.mxu0 0.0
  %972 = vmatpush1.msra.mxu0 0.0
  %973 = vmatprep.subr.mxu0 0.0
  %974 = vmatpush1.msra.mxu0 %v28
  %975 = vmatprep.subr.mxu0 0.0
  %976 = vmatpush1.msra.mxu0 %v27
  %977 = vmatprep.subr.mxu0 0.0
  %978 = vmatpush1.msra.mxu0 %v26
  %979 = vmatprep.subr.mxu0 0.0
  %980 = vmatpush1.msra.mxu0 %v25
  %981 = vmatprep.subr.mxu0 0.0
  %982 = vmatpush2.msra.mxu0 0.0
  %983 = vmatprep.subr.mxu0 0.0
  %984 = vmatpush2.msra.mxu0 0.0
  %985 = vmatprep.subr.mxu0 0.0
  %986 = vmatpush2.msra.mxu0 0.0
  %987 = vmatprep.subr.mxu0 0.0
  %988 = vmatpush2.msra.mxu0 0.0
  %989 = vmatprep.subr.mxu0 0.0
  %990 = vmatpush2.msra.mxu0 0.0
  %991 = vmatprep.subr.mxu0 0.0
  %992 = vmatpush2.msra.mxu0 0.0
  %993 = vmatprep.subr.mxu0 0.0
  %994 = vmatpush2.msra.mxu0 0.0
  %995 = vmatprep.subr.mxu0 0.0
  %996 = vmatpush2.msra.mxu0 0.0
  %997 = vmatprep.subr.mxu0 0.0
  %998 = vmatpush2.msra.mxu0 0.0
  %999 = vmatprep.subr.mxu0 0.0
  %1000 = vmatpush2.msra.mxu0 0.0
  %1001 = vmatprep.subr.mxu0 0.0
  %1002 = vmatpush2.msra.mxu0 0.0
  %1003 = vmatprep.subr.mxu0 0.0
  %1004 = vmatpush2.msra.mxu0 0.0
  %1005 = vmatprep.subr.mxu0 0.0
  %1006 = vmatpush2.msra.mxu0 0.0
  %1007 = vmatprep.subr.mxu0 0.0
  %1008 = vmatpush2.msra.mxu0 0.0
  %1009 = vmatprep.subr.mxu0 0.0
  %1010 = vmatpush2.msra.mxu0 0.0
  %1011 = vmatprep.subr.mxu0 0.0
  %1012 = vmatpush2.msra.mxu0 0.0
  %1013 = vmatprep.mubr.f32.mxu0 0.0
  %1014 = vmatmul.mubr.f32.gmra.mxu0 %v947
  %v1015 = vpop.f32.mrf.mxu0
  %v1016 = vadd.f32 0.0, %v1015
  %v1017 = vpop.f32.mrf.mxu0
  %1018 = vdwg.mxu0
  %v1020 = vrot.slane %v1016, 2
  %v1021 = vrot.slane %v1016, 3
  %v1024 = vadd.f32 %v139, %v1020
  %v1025 = vadd.f32 %v144, %v1021
  %v1026 = vxor.u32 %v1024, 2147483648
  %v1027 = vxor.u32 %v1025, 2147483648
  %v1028 = vmul.f32 %v1026, 1.442695
  %v1029 = vpow.pop %v1028
  %v1030 = vmul.f32 %v1027, 1.442695
  %v1031 = vpow.pop %v1030
  %v1032 = vadd.f32 %v1029, 1.0
  %v1033 = vadd.f32 %v1031, 1.0
  %v1034 = vrcp.pop %v1032
  %v1035 = vmul.f32 1.0, %v1034
  %v1036 = vrcp.pop %v1033
  %v1037 = vmul.f32 1.0, %v1036
  %v1038 = vtanh.pop %v1024
  %v1039 = vtanh.pop %v1025
  %v1042 = vrot.slane %v917, 7
  %v1043 = vrot.slane %v918, 7
  %v1046 = vmul.f32 %v1035, %v1042
  %v1047 = vmul.f32 %v1037, %v1043
  %1050 = vrot.lane.b32.xlu0 %v1038, 32
  %v1051 = vpop.permute.xlu0 %1050
  %1052 = vrot.lane.b32.xlu0 %v1039, 32
  %v1053 = vpop.permute.xlu0 %1052
  %v1056 = vmul.f32 %v1035, %v1051
  %v1057 = vmul.f32 %v1037, %v1053
  %1060 = vrot.lane.b32.xlu0 %v1056, 32
  %v1061 = vpop.permute.xlu0 %1060
  %1062 = vrot.lane.b32.xlu0 %v1057, 32
  %v1063 = vpop.permute.xlu0 %1062
  %v1066 = vadd.f32 %v1046, %v1061
  %v1067 = vadd.f32 %v1047, %v1063
  %v1068 = vtanh.pop %v1066
  %v1069 = vtanh.pop %v1067
  %1072 = vrot.lane.b32.xlu0 %v1068, 32
  %v1073 = vpop.permute.xlu0 %1072
  %1074 = vrot.lane.b32.xlu0 %v1069, 32
  %v1075 = vpop.permute.xlu0 %1074
  %v1078 = vmul.f32 %v1035, %v1073
  %v1079 = vmul.f32 %v1037, %v1075
  %1082 = vrot.lane.b32.xlu0 %v1078, 64
  %v1083 = vpop.permute.xlu0 %1082
  %1084 = vrot.lane.b32.xlu0 %v1079, 64
  %v1085 = vpop.permute.xlu0 %1084
  %vm1088 = vcmask 260102
  %1089 = vst.msk [vmem:[#allocation2] sm:$0x40] %vm1088, %v1083
  %1090 = vst.msk [vmem:[#allocation2 + $0x8] sm:$0x40] %vm1088, %v1085
  %v1091 = vrot.slane %v1078, 6
  %v1092 = vrot.slane %v1079, 5
  %v1093 = vsel %vm195, %v1092, %v1091
  %1094 = vrot.lane.b32.xlu0 %v1093, 64
  %v1095 = vpop.permute.xlu0 %1094
  %v1096 = vsel %vm199, %v1095, 0
  %1098 = vmatprep.subr.mxu0 0.0
  %1099 = vmatpush1.msra.mxu0 0.0
  %1100 = vmatprep.subr.mxu0 0.0
  %1101 = vmatpush1.msra.mxu0 0.0
  %1102 = vmatprep.subr.mxu0 0.0
  %1103 = vmatpush1.msra.mxu0 0.0
  %1104 = vmatprep.subr.mxu0 0.0
  %1105 = vmatpush1.msra.mxu0 0.0
  %1106 = vmatprep.subr.mxu0 0.0
  %1107 = vmatpush1.msra.mxu0 0.0
  %1108 = vmatprep.subr.mxu0 0.0
  %1109 = vmatpush1.msra.mxu0 0.0
  %1110 = vmatprep.subr.mxu0 0.0
  %1111 = vmatpush1.msra.mxu0 0.0
  %1112 = vmatprep.subr.mxu0 0.0
  %1113 = vmatpush1.msra.mxu0 0.0
  %1114 = vmatprep.subr.mxu0 0.0
  %1115 = vmatpush1.msra.mxu0 0.0
  %1116 = vmatprep.subr.mxu0 0.0
  %1117 = vmatpush1.msra.mxu0 0.0
  %1118 = vmatprep.subr.mxu0 0.0
  %1119 = vmatpush1.msra.mxu0 0.0
  %1120 = vmatprep.subr.mxu0 0.0
  %1121 = vmatpush1.msra.mxu0 0.0
  %1122 = vmatprep.subr.mxu0 0.0
  %1123 = vmatpush1.msra.mxu0 %v28
  %1124 = vmatprep.subr.mxu0 0.0
  %1125 = vmatpush1.msra.mxu0 %v27
  %1126 = vmatprep.subr.mxu0 0.0
  %1127 = vmatpush1.msra.mxu0 %v26
  %1128 = vmatprep.subr.mxu0 0.0
  %1129 = vmatpush1.msra.mxu0 %v25
  %1130 = vmatprep.subr.mxu0 0.0
  %1131 = vmatpush2.msra.mxu0 0.0
  %1132 = vmatprep.subr.mxu0 0.0
  %1133 = vmatpush2.msra.mxu0 0.0
  %1134 = vmatprep.subr.mxu0 0.0
  %1135 = vmatpush2.msra.mxu0 0.0
  %1136 = vmatprep.subr.mxu0 0.0
  %1137 = vmatpush2.msra.mxu0 0.0
  %1138 = vmatprep.subr.mxu0 0.0
  %1139 = vmatpush2.msra.mxu0 0.0
  %1140 = vmatprep.subr.mxu0 0.0
  %1141 = vmatpush2.msra.mxu0 0.0
  %1142 = vmatprep.subr.mxu0 0.0
  %1143 = vmatpush2.msra.mxu0 0.0
  %1144 = vmatprep.subr.mxu0 0.0
  %1145 = vmatpush2.msra.mxu0 0.0
  %1146 = vmatprep.subr.mxu0 0.0
  %1147 = vmatpush2.msra.mxu0 0.0
  %1148 = vmatprep.subr.mxu0 0.0
  %1149 = vmatpush2.msra.mxu0 0.0
  %1150 = vmatprep.subr.mxu0 0.0
  %1151 = vmatpush2.msra.mxu0 0.0
  %1152 = vmatprep.subr.mxu0 0.0
  %1153 = vmatpush2.msra.mxu0 0.0
  %1154 = vmatprep.subr.mxu0 0.0
  %1155 = vmatpush2.msra.mxu0 0.0
  %1156 = vmatprep.subr.mxu0 0.0
  %1157 = vmatpush2.msra.mxu0 0.0
  %1158 = vmatprep.subr.mxu0 0.0
  %1159 = vmatpush2.msra.mxu0 0.0
  %1160 = vmatprep.subr.mxu0 0.0
  %1161 = vmatpush2.msra.mxu0 0.0
  %1162 = vmatprep.mubr.f32.mxu0 0.0
  %1163 = vmatmul.mubr.f32.gmra.mxu0 %v1096
  %v1164 = vpop.f32.mrf.mxu0
  %v1165 = vadd.f32 0.0, %v1164
  %v1166 = vpop.f32.mrf.mxu0
  %1167 = vdwg.mxu0
  %v1169 = vrot.slane %v1165, 1
  %v1170 = vrot.slane %v1165, 2
  %v1173 = vadd.f32 %v139, %v1169
  %v1174 = vadd.f32 %v144, %v1170
  %v1175 = vxor.u32 %v1173, 2147483648
  %v1176 = vxor.u32 %v1174, 2147483648
  %v1177 = vmul.f32 %v1175, 1.442695
  %v1178 = vpow.pop %v1177
  %v1179 = vmul.f32 %v1176, 1.442695
  %v1180 = vpow.pop %v1179
  %v1181 = vadd.f32 %v1178, 1.0
  %v1182 = vadd.f32 %v1180, 1.0
  %v1183 = vrcp.pop %v1181
  %v1184 = vmul.f32 1.0, %v1183
  %v1185 = vrcp.pop %v1182
  %v1186 = vmul.f32 1.0, %v1185
  %v1187 = vtanh.pop %v1173
  %v1188 = vtanh.pop %v1174
  %v1191 = vrot.slane %v1066, 7
  %v1192 = vrot.slane %v1067, 7
  %v1195 = vmul.f32 %v1184, %v1191
  %v1196 = vmul.f32 %v1186, %v1192
  %1199 = vrot.lane.b32.xlu0 %v1187, 32
  %v1200 = vpop.permute.xlu0 %1199
  %1201 = vrot.lane.b32.xlu0 %v1188, 32
  %v1202 = vpop.permute.xlu0 %1201
  %v1205 = vmul.f32 %v1184, %v1200
  %v1206 = vmul.f32 %v1186, %v1202
  %1209 = vrot.lane.b32.xlu0 %v1205, 32
  %v1210 = vpop.permute.xlu0 %1209
  %1211 = vrot.lane.b32.xlu0 %v1206, 32
  %v1212 = vpop.permute.xlu0 %1211
  %v1215 = vadd.f32 %v1195, %v1210
  %v1216 = vadd.f32 %v1196, %v1212
  %v1217 = vtanh.pop %v1215
  %v1218 = vtanh.pop %v1216
  %1221 = vrot.lane.b32.xlu0 %v1217, 32
  %v1222 = vpop.permute.xlu0 %1221
  %1223 = vrot.lane.b32.xlu0 %v1218, 32
  %v1224 = vpop.permute.xlu0 %1223
  %v1227 = vmul.f32 %v1184, %v1222
  %v1228 = vmul.f32 %v1186, %v1224
  %1231 = vrot.lane.b32.xlu0 %v1227, 64
  %v1232 = vpop.permute.xlu0 %1231
  %1233 = vrot.lane.b32.xlu0 %v1228, 64
  %v1234 = vpop.permute.xlu0 %1233
  %vm1237 = vcmask 261127
  %1238 = vst.msk [vmem:[#allocation2] sm:$0x80] %vm1237, %v1232
  %1239 = vst.msk [vmem:[#allocation2 + $0x8] sm:$0x80] %vm1237, %v1234
  %v1240 = vld [vmem:[#allocation2] sm:$0xff]
  %v1241 = vld [vmem:[#allocation2 + $0x8] sm:$0xff]
  %v1243 = vsel %vm199, %v1240, 0
  %v1246 = vsel %vm199, %v1241, 0
  %1248 = vmatprep.subr.mxu0 0.0
  %1249 = vmatpush1.msra.mxu0 0.0
  %1250 = vmatprep.subr.mxu0 0.0
  %1251 = vmatpush1.msra.mxu0 0.0
  %1252 = vmatprep.subr.mxu0 0.0
  %1253 = vmatpush1.msra.mxu0 0.0
  %1254 = vmatprep.subr.mxu0 0.0
  %1255 = vmatpush1.msra.mxu0 0.0
  %1256 = vmatprep.subr.mxu0 0.0
  %1257 = vmatpush1.msra.mxu0 0.0
  %1258 = vmatprep.subr.mxu0 0.0
  %1259 = vmatpush1.msra.mxu0 0.0
  %1260 = vmatprep.subr.mxu0 0.0
  %1261 = vmatpush1.msra.mxu0 0.0
  %1262 = vmatprep.subr.mxu0 0.0
  %1263 = vmatpush1.msra.mxu0 0.0
  %1264 = vmatprep.subr.mxu0 0.0
  %1265 = vmatpush1.msra.mxu0 0.0
  %1266 = vmatprep.subr.mxu0 0.0
  %1267 = vmatpush1.msra.mxu0 0.0
  %1268 = vmatprep.subr.mxu0 0.0
  %1269 = vmatpush1.msra.mxu0 0.0
  %1270 = vmatprep.subr.mxu0 0.0
  %1271 = vmatpush1.msra.mxu0 0.0
  %1272 = vmatprep.subr.mxu0 0.0
  %1273 = vmatpush1.msra.mxu0 %v42
  %1274 = vmatprep.subr.mxu0 0.0
  %1275 = vmatpush1.msra.mxu0 %v41
  %1276 = vmatprep.subr.mxu0 0.0
  %1277 = vmatpush1.msra.mxu0 %v40
  %1278 = vmatprep.subr.mxu0 0.0
  %1279 = vmatpush1.msra.mxu0 %v39
  %1280 = vmatprep.subr.mxu0 0.0
  %1281 = vmatpush2.msra.mxu0 0.0
  %1282 = vmatprep.subr.mxu0 0.0
  %1283 = vmatpush2.msra.mxu0 0.0
  %1284 = vmatprep.subr.mxu0 0.0
  %1285 = vmatpush2.msra.mxu0 0.0
  %1286 = vmatprep.subr.mxu0 0.0
  %1287 = vmatpush2.msra.mxu0 0.0
  %1288 = vmatprep.subr.mxu0 0.0
  %1289 = vmatpush2.msra.mxu0 0.0
  %1290 = vmatprep.subr.mxu0 0.0
  %1291 = vmatpush2.msra.mxu0 0.0
  %1292 = vmatprep.subr.mxu0 0.0
  %1293 = vmatpush2.msra.mxu0 0.0
  %1294 = vmatprep.subr.mxu0 0.0
  %1295 = vmatpush2.msra.mxu0 0.0
  %1296 = vmatprep.subr.mxu0 0.0
  %1297 = vmatpush2.msra.mxu0 0.0
  %1298 = vmatprep.subr.mxu0 0.0
  %1299 = vmatpush2.msra.mxu0 0.0
  %1300 = vmatprep.subr.mxu0 0.0
  %1301 = vmatpush2.msra.mxu0 0.0
  %1302 = vmatprep.subr.mxu0 0.0
  %1303 = vmatpush2.msra.mxu0 0.0
  %1304 = vmatprep.subr.mxu0 0.0
  %1305 = vmatpush2.msra.mxu0 0.0
  %1306 = vmatprep.subr.mxu0 0.0
  %1307 = vmatpush2.msra.mxu0 0.0
  %1308 = vmatprep.subr.mxu0 0.0
  %1309 = vmatpush2.msra.mxu0 0.0
  %1310 = vmatprep.subr.mxu0 0.0
  %1311 = vmatpush2.msra.mxu0 0.0
  %1312 = vmatprep.mubr.f32.mxu0 0.0
  %1313 = vmatmul.mubr.f32.gmra.mxu0 %v1243
  %v1314 = vpop.f32.mrf.mxu0
  %v1315 = vadd.f32 0.0, %v1314
  %v1316 = vpop.f32.mrf.mxu0
  %1317 = vmatprep.mubr.f32.mxu0 0.0
  %1318 = vmatmul.mubr.f32.gmra.mxu0 %v1246
  %v1319 = vpop.f32.mrf.mxu0
  %v1320 = vadd.f32 0.0, %v1319
  %v1321 = vpop.f32.mrf.mxu0
  %1322 = vdwg.mxu0
  %v1323 = vrot.slane %v1227, 7
  %v1324 = vrot.slane %v1228, 6
  %v1325 = vsel %vm195, %v1324, %v1323
  %1326 = vrot.lane.b32.xlu0 %v1325, 96
  %v1327 = vpop.permute.xlu0 %1326
  %v1329 = vsel %vm199, 0.0, %v1327
  %v1330 = vlaneseq
  %v1331 = vshrl.u32 %v1330, 7
  %v1332 = vsub.s32 0, %v1331
  %v1333 = vrot.slane %v38, %v1332
  %vm1334 = vcmask 523264
  %v1336 = vsel %vm1334, %v1329, 0
  %1338 = vmatprep.subr.mxu0 0.0
  %1339 = vmatpush1.msra.mxu0 0.0
  %1340 = vmatprep.subr.mxu0 0.0
  %1341 = vmatpush1.msra.mxu0 0.0
  %1342 = vmatprep.subr.mxu0 0.0
  %1343 = vmatpush1.msra.mxu0 0.0
  %1344 = vmatprep.subr.mxu0 0.0
  %1345 = vmatpush1.msra.mxu0 0.0
  %1346 = vmatprep.subr.mxu0 0.0
  %1347 = vmatpush1.msra.mxu0 0.0
  %1348 = vmatprep.subr.mxu0 0.0
  %1349 = vmatpush1.msra.mxu0 0.0
  %1350 = vmatprep.subr.mxu0 0.0
  %1351 = vmatpush1.msra.mxu0 0.0
  %1352 = vmatprep.subr.mxu0 0.0
  %1353 = vmatpush1.msra.mxu0 0.0
  %1354 = vmatprep.subr.mxu0 0.0
  %1355 = vmatpush1.msra.mxu0 %v37
  %1356 = vmatprep.subr.mxu0 0.0
  %1357 = vmatpush1.msra.mxu0 %v36
  %1358 = vmatprep.subr.mxu0 0.0
  %1359 = vmatpush1.msra.mxu0 %v35
  %1360 = vmatprep.subr.mxu0 0.0
  %1361 = vmatpush1.msra.mxu0 %v34
  %1362 = vmatprep.subr.mxu0 0.0
  %1363 = vmatpush1.msra.mxu0 %v33
  %1364 = vmatprep.subr.mxu0 0.0
  %1365 = vmatpush1.msra.mxu0 %v32
  %1366 = vmatprep.subr.mxu0 0.0
  %1367 = vmatpush1.msra.mxu0 %v31
  %1368 = vmatprep.subr.mxu0 0.0
  %1369 = vmatpush1.msra.mxu0 %v30
  %1370 = vmatprep.subr.mxu0 0.0
  %1371 = vmatpush2.msra.mxu0 0.0
  %1372 = vmatprep.subr.mxu0 0.0
  %1373 = vmatpush2.msra.mxu0 0.0
  %1374 = vmatprep.subr.mxu0 0.0
  %1375 = vmatpush2.msra.mxu0 0.0
  %1376 = vmatprep.subr.mxu0 0.0
  %1377 = vmatpush2.msra.mxu0 0.0
  %1378 = vmatprep.subr.mxu0 0.0
  %1379 = vmatpush2.msra.mxu0 0.0
  %1380 = vmatprep.subr.mxu0 0.0
  %1381 = vmatpush2.msra.mxu0 0.0
  %1382 = vmatprep.subr.mxu0 0.0
  %1383 = vmatpush2.msra.mxu0 0.0
  %1384 = vmatprep.subr.mxu0 0.0
  %1385 = vmatpush2.msra.mxu0 0.0
  %1386 = vmatprep.subr.mxu0 0.0
  %1387 = vmatpush2.msra.mxu0 0.0
  %1388 = vmatprep.subr.mxu0 0.0
  %1389 = vmatpush2.msra.mxu0 0.0
  %1390 = vmatprep.subr.mxu0 0.0
  %1391 = vmatpush2.msra.mxu0 0.0
  %1392 = vmatprep.subr.mxu0 0.0
  %1393 = vmatpush2.msra.mxu0 0.0
  %1394 = vmatprep.subr.mxu0 0.0
  %1395 = vmatpush2.msra.mxu0 0.0
  %1396 = vmatprep.subr.mxu0 0.0
  %1397 = vmatpush2.msra.mxu0 0.0
  %1398 = vmatprep.subr.mxu0 0.0
  %1399 = vmatpush2.msra.mxu0 0.0
  %1400 = vmatprep.subr.mxu0 0.0
  %1401 = vmatpush2.msra.mxu0 0.0
  %1402 = vmatprep.mubr.f32.mxu0 0.0
  %1403 = vmatmul.mubr.f32.gmra.mxu0 %v1336
  %v1404 = vpop.f32.mrf.mxu0
  %v1405 = vadd.f32 %v1333, %v1404
  %v1406 = vpop.f32.mrf.mxu0
  %1407 = vdwg.mxu0
  %v1408 = vxor.u32 %v1405, 2147483648
  %v1409 = vmul.f32 %v1408, 1.442695
  %v1410 = vpow.pop %v1409
  %v1411 = vadd.f32 %v1410, 1.0
  %v1412 = vrcp.pop %v1411
  %v1413 = vmul.f32 1.0, %v1412
  %v1414 = vtanh.pop %v1405
  %v1417 = vrot.slane %v1215, 7
  %v1418 = vrot.slane %v1216, 6
  %v1419 = vsel %vm195, %v1418, %v1417
  %v1421 = vmul.f32 %v1413, %v1419
  %1423 = vrot.lane.b32.xlu0 %v1414, 32
  %v1424 = vpop.permute.xlu0 %1423
  %v1426 = vmul.f32 %v1413, %v1424
  %1428 = vrot.lane.b32.xlu0 %v1426, 32
  %v1429 = vpop.permute.xlu0 %1428
  %v1431 = vadd.f32 %v1421, %v1429
  %v1432 = vtanh.pop %v1431
  %1434 = vrot.lane.b32.xlu0 %v1432, 32
  %v1435 = vpop.permute.xlu0 %1434
  %v1437 = vmul.f32 %v1413, %v1435
  %1439 = vrot.lane.b32.xlu0 %v1437, 64
  %v1440 = vpop.permute.xlu0 %1439
  %v1441 = vsel %vm199, %v1440, 0
  %1443 = vmatprep.subr.mxu0 0.0
  %1444 = vmatpush1.msra.mxu0 0.0
  %1445 = vmatprep.subr.mxu0 0.0
  %1446 = vmatpush1.msra.mxu0 0.0
  %1447 = vmatprep.subr.mxu0 0.0
  %1448 = vmatpush1.msra.mxu0 0.0
  %1449 = vmatprep.subr.mxu0 0.0
  %1450 = vmatpush1.msra.mxu0 0.0
  %1451 = vmatprep.subr.mxu0 0.0
  %1452 = vmatpush1.msra.mxu0 0.0
  %1453 = vmatprep.subr.mxu0 0.0
  %1454 = vmatpush1.msra.mxu0 0.0
  %1455 = vmatprep.subr.mxu0 0.0
  %1456 = vmatpush1.msra.mxu0 0.0
  %1457 = vmatprep.subr.mxu0 0.0
  %1458 = vmatpush1.msra.mxu0 0.0
  %1459 = vmatprep.subr.mxu0 0.0
  %1460 = vmatpush1.msra.mxu0 0.0
  %1461 = vmatprep.subr.mxu0 0.0
  %1462 = vmatpush1.msra.mxu0 0.0
  %1463 = vmatprep.subr.mxu0 0.0
  %1464 = vmatpush1.msra.mxu0 0.0
  %1465 = vmatprep.subr.mxu0 0.0
  %1466 = vmatpush1.msra.mxu0 0.0
  %1467 = vmatprep.subr.mxu0 0.0
  %1468 = vmatpush1.msra.mxu0 %v46
  %1469 = vmatprep.subr.mxu0 0.0
  %1470 = vmatpush1.msra.mxu0 %v45
  %1471 = vmatprep.subr.mxu0 0.0
  %1472 = vmatpush1.msra.mxu0 %v44
  %1473 = vmatprep.subr.mxu0 0.0
  %1474 = vmatpush1.msra.mxu0 %v43
  %1475 = vmatprep.subr.mxu0 0.0
  %1476 = vmatpush2.msra.mxu0 0.0
  %1477 = vmatprep.subr.mxu0 0.0
  %1478 = vmatpush2.msra.mxu0 0.0
  %1479 = vmatprep.subr.mxu0 0.0
  %1480 = vmatpush2.msra.mxu0 0.0
  %1481 = vmatprep.subr.mxu0 0.0
  %1482 = vmatpush2.msra.mxu0 0.0
  %1483 = vmatprep.subr.mxu0 0.0
  %1484 = vmatpush2.msra.mxu0 0.0
  %1485 = vmatprep.subr.mxu0 0.0
  %1486 = vmatpush2.msra.mxu0 0.0
  %1487 = vmatprep.subr.mxu0 0.0
  %1488 = vmatpush2.msra.mxu0 0.0
  %1489 = vmatprep.subr.mxu0 0.0
  %1490 = vmatpush2.msra.mxu0 0.0
  %1491 = vmatprep.subr.mxu0 0.0
  %1492 = vmatpush2.msra.mxu0 0.0
  %1493 = vmatprep.subr.mxu0 0.0
  %1494 = vmatpush2.msra.mxu0 0.0
  %1495 = vmatprep.subr.mxu0 0.0
  %1496 = vmatpush2.msra.mxu0 0.0
  %1497 = vmatprep.subr.mxu0 0.0
  %1498 = vmatpush2.msra.mxu0 0.0
  %1499 = vmatprep.subr.mxu0 0.0
  %1500 = vmatpush2.msra.mxu0 0.0
  %1501 = vmatprep.subr.mxu0 0.0
  %1502 = vmatpush2.msra.mxu0 0.0
  %1503 = vmatprep.subr.mxu0 0.0
  %1504 = vmatpush2.msra.mxu0 0.0
  %1505 = vmatprep.subr.mxu0 0.0
  %1506 = vmatpush2.msra.mxu0 0.0
  %1507 = vmatprep.mubr.f32.mxu0 0.0
  %1508 = vmatmul.mubr.f32.gmra.mxu0 %v1441
  %v1509 = vpop.f32.mrf.mxu0
  %v1510 = vadd.f32 0.0, %v1509
  %v1511 = vpop.f32.mrf.mxu0
  %1512 = vdwg.mxu0
  %v1515 = vunpack.c.l.s4 1966171168
  %v1516 = vunpack.c.0.s8 %v1515
  %v1517 = vlaneseq
  %v1518 = vshrl.u32 %v1517, 7
  %v1519 = vsub.s32 %v1516, %v1518
  %v1520 = vrot.slane %v1510, %v1519
  %v1521 = vcombine.high %v1520, %v1520
  %v1523 = vunpack.c.l.s4 1966171168
  %v1524 = vunpack.c.0.s8 %v1523
  %v1525 = vlaneseq
  %v1526 = vshrl.u32 %v1525, 7
  %v1527 = vsub.s32 %v1524, %v1526
  %v1528 = vrot.slane %v1520, %v1527
  %v1530 = vunpack.c.l.s4 1966171168
  %v1531 = vunpack.c.0.s8 %v1530
  %v1532 = vlaneseq
  %v1533 = vshrl.u32 %v1532, 7
  %v1534 = vsub.s32 %v1531, %v1533
  %v1535 = vrot.slane %v1521, %v1534
  %v1536 = vlaneseq
  %v1537 = vshrl.u32 %v1536, 7
  %v1538 = vsub.s32 0, %v1537
  %v1539 = vrot.slane %v1528, %v1538
  %v1540 = vlaneseq
  %v1541 = vshrl.u32 %v1540, 7
  %v1542 = vsub.s32 0, %v1541
  %v1543 = vrot.slane %v1535, %v1542
  %v1546 = vadd.f32 %v1315, %v1539
  %v1547 = vadd.f32 %v1320, %v1543
  %v1548 = vtanh.pop %v1546
  %v1549 = vtanh.pop %v1547
  %v1550 = vlaneseq
  %v1551 = vshrl.u32 %v1550, 7
  %v1552 = vsub.s32 0, %v1551
  %v1553 = vrot.slane %v47, %v1552
  %v1554 = vmul.f32 %v1548, %v1553
  %v1555 = vmul.f32 %v1549, %v1553
  %v1556 = vsel %vm199, %v1554, 0.0
  %1557 = vadd.xlane.f32.xlu0 %v1556
  %v1558 = vpop.xlane.xlu0 %1557
  %v1559 = vsel %vm199, %v1555, 0.0
  %1560 = vadd.xlane.f32.xlu0 %v1559
  %v1561 = vpop.xlane.xlu0 %1560
  %v1562 = vrot.slane %v1558, 4
  %v1563 = vmax.f32 %v1558, %v1562
  %v1564 = vrot.slane %v1563, 2
  %v1565 = vmax.f32 %v1563, %v1564
  %v1566 = vrot.slane %v1565, 1
  %v1567 = vmax.f32 %v1565, %v1566
  %v1568 = vrot.slane %v1561, 4
  %v1569 = vmax.f32 %v1561, %v1568
  %v1570 = vrot.slane %v1569, 2
  %v1571 = vmax.f32 %v1569, %v1570
  %v1572 = vrot.slane %v1571, 1
  %v1573 = vmax.f32 %v1571, %v1572
  %v1574 = vsub.f32 %v1558, %v1567
  %v1575 = vsub.f32 %v1561, %v1573
  %v1576 = vmul.f32 %v1574, 1.442695
  %v1577 = vpow.pop %v1576
  %v1578 = vmul.f32 %v1575, 1.442695
  %v1579 = vpow.pop %v1578
  %v1580 = vrot.slane %v1577, 4
  %v1581 = vadd.f32 %v1577, %v1580
  %v1582 = vrot.slane %v1581, 2
  %v1583 = vadd.f32 %v1581, %v1582
  %v1584 = vrot.slane %v1583, 1
  %v1585 = vadd.f32 %v1583, %v1584
  %v1586 = vrot.slane %v1579, 4
  %v1587 = vadd.f32 %v1579, %v1586
  %v1588 = vrot.slane %v1587, 2
  %v1589 = vadd.f32 %v1587, %v1588
  %v1590 = vrot.slane %v1589, 1
  %v1591 = vadd.f32 %v1589, %v1590
  %v1592 = vrcp.pop %v1585
  %v1593 = vrcp.pop %v1591
  %v1594 = vmul.f32 %v1577, %v1592
  %v1595 = vmul.f32 %v1579, %v1593
  %v1596 = vmul.f32 %v1594, %v1240
  %v1597 = vmul.f32 %v1595, %v1241
  %v1598 = vsel %vm199, %v1596, 0.0
  %v1599 = vrot.slane %v1598, 4
  %v1600 = vadd.f32 %v1598, %v1599
  %v1601 = vrot.slane %v1600, 2
  %v1602 = vadd.f32 %v1600, %v1601
  %v1603 = vrot.slane %v1602, 1
  %v1604 = vadd.f32 %v1602, %v1603
  %v1605 = vsel %vm199, %v1597, 0.0
  %v1606 = vrot.slane %v1605, 4
  %v1607 = vadd.f32 %v1605, %v1606
  %v1608 = vrot.slane %v1607, 2
  %v1609 = vadd.f32 %v1607, %v1608
  %v1610 = vrot.slane %v1609, 1
  %v1611 = vadd.f32 %v1609, %v1610
  %v1614 = vsel %vm195, %v1611, %v1604
  %1616 = vrot.lane.b32.xlu0 %v1437, 96
  %v1617 = vpop.permute.xlu0 %1616
  %v1619 = vsel %vm199, %v1614, %v1617
  %v1621 = vsel %vm1334, %v1619, 0
  %1623 = vmatprep.subr.mxu0 0.0
  %1624 = vmatpush1.msra.mxu0 0.0
  %1625 = vmatprep.subr.mxu0 0.0
  %1626 = vmatpush1.msra.mxu0 0.0
  %1627 = vmatprep.subr.mxu0 0.0
  %1628 = vmatpush1.msra.mxu0 0.0
  %1629 = vmatprep.subr.mxu0 0.0
  %1630 = vmatpush1.msra.mxu0 0.0
  %1631 = vmatprep.subr.mxu0 0.0
  %1632 = vmatpush1.msra.mxu0 0.0
  %1633 = vmatprep.subr.mxu0 0.0
  %1634 = vmatpush1.msra.mxu0 0.0
  %1635 = vmatprep.subr.mxu0 0.0
  %1636 = vmatpush1.msra.mxu0 0.0
  %1637 = vmatprep.subr.mxu0 0.0
  %1638 = vmatpush1.msra.mxu0 0.0
  %1639 = vmatprep.subr.mxu0 0.0
  %1640 = vmatpush1.msra.mxu0 %v37
  %1641 = vmatprep.subr.mxu0 0.0
  %1642 = vmatpush1.msra.mxu0 %v36
  %1643 = vmatprep.subr.mxu0 0.0
  %1644 = vmatpush1.msra.mxu0 %v35
  %1645 = vmatprep.subr.mxu0 0.0
  %1646 = vmatpush1.msra.mxu0 %v34
  %1647 = vmatprep.subr.mxu0 0.0
  %1648 = vmatpush1.msra.mxu0 %v33
  %1649 = vmatprep.subr.mxu0 0.0
  %1650 = vmatpush1.msra.mxu0 %v32
  %1651 = vmatprep.subr.mxu0 0.0
  %1652 = vmatpush1.msra.mxu0 %v31
  %1653 = vmatprep.subr.mxu0 0.0
  %1654 = vmatpush1.msra.mxu0 %v30
  %1655 = vmatprep.subr.mxu0 0.0
  %1656 = vmatpush2.msra.mxu0 0.0
  %1657 = vmatprep.subr.mxu0 0.0
  %1658 = vmatpush2.msra.mxu0 0.0
  %1659 = vmatprep.subr.mxu0 0.0
  %1660 = vmatpush2.msra.mxu0 0.0
  %1661 = vmatprep.subr.mxu0 0.0
  %1662 = vmatpush2.msra.mxu0 0.0
  %1663 = vmatprep.subr.mxu0 0.0
  %1664 = vmatpush2.msra.mxu0 0.0
  %1665 = vmatprep.subr.mxu0 0.0
  %1666 = vmatpush2.msra.mxu0 0.0
  %1667 = vmatprep.subr.mxu0 0.0
  %1668 = vmatpush2.msra.mxu0 0.0
  %1669 = vmatprep.subr.mxu0 0.0
  %1670 = vmatpush2.msra.mxu0 0.0
  %1671 = vmatprep.subr.mxu0 0.0
  %1672 = vmatpush2.msra.mxu0 0.0
  %1673 = vmatprep.subr.mxu0 0.0
  %1674 = vmatpush2.msra.mxu0 0.0
  %1675 = vmatprep.subr.mxu0 0.0
  %1676 = vmatpush2.msra.mxu0 0.0
  %1677 = vmatprep.subr.mxu0 0.0
  %1678 = vmatpush2.msra.mxu0 0.0
  %1679 = vmatprep.subr.mxu0 0.0
  %1680 = vmatpush2.msra.mxu0 0.0
  %1681 = vmatprep.subr.mxu0 0.0
  %1682 = vmatpush2.msra.mxu0 0.0
  %1683 = vmatprep.subr.mxu0 0.0
  %1684 = vmatpush2.msra.mxu0 0.0
  %1685 = vmatprep.subr.mxu0 0.0
  %1686 = vmatpush2.msra.mxu0 0.0
  %1687 = vmatprep.mubr.f32.mxu0 0.0
  %1688 = vmatmul.mubr.f32.gmra.mxu0 %v1621
  %v1689 = vpop.f32.mrf.mxu0
  %v1690 = vadd.f32 %v1333, %v1689
  %v1691 = vpop.f32.mrf.mxu0
  %1692 = vdwg.mxu0
  %v1693 = vxor.u32 %v1690, 2147483648
  %v1694 = vmul.f32 %v1693, 1.442695
  %v1695 = vpow.pop %v1694
  %v1696 = vadd.f32 %v1695, 1.0
  %v1697 = vrcp.pop %v1696
  %v1698 = vmul.f32 1.0, %v1697
  %v1699 = vtanh.pop %v1690
  %v1700 = vmul.f32 %v1698, %v1431
  %1702 = vrot.lane.b32.xlu0 %v1699, 32
  %v1703 = vpop.permute.xlu0 %1702
  %v1705 = vmul.f32 %v1698, %v1703
  %1707 = vrot.lane.b32.xlu0 %v1705, 32
  %v1708 = vpop.permute.xlu0 %1707
  %v1710 = vadd.f32 %v1700, %v1708
  %v1711 = vtanh.pop %v1710
  %1713 = vrot.lane.b32.xlu0 %v1711, 32
  %v1714 = vpop.permute.xlu0 %1713
  %v1716 = vmul.f32 %v1698, %v1714
  %1718 = vrot.lane.b32.xlu0 %v1716, 64
  %v1719 = vpop.permute.xlu0 %1718
  %v1720 = vsel %vm199, %v1719, 0
  %1722 = vmatprep.subr.mxu0 0.0
  %1723 = vmatpush1.msra.mxu0 0.0
  %1724 = vmatprep.subr.mxu0 0.0
  %1725 = vmatpush1.msra.mxu0 0.0
  %1726 = vmatprep.subr.mxu0 0.0
  %1727 = vmatpush1.msra.mxu0 0.0
  %1728 = vmatprep.subr.mxu0 0.0
  %1729 = vmatpush1.msra.mxu0 0.0
  %1730 = vmatprep.subr.mxu0 0.0
  %1731 = vmatpush1.msra.mxu0 0.0
  %1732 = vmatprep.subr.mxu0 0.0
  %1733 = vmatpush1.msra.mxu0 0.0
  %1734 = vmatprep.subr.mxu0 0.0
  %1735 = vmatpush1.msra.mxu0 0.0
  %1736 = vmatprep.subr.mxu0 0.0
  %1737 = vmatpush1.msra.mxu0 0.0
  %1738 = vmatprep.subr.mxu0 0.0
  %1739 = vmatpush1.msra.mxu0 0.0
  %1740 = vmatprep.subr.mxu0 0.0
  %1741 = vmatpush1.msra.mxu0 0.0
  %1742 = vmatprep.subr.mxu0 0.0
  %1743 = vmatpush1.msra.mxu0 0.0
  %1744 = vmatprep.subr.mxu0 0.0
  %1745 = vmatpush1.msra.mxu0 0.0
  %1746 = vmatprep.subr.mxu0 0.0
  %1747 = vmatpush1.msra.mxu0 %v46
  %1748 = vmatprep.subr.mxu0 0.0
  %1749 = vmatpush1.msra.mxu0 %v45
  %1750 = vmatprep.subr.mxu0 0.0
  %1751 = vmatpush1.msra.mxu0 %v44
  %1752 = vmatprep.subr.mxu0 0.0
  %1753 = vmatpush1.msra.mxu0 %v43
  %1754 = vmatprep.subr.mxu0 0.0
  %1755 = vmatpush2.msra.mxu0 0.0
  %1756 = vmatprep.subr.mxu0 0.0
  %1757 = vmatpush2.msra.mxu0 0.0
  %1758 = vmatprep.subr.mxu0 0.0
  %1759 = vmatpush2.msra.mxu0 0.0
  %1760 = vmatprep.subr.mxu0 0.0
  %1761 = vmatpush2.msra.mxu0 0.0
  %1762 = vmatprep.subr.mxu0 0.0
  %1763 = vmatpush2.msra.mxu0 0.0
  %1764 = vmatprep.subr.mxu0 0.0
  %1765 = vmatpush2.msra.mxu0 0.0
  %1766 = vmatprep.subr.mxu0 0.0
  %1767 = vmatpush2.msra.mxu0 0.0
  %1768 = vmatprep.subr.mxu0 0.0
  %1769 = vmatpush2.msra.mxu0 0.0
  %1770 = vmatprep.subr.mxu0 0.0
  %1771 = vmatpush2.msra.mxu0 0.0
  %1772 = vmatprep.subr.mxu0 0.0
  %1773 = vmatpush2.msra.mxu0 0.0
  %1774 = vmatprep.subr.mxu0 0.0
  %1775 = vmatpush2.msra.mxu0 0.0
  %1776 = vmatprep.subr.mxu0 0.0
  %1777 = vmatpush2.msra.mxu0 0.0
  %1778 = vmatprep.subr.mxu0 0.0
  %1779 = vmatpush2.msra.mxu0 0.0
  %1780 = vmatprep.subr.mxu0 0.0
  %1781 = vmatpush2.msra.mxu0 0.0
  %1782 = vmatprep.subr.mxu0 0.0
  %1783 = vmatpush2.msra.mxu0 0.0
  %1784 = vmatprep.subr.mxu0 0.0
  %1785 = vmatpush2.msra.mxu0 0.0
  %1786 = vmatprep.mubr.f32.mxu0 0.0
  %1787 = vmatmul.mubr.f32.gmra.mxu0 %v1720
  %v1788 = vpop.f32.mrf.mxu0
  %v1789 = vadd.f32 0.0, %v1788
  %v1790 = vpop.f32.mrf.mxu0
  %1791 = vdwg.mxu0
  %v1794 = vunpack.c.l.s4 1966171168
  %v1795 = vunpack.c.0.s8 %v1794
  %v1796 = vlaneseq
  %v1797 = vshrl.u32 %v1796, 7
  %v1798 = vsub.s32 %v1795, %v1797
  %v1799 = vrot.slane %v1789, %v1798
  %v1800 = vcombine.high %v1799, %v1799
  %v1802 = vunpack.c.l.s4 1966171168
  %v1803 = vunpack.c.0.s8 %v1802
  %v1804 = vlaneseq
  %v1805 = vshrl.u32 %v1804, 7
  %v1806 = vsub.s32 %v1803, %v1805
  %v1807 = vrot.slane %v1799, %v1806
  %v1809 = vunpack.c.l.s4 1966171168
  %v1810 = vunpack.c.0.s8 %v1809
  %v1811 = vlaneseq
  %v1812 = vshrl.u32 %v1811, 7
  %v1813 = vsub.s32 %v1810, %v1812
  %v1814 = vrot.slane %v1800, %v1813
  %v1815 = vlaneseq
  %v1816 = vshrl.u32 %v1815, 7
  %v1817 = vsub.s32 0, %v1816
  %v1818 = vrot.slane %v1807, %v1817
  %v1819 = vlaneseq
  %v1820 = vshrl.u32 %v1819, 7
  %v1821 = vsub.s32 0, %v1820
  %v1822 = vrot.slane %v1814, %v1821
  %v1825 = vadd.f32 %v1315, %v1818
  %v1826 = vadd.f32 %v1320, %v1822
  %v1827 = vtanh.pop %v1825
  %v1828 = vtanh.pop %v1826
  %v1829 = vmul.f32 %v1827, %v1553
  %v1830 = vmul.f32 %v1828, %v1553
  %v1831 = vsel %vm199, %v1829, 0.0
  %1832 = vadd.xlane.f32.xlu0 %v1831
  %v1833 = vpop.xlane.xlu0 %1832
  %v1834 = vsel %vm199, %v1830, 0.0
  %1835 = vadd.xlane.f32.xlu0 %v1834
  %v1836 = vpop.xlane.xlu0 %1835
  %v1837 = vrot.slane %v1833, 4
  %v1838 = vmax.f32 %v1833, %v1837
  %v1839 = vrot.slane %v1838, 2
  %v1840 = vmax.f32 %v1838, %v1839
  %v1841 = vrot.slane %v1840, 1
  %v1842 = vmax.f32 %v1840, %v1841
  %v1843 = vrot.slane %v1836, 4
  %v1844 = vmax.f32 %v1836, %v1843
  %v1845 = vrot.slane %v1844, 2
  %v1846 = vmax.f32 %v1844, %v1845
  %v1847 = vrot.slane %v1846, 1
  %v1848 = vmax.f32 %v1846, %v1847
  %v1849 = vsub.f32 %v1833, %v1842
  %v1850 = vsub.f32 %v1836, %v1848
  %v1851 = vmul.f32 %v1849, 1.442695
  %v1852 = vpow.pop %v1851
  %v1853 = vmul.f32 %v1850, 1.442695
  %v1854 = vpow.pop %v1853
  %v1855 = vrot.slane %v1852, 4
  %v1856 = vadd.f32 %v1852, %v1855
  %v1857 = vrot.slane %v1856, 2
  %v1858 = vadd.f32 %v1856, %v1857
  %v1859 = vrot.slane %v1858, 1
  %v1860 = vadd.f32 %v1858, %v1859
  %v1861 = vrot.slane %v1854, 4
  %v1862 = vadd.f32 %v1854, %v1861
  %v1863 = vrot.slane %v1862, 2
  %v1864 = vadd.f32 %v1862, %v1863
  %v1865 = vrot.slane %v1864, 1
  %v1866 = vadd.f32 %v1864, %v1865
  %v1867 = vrcp.pop %v1860
  %v1868 = vrcp.pop %v1866
  %v1869 = vmul.f32 %v1852, %v1867
  %v1870 = vmul.f32 %v1854, %v1868
  %v1871 = vmul.f32 %v1869, %v1240
  %v1872 = vmul.f32 %v1870, %v1241
  %v1873 = vsel %vm199, %v1871, 0.0
  %v1874 = vrot.slane %v1873, 4
  %v1875 = vadd.f32 %v1873, %v1874
  %v1876 = vrot.slane %v1875, 2
  %v1877 = vadd.f32 %v1875, %v1876
  %v1878 = vrot.slane %v1877, 1
  %v1879 = vadd.f32 %v1877, %v1878
  %v1880 = vsel %vm199, %v1872, 0.0
  %v1881 = vrot.slane %v1880, 4
  %v1882 = vadd.f32 %v1880, %v1881
  %v1883 = vrot.slane %v1882, 2
  %v1884 = vadd.f32 %v1882, %v1883
  %v1885 = vrot.slane %v1884, 1
  %v1886 = vadd.f32 %v1884, %v1885
  %v1889 = vsel %vm195, %v1886, %v1879
  %1891 = vrot.lane.b32.xlu0 %v1716, 96
  %v1892 = vpop.permute.xlu0 %1891
  %v1894 = vsel %vm199, %v1889, %v1892
  %v1896 = vsel %vm1334, %v1894, 0
  %1898 = vmatprep.subr.mxu0 0.0
  %1899 = vmatpush1.msra.mxu0 0.0
  %1900 = vmatprep.subr.mxu0 0.0
  %1901 = vmatpush1.msra.mxu0 0.0
  %1902 = vmatprep.subr.mxu0 0.0
  %1903 = vmatpush1.msra.mxu0 0.0
  %1904 = vmatprep.subr.mxu0 0.0
  %1905 = vmatpush1.msra.mxu0 0.0
  %1906 = vmatprep.subr.mxu0 0.0
  %1907 = vmatpush1.msra.mxu0 0.0
  %1908 = vmatprep.subr.mxu0 0.0
  %1909 = vmatpush1.msra.mxu0 0.0
  %1910 = vmatprep.subr.mxu0 0.0
  %1911 = vmatpush1.msra.mxu0 0.0
  %1912 = vmatprep.subr.mxu0 0.0
  %1913 = vmatpush1.msra.mxu0 0.0
  %1914 = vmatprep.subr.mxu0 0.0
  %1915 = vmatpush1.msra.mxu0 %v37
  %1916 = vmatprep.subr.mxu0 0.0
  %1917 = vmatpush1.msra.mxu0 %v36
  %1918 = vmatprep.subr.mxu0 0.0
  %1919 = vmatpush1.msra.mxu0 %v35
  %1920 = vmatprep.subr.mxu0 0.0
  %1921 = vmatpush1.msra.mxu0 %v34
  %1922 = vmatprep.subr.mxu0 0.0
  %1923 = vmatpush1.msra.mxu0 %v33
  %1924 = vmatprep.subr.mxu0 0.0
  %1925 = vmatpush1.msra.mxu0 %v32
  %1926 = vmatprep.subr.mxu0 0.0
  %1927 = vmatpush1.msra.mxu0 %v31
  %1928 = vmatprep.subr.mxu0 0.0
  %1929 = vmatpush1.msra.mxu0 %v30
  %1930 = vmatprep.subr.mxu0 0.0
  %1931 = vmatpush2.msra.mxu0 0.0
  %1932 = vmatprep.subr.mxu0 0.0
  %1933 = vmatpush2.msra.mxu0 0.0
  %1934 = vmatprep.subr.mxu0 0.0
  %1935 = vmatpush2.msra.mxu0 0.0
  %1936 = vmatprep.subr.mxu0 0.0
  %1937 = vmatpush2.msra.mxu0 0.0
  %1938 = vmatprep.subr.mxu0 0.0
  %1939 = vmatpush2.msra.mxu0 0.0
  %1940 = vmatprep.subr.mxu0 0.0
  %1941 = vmatpush2.msra.mxu0 0.0
  %1942 = vmatprep.subr.mxu0 0.0
  %1943 = vmatpush2.msra.mxu0 0.0
  %1944 = vmatprep.subr.mxu0 0.0
  %1945 = vmatpush2.msra.mxu0 0.0
  %1946 = vmatprep.subr.mxu0 0.0
  %1947 = vmatpush2.msra.mxu0 0.0
  %1948 = vmatprep.subr.mxu0 0.0
  %1949 = vmatpush2.msra.mxu0 0.0
  %1950 = vmatprep.subr.mxu0 0.0
  %1951 = vmatpush2.msra.mxu0 0.0
  %1952 = vmatprep.subr.mxu0 0.0
  %1953 = vmatpush2.msra.mxu0 0.0
  %1954 = vmatprep.subr.mxu0 0.0
  %1955 = vmatpush2.msra.mxu0 0.0
  %1956 = vmatprep.subr.mxu0 0.0
  %1957 = vmatpush2.msra.mxu0 0.0
  %1958 = vmatprep.subr.mxu0 0.0
  %1959 = vmatpush2.msra.mxu0 0.0
  %1960 = vmatprep.subr.mxu0 0.0
  %1961 = vmatpush2.msra.mxu0 0.0
  %1962 = vmatprep.mubr.f32.mxu0 0.0
  %1963 = vmatmul.mubr.f32.gmra.mxu0 %v1896
  %v1964 = vpop.f32.mrf.mxu0
  %v1965 = vadd.f32 %v1333, %v1964
  %v1966 = vpop.f32.mrf.mxu0
  %1967 = vdwg.mxu0
  %v1968 = vxor.u32 %v1965, 2147483648
  %v1969 = vmul.f32 %v1968, 1.442695
  %v1970 = vpow.pop %v1969
  %v1971 = vadd.f32 %v1970, 1.0
  %v1972 = vrcp.pop %v1971
  %v1973 = vmul.f32 1.0, %v1972
  %v1974 = vtanh.pop %v1965
  %v1975 = vmul.f32 %v1973, %v1710
  %1977 = vrot.lane.b32.xlu0 %v1974, 32
  %v1978 = vpop.permute.xlu0 %1977
  %v1980 = vmul.f32 %v1973, %v1978
  %1982 = vrot.lane.b32.xlu0 %v1980, 32
  %v1983 = vpop.permute.xlu0 %1982
  %v1985 = vadd.f32 %v1975, %v1983
  %v1986 = vtanh.pop %v1985
  %1988 = vrot.lane.b32.xlu0 %v1986, 32
  %v1989 = vpop.permute.xlu0 %1988
  %v1991 = vmul.f32 %v1973, %v1989
  %1993 = vrot.lane.b32.xlu0 %v1991, 64
  %v1994 = vpop.permute.xlu0 %1993
  %v1995 = vsel %vm199, %v1994, 0
  %1997 = vmatprep.subr.mxu0 0.0
  %1998 = vmatpush1.msra.mxu0 0.0
  %1999 = vmatprep.subr.mxu0 0.0
  %2000 = vmatpush1.msra.mxu0 0.0
  %2001 = vmatprep.subr.mxu0 0.0
  %2002 = vmatpush1.msra.mxu0 0.0
  %2003 = vmatprep.subr.mxu0 0.0
  %2004 = vmatpush1.msra.mxu0 0.0
  %2005 = vmatprep.subr.mxu0 0.0
  %2006 = vmatpush1.msra.mxu0 0.0
  %2007 = vmatprep.subr.mxu0 0.0
  %2008 = vmatpush1.msra.mxu0 0.0
  %2009 = vmatprep.subr.mxu0 0.0
  %2010 = vmatpush1.msra.mxu0 0.0
  %2011 = vmatprep.subr.mxu0 0.0
  %2012 = vmatpush1.msra.mxu0 0.0
  %2013 = vmatprep.subr.mxu0 0.0
  %2014 = vmatpush1.msra.mxu0 0.0
  %2015 = vmatprep.subr.mxu0 0.0
  %2016 = vmatpush1.msra.mxu0 0.0
  %2017 = vmatprep.subr.mxu0 0.0
  %2018 = vmatpush1.msra.mxu0 0.0
  %2019 = vmatprep.subr.mxu0 0.0
  %2020 = vmatpush1.msra.mxu0 0.0
  %2021 = vmatprep.subr.mxu0 0.0
  %2022 = vmatpush1.msra.mxu0 %v46
  %2023 = vmatprep.subr.mxu0 0.0
  %2024 = vmatpush1.msra.mxu0 %v45
  %2025 = vmatprep.subr.mxu0 0.0
  %2026 = vmatpush1.msra.mxu0 %v44
  %2027 = vmatprep.subr.mxu0 0.0
  %2028 = vmatpush1.msra.mxu0 %v43
  %2029 = vmatprep.subr.mxu0 0.0
  %2030 = vmatpush2.msra.mxu0 0.0
  %2031 = vmatprep.subr.mxu0 0.0
  %2032 = vmatpush2.msra.mxu0 0.0
  %2033 = vmatprep.subr.mxu0 0.0
  %2034 = vmatpush2.msra.mxu0 0.0
  %2035 = vmatprep.subr.mxu0 0.0
  %2036 = vmatpush2.msra.mxu0 0.0
  %2037 = vmatprep.subr.mxu0 0.0
  %2038 = vmatpush2.msra.mxu0 0.0
  %2039 = vmatprep.subr.mxu0 0.0
  %2040 = vmatpush2.msra.mxu0 0.0
  %2041 = vmatprep.subr.mxu0 0.0
  %2042 = vmatpush2.msra.mxu0 0.0
  %2043 = vmatprep.subr.mxu0 0.0
  %2044 = vmatpush2.msra.mxu0 0.0
  %2045 = vmatprep.subr.mxu0 0.0
  %2046 = vmatpush2.msra.mxu0 0.0
  %2047 = vmatprep.subr.mxu0 0.0
  %2048 = vmatpush2.msra.mxu0 0.0
  %2049 = vmatprep.subr.mxu0 0.0
  %2050 = vmatpush2.msra.mxu0 0.0
  %2051 = vmatprep.subr.mxu0 0.0
  %2052 = vmatpush2.msra.mxu0 0.0
  %2053 = vmatprep.subr.mxu0 0.0
  %2054 = vmatpush2.msra.mxu0 0.0
  %2055 = vmatprep.subr.mxu0 0.0
  %2056 = vmatpush2.msra.mxu0 0.0
  %2057 = vmatprep.subr.mxu0 0.0
  %2058 = vmatpush2.msra.mxu0 0.0
  %2059 = vmatprep.subr.mxu0 0.0
  %2060 = vmatpush2.msra.mxu0 0.0
  %2061 = vmatprep.mubr.f32.mxu0 0.0
  %2062 = vmatmul.mubr.f32.gmra.mxu0 %v1995
  %v2063 = vpop.f32.mrf.mxu0
  %v2064 = vadd.f32 0.0, %v2063
  %v2065 = vpop.f32.mrf.mxu0
  %2066 = vdwg.mxu0
  %v2069 = vunpack.c.l.s4 1966171168
  %v2070 = vunpack.c.0.s8 %v2069
  %v2071 = vlaneseq
  %v2072 = vshrl.u32 %v2071, 7
  %v2073 = vsub.s32 %v2070, %v2072
  %v2074 = vrot.slane %v2064, %v2073
  %v2075 = vcombine.high %v2074, %v2074
  %v2077 = vunpack.c.l.s4 1966171168
  %v2078 = vunpack.c.0.s8 %v2077
  %v2079 = vlaneseq
  %v2080 = vshrl.u32 %v2079, 7
  %v2081 = vsub.s32 %v2078, %v2080
  %v2082 = vrot.slane %v2074, %v2081
  %v2084 = vunpack.c.l.s4 1966171168
  %v2085 = vunpack.c.0.s8 %v2084
  %v2086 = vlaneseq
  %v2087 = vshrl.u32 %v2086, 7
  %v2088 = vsub.s32 %v2085, %v2087
  %v2089 = vrot.slane %v2075, %v2088
  %v2090 = vlaneseq
  %v2091 = vshrl.u32 %v2090, 7
  %v2092 = vsub.s32 0, %v2091
  %v2093 = vrot.slane %v2082, %v2092
  %v2094 = vlaneseq
  %v2095 = vshrl.u32 %v2094, 7
  %v2096 = vsub.s32 0, %v2095
  %v2097 = vrot.slane %v2089, %v2096
  %v2100 = vadd.f32 %v1315, %v2093
  %v2101 = vadd.f32 %v1320, %v2097
  %v2102 = vtanh.pop %v2100
  %v2103 = vtanh.pop %v2101
  %v2104 = vmul.f32 %v2102, %v1553
  %v2105 = vmul.f32 %v2103, %v1553
  %v2106 = vsel %vm199, %v2104, 0.0
  %2107 = vadd.xlane.f32.xlu0 %v2106
  %v2108 = vpop.xlane.xlu0 %2107
  %v2109 = vsel %vm199, %v2105, 0.0
  %2110 = vadd.xlane.f32.xlu0 %v2109
  %v2111 = vpop.xlane.xlu0 %2110
  %v2112 = vrot.slane %v2108, 4
  %v2113 = vmax.f32 %v2108, %v2112
  %v2114 = vrot.slane %v2113, 2
  %v2115 = vmax.f32 %v2113, %v2114
  %v2116 = vrot.slane %v2115, 1
  %v2117 = vmax.f32 %v2115, %v2116
  %v2118 = vrot.slane %v2111, 4
  %v2119 = vmax.f32 %v2111, %v2118
  %v2120 = vrot.slane %v2119, 2
  %v2121 = vmax.f32 %v2119, %v2120
  %v2122 = vrot.slane %v2121, 1
  %v2123 = vmax.f32 %v2121, %v2122
  %v2124 = vsub.f32 %v2108, %v2117
  %v2125 = vsub.f32 %v2111, %v2123
  %v2126 = vmul.f32 %v2124, 1.442695
  %v2127 = vpow.pop %v2126
  %v2128 = vmul.f32 %v2125, 1.442695
  %v2129 = vpow.pop %v2128
  %v2130 = vrot.slane %v2127, 4
  %v2131 = vadd.f32 %v2127, %v2130
  %v2132 = vrot.slane %v2131, 2
  %v2133 = vadd.f32 %v2131, %v2132
  %v2134 = vrot.slane %v2133, 1
  %v2135 = vadd.f32 %v2133, %v2134
  %v2136 = vrot.slane %v2129, 4
  %v2137 = vadd.f32 %v2129, %v2136
  %v2138 = vrot.slane %v2137, 2
  %v2139 = vadd.f32 %v2137, %v2138
  %v2140 = vrot.slane %v2139, 1
  %v2141 = vadd.f32 %v2139, %v2140
  %v2142 = vrcp.pop %v2135
  %v2143 = vrcp.pop %v2141
  %v2144 = vmul.f32 %v2127, %v2142
  %v2145 = vmul.f32 %v2129, %v2143
  %v2146 = vmul.f32 %v2144, %v1240
  %v2147 = vmul.f32 %v2145, %v1241
  %v2148 = vsel %vm199, %v2146, 0.0
  %v2149 = vrot.slane %v2148, 4
  %v2150 = vadd.f32 %v2148, %v2149
  %v2151 = vrot.slane %v2150, 2
  %v2152 = vadd.f32 %v2150, %v2151
  %v2153 = vrot.slane %v2152, 1
  %v2154 = vadd.f32 %v2152, %v2153
  %v2155 = vsel %vm199, %v2147, 0.0
  %v2156 = vrot.slane %v2155, 4
  %v2157 = vadd.f32 %v2155, %v2156
  %v2158 = vrot.slane %v2157, 2
  %v2159 = vadd.f32 %v2157, %v2158
  %v2160 = vrot.slane %v2159, 1
  %v2161 = vadd.f32 %v2159, %v2160
  %v2164 = vsel %vm195, %v2161, %v2154
  %2166 = vrot.lane.b32.xlu0 %v1991, 96
  %v2167 = vpop.permute.xlu0 %2166
  %v2169 = vsel %vm199, %v2164, %v2167
  %v2171 = vsel %vm1334, %v2169, 0
  %2173 = vmatprep.subr.mxu0 0.0
  %2174 = vmatpush1.msra.mxu0 0.0
  %2175 = vmatprep.subr.mxu0 0.0
  %2176 = vmatpush1.msra.mxu0 0.0
  %2177 = vmatprep.subr.mxu0 0.0
  %2178 = vmatpush1.msra.mxu0 0.0
  %2179 = vmatprep.subr.mxu0 0.0
  %2180 = vmatpush1.msra.mxu0 0.0
  %2181 = vmatprep.subr.mxu0 0.0
  %2182 = vmatpush1.msra.mxu0 0.0
  %2183 = vmatprep.subr.mxu0 0.0
  %2184 = vmatpush1.msra.mxu0 0.0
  %2185 = vmatprep.subr.mxu0 0.0
  %2186 = vmatpush1.msra.mxu0 0.0
  %2187 = vmatprep.subr.mxu0 0.0
  %2188 = vmatpush1.msra.mxu0 0.0
  %2189 = vmatprep.subr.mxu0 0.0
  %2190 = vmatpush1.msra.mxu0 %v37
  %2191 = vmatprep.subr.mxu0 0.0
  %2192 = vmatpush1.msra.mxu0 %v36
  %2193 = vmatprep.subr.mxu0 0.0
  %2194 = vmatpush1.msra.mxu0 %v35
  %2195 = vmatprep.subr.mxu0 0.0
  %2196 = vmatpush1.msra.mxu0 %v34
  %2197 = vmatprep.subr.mxu0 0.0
  %2198 = vmatpush1.msra.mxu0 %v33
  %2199 = vmatprep.subr.mxu0 0.0
  %2200 = vmatpush1.msra.mxu0 %v32
  %2201 = vmatprep.subr.mxu0 0.0
  %2202 = vmatpush1.msra.mxu0 %v31
  %2203 = vmatprep.subr.mxu0 0.0
  %2204 = vmatpush1.msra.mxu0 %v30
  %2205 = vmatprep.subr.mxu0 0.0
  %2206 = vmatpush2.msra.mxu0 0.0
  %2207 = vmatprep.subr.mxu0 0.0
  %2208 = vmatpush2.msra.mxu0 0.0
  %2209 = vmatprep.subr.mxu0 0.0
  %2210 = vmatpush2.msra.mxu0 0.0
  %2211 = vmatprep.subr.mxu0 0.0
  %2212 = vmatpush2.msra.mxu0 0.0
  %2213 = vmatprep.subr.mxu0 0.0
  %2214 = vmatpush2.msra.mxu0 0.0
  %2215 = vmatprep.subr.mxu0 0.0
  %2216 = vmatpush2.msra.mxu0 0.0
  %2217 = vmatprep.subr.mxu0 0.0
  %2218 = vmatpush2.msra.mxu0 0.0
  %2219 = vmatprep.subr.mxu0 0.0
  %2220 = vmatpush2.msra.mxu0 0.0
  %2221 = vmatprep.subr.mxu0 0.0
  %2222 = vmatpush2.msra.mxu0 0.0
  %2223 = vmatprep.subr.mxu0 0.0
  %2224 = vmatpush2.msra.mxu0 0.0
  %2225 = vmatprep.subr.mxu0 0.0
  %2226 = vmatpush2.msra.mxu0 0.0
  %2227 = vmatprep.subr.mxu0 0.0
  %2228 = vmatpush2.msra.mxu0 0.0
  %2229 = vmatprep.subr.mxu0 0.0
  %2230 = vmatpush2.msra.mxu0 0.0
  %2231 = vmatprep.subr.mxu0 0.0
  %2232 = vmatpush2.msra.mxu0 0.0
  %2233 = vmatprep.subr.mxu0 0.0
  %2234 = vmatpush2.msra.mxu0 0.0
  %2235 = vmatprep.subr.mxu0 0.0
  %2236 = vmatpush2.msra.mxu0 0.0
  %2237 = vmatprep.mubr.f32.mxu0 0.0
  %2238 = vmatmul.mubr.f32.gmra.mxu0 %v2171
  %v2239 = vpop.f32.mrf.mxu0
  %v2240 = vadd.f32 %v1333, %v2239
  %v2241 = vpop.f32.mrf.mxu0
  %2242 = vdwg.mxu0
  %v2243 = vxor.u32 %v2240, 2147483648
  %v2244 = vmul.f32 %v2243, 1.442695
  %v2245 = vpow.pop %v2244
  %v2246 = vadd.f32 %v2245, 1.0
  %v2247 = vrcp.pop %v2246
  %v2248 = vmul.f32 1.0, %v2247
  %v2249 = vtanh.pop %v2240
  %v2250 = vmul.f32 %v2248, %v1985
  %2252 = vrot.lane.b32.xlu0 %v2249, 32
  %v2253 = vpop.permute.xlu0 %2252
  %v2255 = vmul.f32 %v2248, %v2253
  %2257 = vrot.lane.b32.xlu0 %v2255, 32
  %v2258 = vpop.permute.xlu0 %2257
  %v2260 = vadd.f32 %v2250, %v2258
  %v2261 = vtanh.pop %v2260
  %2263 = vrot.lane.b32.xlu0 %v2261, 32
  %v2264 = vpop.permute.xlu0 %2263
  %v2266 = vmul.f32 %v2248, %v2264
  %2268 = vrot.lane.b32.xlu0 %v2266, 64
  %v2269 = vpop.permute.xlu0 %2268
  %v2270 = vsel %vm199, %v2269, 0
  %2272 = vmatprep.subr.mxu0 0.0
  %2273 = vmatpush1.msra.mxu0 0.0
  %2274 = vmatprep.subr.mxu0 0.0
  %2275 = vmatpush1.msra.mxu0 0.0
  %2276 = vmatprep.subr.mxu0 0.0
  %2277 = vmatpush1.msra.mxu0 0.0
  %2278 = vmatprep.subr.mxu0 0.0
  %2279 = vmatpush1.msra.mxu0 0.0
  %2280 = vmatprep.subr.mxu0 0.0
  %2281 = vmatpush1.msra.mxu0 0.0
  %2282 = vmatprep.subr.mxu0 0.0
  %2283 = vmatpush1.msra.mxu0 0.0
  %2284 = vmatprep.subr.mxu0 0.0
  %2285 = vmatpush1.msra.mxu0 0.0
  %2286 = vmatprep.subr.mxu0 0.0
  %2287 = vmatpush1.msra.mxu0 0.0
  %2288 = vmatprep.subr.mxu0 0.0
  %2289 = vmatpush1.msra.mxu0 0.0
  %2290 = vmatprep.subr.mxu0 0.0
  %2291 = vmatpush1.msra.mxu0 0.0
  %2292 = vmatprep.subr.mxu0 0.0
  %2293 = vmatpush1.msra.mxu0 0.0
  %2294 = vmatprep.subr.mxu0 0.0
  %2295 = vmatpush1.msra.mxu0 0.0
  %2296 = vmatprep.subr.mxu0 0.0
  %2297 = vmatpush1.msra.mxu0 %v46
  %2298 = vmatprep.subr.mxu0 0.0
  %2299 = vmatpush1.msra.mxu0 %v45
  %2300 = vmatprep.subr.mxu0 0.0
  %2301 = vmatpush1.msra.mxu0 %v44
  %2302 = vmatprep.subr.mxu0 0.0
  %2303 = vmatpush1.msra.mxu0 %v43
  %2304 = vmatprep.subr.mxu0 0.0
  %2305 = vmatpush2.msra.mxu0 0.0
  %2306 = vmatprep.subr.mxu0 0.0
  %2307 = vmatpush2.msra.mxu0 0.0
  %2308 = vmatprep.subr.mxu0 0.0
  %2309 = vmatpush2.msra.mxu0 0.0
  %2310 = vmatprep.subr.mxu0 0.0
  %2311 = vmatpush2.msra.mxu0 0.0
  %2312 = vmatprep.subr.mxu0 0.0
  %2313 = vmatpush2.msra.mxu0 0.0
  %2314 = vmatprep.subr.mxu0 0.0
  %2315 = vmatpush2.msra.mxu0 0.0
  %2316 = vmatprep.subr.mxu0 0.0
  %2317 = vmatpush2.msra.mxu0 0.0
  %2318 = vmatprep.subr.mxu0 0.0
  %2319 = vmatpush2.msra.mxu0 0.0
  %2320 = vmatprep.subr.mxu0 0.0
  %2321 = vmatpush2.msra.mxu0 0.0
  %2322 = vmatprep.subr.mxu0 0.0
  %2323 = vmatpush2.msra.mxu0 0.0
  %2324 = vmatprep.subr.mxu0 0.0
  %2325 = vmatpush2.msra.mxu0 0.0
  %2326 = vmatprep.subr.mxu0 0.0
  %2327 = vmatpush2.msra.mxu0 0.0
  %2328 = vmatprep.subr.mxu0 0.0
  %2329 = vmatpush2.msra.mxu0 0.0
  %2330 = vmatprep.subr.mxu0 0.0
  %2331 = vmatpush2.msra.mxu0 0.0
  %2332 = vmatprep.subr.mxu0 0.0
  %2333 = vmatpush2.msra.mxu0 0.0
  %2334 = vmatprep.subr.mxu0 0.0
  %2335 = vmatpush2.msra.mxu0 0.0
  %2336 = vmatprep.mubr.f32.mxu0 0.0
  %2337 = vmatmul.mubr.f32.gmra.mxu0 %v2270
  %v2338 = vpop.f32.mrf.mxu0
  %v2339 = vadd.f32 0.0, %v2338
  %v2340 = vpop.f32.mrf.mxu0
  %2341 = vdwg.mxu0
  %v2344 = vunpack.c.l.s4 1966171168
  %v2345 = vunpack.c.0.s8 %v2344
  %v2346 = vlaneseq
  %v2347 = vshrl.u32 %v2346, 7
  %v2348 = vsub.s32 %v2345, %v2347
  %v2349 = vrot.slane %v2339, %v2348
  %v2350 = vcombine.high %v2349, %v2349
  %v2352 = vunpack.c.l.s4 1966171168
  %v2353 = vunpack.c.0.s8 %v2352
  %v2354 = vlaneseq
  %v2355 = vshrl.u32 %v2354, 7
  %v2356 = vsub.s32 %v2353, %v2355
  %v2357 = vrot.slane %v2349, %v2356
  %v2359 = vunpack.c.l.s4 1966171168
  %v2360 = vunpack.c.0.s8 %v2359
  %v2361 = vlaneseq
  %v2362 = vshrl.u32 %v2361, 7
  %v2363 = vsub.s32 %v2360, %v2362
  %v2364 = vrot.slane %v2350, %v2363
  %v2365 = vlaneseq
  %v2366 = vshrl.u32 %v2365, 7
  %v2367 = vsub.s32 0, %v2366
  %v2368 = vrot.slane %v2357, %v2367
  %v2369 = vlaneseq
  %v2370 = vshrl.u32 %v2369, 7
  %v2371 = vsub.s32 0, %v2370
  %v2372 = vrot.slane %v2364, %v2371
  %v2375 = vadd.f32 %v1315, %v2368
  %v2376 = vadd.f32 %v1320, %v2372
  %v2377 = vtanh.pop %v2375
  %v2378 = vtanh.pop %v2376
  %v2379 = vmul.f32 %v2377, %v1553
  %v2380 = vmul.f32 %v2378, %v1553
  %v2381 = vsel %vm199, %v2379, 0.0
  %2382 = vadd.xlane.f32.xlu0 %v2381
  %v2383 = vpop.xlane.xlu0 %2382
  %v2384 = vsel %vm199, %v2380, 0.0
  %2385 = vadd.xlane.f32.xlu0 %v2384
  %v2386 = vpop.xlane.xlu0 %2385
  %v2387 = vrot.slane %v2383, 4
  %v2388 = vmax.f32 %v2383, %v2387
  %v2389 = vrot.slane %v2388, 2
  %v2390 = vmax.f32 %v2388, %v2389
  %v2391 = vrot.slane %v2390, 1
  %v2392 = vmax.f32 %v2390, %v2391
  %v2393 = vrot.slane %v2386, 4
  %v2394 = vmax.f32 %v2386, %v2393
  %v2395 = vrot.slane %v2394, 2
  %v2396 = vmax.f32 %v2394, %v2395
  %v2397 = vrot.slane %v2396, 1
  %v2398 = vmax.f32 %v2396, %v2397
  %v2399 = vsub.f32 %v2383, %v2392
  %v2400 = vsub.f32 %v2386, %v2398
  %v2401 = vmul.f32 %v2399, 1.442695
  %v2402 = vpow.pop %v2401
  %v2403 = vmul.f32 %v2400, 1.442695
  %v2404 = vpow.pop %v2403
  %v2405 = vrot.slane %v2402, 4
  %v2406 = vadd.f32 %v2402, %v2405
  %v2407 = vrot.slane %v2406, 2
  %v2408 = vadd.f32 %v2406, %v2407
  %v2409 = vrot.slane %v2408, 1
  %v2410 = vadd.f32 %v2408, %v2409
  %v2411 = vrot.slane %v2404, 4
  %v2412 = vadd.f32 %v2404, %v2411
  %v2413 = vrot.slane %v2412, 2
  %v2414 = vadd.f32 %v2412, %v2413
  %v2415 = vrot.slane %v2414, 1
  %v2416 = vadd.f32 %v2414, %v2415
  %v2417 = vrcp.pop %v2410
  %v2418 = vrcp.pop %v2416
  %v2419 = vmul.f32 %v2402, %v2417
  %v2420 = vmul.f32 %v2404, %v2418
  %v2421 = vmul.f32 %v2419, %v1240
  %v2422 = vmul.f32 %v2420, %v1241
  %v2423 = vsel %vm199, %v2421, 0.0
  %v2424 = vrot.slane %v2423, 4
  %v2425 = vadd.f32 %v2423, %v2424
  %v2426 = vrot.slane %v2425, 2
  %v2427 = vadd.f32 %v2425, %v2426
  %v2428 = vrot.slane %v2427, 1
  %v2429 = vadd.f32 %v2427, %v2428
  %v2430 = vsel %vm199, %v2422, 0.0
  %v2431 = vrot.slane %v2430, 4
  %v2432 = vadd.f32 %v2430, %v2431
  %v2433 = vrot.slane %v2432, 2
  %v2434 = vadd.f32 %v2432, %v2433
  %v2435 = vrot.slane %v2434, 1
  %v2436 = vadd.f32 %v2434, %v2435
  %v2439 = vsel %vm195, %v2436, %v2429
  %2441 = vrot.lane.b32.xlu0 %v2266, 96
  %v2442 = vpop.permute.xlu0 %2441
  %v2444 = vsel %vm199, %v2439, %v2442
  %v2446 = vsel %vm1334, %v2444, 0
  %2448 = vmatprep.subr.mxu0 0.0
  %2449 = vmatpush1.msra.mxu0 0.0
  %2450 = vmatprep.subr.mxu0 0.0
  %2451 = vmatpush1.msra.mxu0 0.0
  %2452 = vmatprep.subr.mxu0 0.0
  %2453 = vmatpush1.msra.mxu0 0.0
  %2454 = vmatprep.subr.mxu0 0.0
  %2455 = vmatpush1.msra.mxu0 0.0
  %2456 = vmatprep.subr.mxu0 0.0
  %2457 = vmatpush1.msra.mxu0 0.0
  %2458 = vmatprep.subr.mxu0 0.0
  %2459 = vmatpush1.msra.mxu0 0.0
  %2460 = vmatprep.subr.mxu0 0.0
  %2461 = vmatpush1.msra.mxu0 0.0
  %2462 = vmatprep.subr.mxu0 0.0
  %2463 = vmatpush1.msra.mxu0 0.0
  %2464 = vmatprep.subr.mxu0 0.0
  %2465 = vmatpush1.msra.mxu0 %v37
  %2466 = vmatprep.subr.mxu0 0.0
  %2467 = vmatpush1.msra.mxu0 %v36
  %2468 = vmatprep.subr.mxu0 0.0
  %2469 = vmatpush1.msra.mxu0 %v35
  %2470 = vmatprep.subr.mxu0 0.0
  %2471 = vmatpush1.msra.mxu0 %v34
  %2472 = vmatprep.subr.mxu0 0.0
  %2473 = vmatpush1.msra.mxu0 %v33
  %2474 = vmatprep.subr.mxu0 0.0
  %2475 = vmatpush1.msra.mxu0 %v32
  %2476 = vmatprep.subr.mxu0 0.0
  %2477 = vmatpush1.msra.mxu0 %v31
  %2478 = vmatprep.subr.mxu0 0.0
  %2479 = vmatpush1.msra.mxu0 %v30
  %2480 = vmatprep.subr.mxu0 0.0
  %2481 = vmatpush2.msra.mxu0 0.0
  %2482 = vmatprep.subr.mxu0 0.0
  %2483 = vmatpush2.msra.mxu0 0.0
  %2484 = vmatprep.subr.mxu0 0.0
  %2485 = vmatpush2.msra.mxu0 0.0
  %2486 = vmatprep.subr.mxu0 0.0
  %2487 = vmatpush2.msra.mxu0 0.0
  %2488 = vmatprep.subr.mxu0 0.0
  %2489 = vmatpush2.msra.mxu0 0.0
  %2490 = vmatprep.subr.mxu0 0.0
  %2491 = vmatpush2.msra.mxu0 0.0
  %2492 = vmatprep.subr.mxu0 0.0
  %2493 = vmatpush2.msra.mxu0 0.0
  %2494 = vmatprep.subr.mxu0 0.0
  %2495 = vmatpush2.msra.mxu0 0.0
  %2496 = vmatprep.subr.mxu0 0.0
  %2497 = vmatpush2.msra.mxu0 0.0
  %2498 = vmatprep.subr.mxu0 0.0
  %2499 = vmatpush2.msra.mxu0 0.0
  %2500 = vmatprep.subr.mxu0 0.0
  %2501 = vmatpush2.msra.mxu0 0.0
  %2502 = vmatprep.subr.mxu0 0.0
  %2503 = vmatpush2.msra.mxu0 0.0
  %2504 = vmatprep.subr.mxu0 0.0
  %2505 = vmatpush2.msra.mxu0 0.0
  %2506 = vmatprep.subr.mxu0 0.0
  %2507 = vmatpush2.msra.mxu0 0.0
  %2508 = vmatprep.subr.mxu0 0.0
  %2509 = vmatpush2.msra.mxu0 0.0
  %2510 = vmatprep.subr.mxu0 0.0
  %2511 = vmatpush2.msra.mxu0 0.0
  %2512 = vmatprep.mubr.f32.mxu0 0.0
  %2513 = vmatmul.mubr.f32.gmra.mxu0 %v2446
  %v2514 = vpop.f32.mrf.mxu0
  %v2515 = vadd.f32 %v1333, %v2514
  %v2516 = vpop.f32.mrf.mxu0
  %2517 = vdwg.mxu0
  %v2518 = vxor.u32 %v2515, 2147483648
  %v2519 = vmul.f32 %v2518, 1.442695
  %v2520 = vpow.pop %v2519
  %v2521 = vadd.f32 %v2520, 1.0
  %v2522 = vrcp.pop %v2521
  %v2523 = vmul.f32 1.0, %v2522
  %v2524 = vtanh.pop %v2515
  %v2525 = vmul.f32 %v2523, %v2260
  %2527 = vrot.lane.b32.xlu0 %v2524, 32
  %v2528 = vpop.permute.xlu0 %2527
  %v2530 = vmul.f32 %v2523, %v2528
  %2532 = vrot.lane.b32.xlu0 %v2530, 32
  %v2533 = vpop.permute.xlu0 %2532
  %v2535 = vadd.f32 %v2525, %v2533
  %v2536 = vtanh.pop %v2535
  %2538 = vrot.lane.b32.xlu0 %v2536, 32
  %v2539 = vpop.permute.xlu0 %2538
  %v2541 = vmul.f32 %v2523, %v2539
  %2543 = vrot.lane.b32.xlu0 %v2541, 64
  %v2544 = vpop.permute.xlu0 %2543
  %v2545 = vsel %vm199, %v2544, 0
  %2547 = vmatprep.subr.mxu0 0.0
  %2548 = vmatpush1.msra.mxu0 0.0
  %2549 = vmatprep.subr.mxu0 0.0
  %2550 = vmatpush1.msra.mxu0 0.0
  %2551 = vmatprep.subr.mxu0 0.0
  %2552 = vmatpush1.msra.mxu0 0.0
  %2553 = vmatprep.subr.mxu0 0.0
  %2554 = vmatpush1.msra.mxu0 0.0
  %2555 = vmatprep.subr.mxu0 0.0
  %2556 = vmatpush1.msra.mxu0 0.0
  %2557 = vmatprep.subr.mxu0 0.0
  %2558 = vmatpush1.msra.mxu0 0.0
  %2559 = vmatprep.subr.mxu0 0.0
  %2560 = vmatpush1.msra.mxu0 0.0
  %2561 = vmatprep.subr.mxu0 0.0
  %2562 = vmatpush1.msra.mxu0 0.0
  %2563 = vmatprep.subr.mxu0 0.0
  %2564 = vmatpush1.msra.mxu0 0.0
  %2565 = vmatprep.subr.mxu0 0.0
  %2566 = vmatpush1.msra.mxu0 0.0
  %2567 = vmatprep.subr.mxu0 0.0
  %2568 = vmatpush1.msra.mxu0 0.0
  %2569 = vmatprep.subr.mxu0 0.0
  %2570 = vmatpush1.msra.mxu0 0.0
  %2571 = vmatprep.subr.mxu0 0.0
  %2572 = vmatpush1.msra.mxu0 %v46
  %2573 = vmatprep.subr.mxu0 0.0
  %2574 = vmatpush1.msra.mxu0 %v45
  %2575 = vmatprep.subr.mxu0 0.0
  %2576 = vmatpush1.msra.mxu0 %v44
  %2577 = vmatprep.subr.mxu0 0.0
  %2578 = vmatpush1.msra.mxu0 %v43
  %2579 = vmatprep.subr.mxu0 0.0
  %2580 = vmatpush2.msra.mxu0 0.0
  %2581 = vmatprep.subr.mxu0 0.0
  %2582 = vmatpush2.msra.mxu0 0.0
  %2583 = vmatprep.subr.mxu0 0.0
  %2584 = vmatpush2.msra.mxu0 0.0
  %2585 = vmatprep.subr.mxu0 0.0
  %2586 = vmatpush2.msra.mxu0 0.0
  %2587 = vmatprep.subr.mxu0 0.0
  %2588 = vmatpush2.msra.mxu0 0.0
  %2589 = vmatprep.subr.mxu0 0.0
  %2590 = vmatpush2.msra.mxu0 0.0
  %2591 = vmatprep.subr.mxu0 0.0
  %2592 = vmatpush2.msra.mxu0 0.0
  %2593 = vmatprep.subr.mxu0 0.0
  %2594 = vmatpush2.msra.mxu0 0.0
  %2595 = vmatprep.subr.mxu0 0.0
  %2596 = vmatpush2.msra.mxu0 0.0
  %2597 = vmatprep.subr.mxu0 0.0
  %2598 = vmatpush2.msra.mxu0 0.0
  %2599 = vmatprep.subr.mxu0 0.0
  %2600 = vmatpush2.msra.mxu0 0.0
  %2601 = vmatprep.subr.mxu0 0.0
  %2602 = vmatpush2.msra.mxu0 0.0
  %2603 = vmatprep.subr.mxu0 0.0
  %2604 = vmatpush2.msra.mxu0 0.0
  %2605 = vmatprep.subr.mxu0 0.0
  %2606 = vmatpush2.msra.mxu0 0.0
  %2607 = vmatprep.subr.mxu0 0.0
  %2608 = vmatpush2.msra.mxu0 0.0
  %2609 = vmatprep.subr.mxu0 0.0
  %2610 = vmatpush2.msra.mxu0 0.0
  %2611 = vmatprep.mubr.f32.mxu0 0.0
  %2612 = vmatmul.mubr.f32.gmra.mxu0 %v2545
  %v2613 = vpop.f32.mrf.mxu0
  %v2614 = vadd.f32 0.0, %v2613
  %v2615 = vpop.f32.mrf.mxu0
  %2616 = vdwg.mxu0
  %v2619 = vunpack.c.l.s4 1966171168
  %v2620 = vunpack.c.0.s8 %v2619
  %v2621 = vlaneseq
  %v2622 = vshrl.u32 %v2621, 7
  %v2623 = vsub.s32 %v2620, %v2622
  %v2624 = vrot.slane %v2614, %v2623
  %v2625 = vcombine.high %v2624, %v2624
  %v2627 = vunpack.c.l.s4 1966171168
  %v2628 = vunpack.c.0.s8 %v2627
  %v2629 = vlaneseq
  %v2630 = vshrl.u32 %v2629, 7
  %v2631 = vsub.s32 %v2628, %v2630
  %v2632 = vrot.slane %v2624, %v2631
  %v2634 = vunpack.c.l.s4 1966171168
  %v2635 = vunpack.c.0.s8 %v2634
  %v2636 = vlaneseq
  %v2637 = vshrl.u32 %v2636, 7
  %v2638 = vsub.s32 %v2635, %v2637
  %v2639 = vrot.slane %v2625, %v2638
  %v2640 = vlaneseq
  %v2641 = vshrl.u32 %v2640, 7
  %v2642 = vsub.s32 0, %v2641
  %v2643 = vrot.slane %v2632, %v2642
  %v2644 = vlaneseq
  %v2645 = vshrl.u32 %v2644, 7
  %v2646 = vsub.s32 0, %v2645
  %v2647 = vrot.slane %v2639, %v2646
  %v2650 = vadd.f32 %v1315, %v2643
  %v2651 = vadd.f32 %v1320, %v2647
  %v2652 = vtanh.pop %v2650
  %v2653 = vtanh.pop %v2651
  %v2654 = vmul.f32 %v2652, %v1553
  %v2655 = vmul.f32 %v2653, %v1553
  %v2656 = vsel %vm199, %v2654, 0.0
  %2657 = vadd.xlane.f32.xlu0 %v2656
  %v2658 = vpop.xlane.xlu0 %2657
  %v2659 = vsel %vm199, %v2655, 0.0
  %2660 = vadd.xlane.f32.xlu0 %v2659
  %v2661 = vpop.xlane.xlu0 %2660
  %v2662 = vrot.slane %v2658, 4
  %v2663 = vmax.f32 %v2658, %v2662
  %v2664 = vrot.slane %v2663, 2
  %v2665 = vmax.f32 %v2663, %v2664
  %v2666 = vrot.slane %v2665, 1
  %v2667 = vmax.f32 %v2665, %v2666
  %v2668 = vrot.slane %v2661, 4
  %v2669 = vmax.f32 %v2661, %v2668
  %v2670 = vrot.slane %v2669, 2
  %v2671 = vmax.f32 %v2669, %v2670
  %v2672 = vrot.slane %v2671, 1
  %v2673 = vmax.f32 %v2671, %v2672
  %v2674 = vsub.f32 %v2658, %v2667
  %v2675 = vsub.f32 %v2661, %v2673
  %v2676 = vmul.f32 %v2674, 1.442695
  %v2677 = vpow.pop %v2676
  %v2678 = vmul.f32 %v2675, 1.442695
  %v2679 = vpow.pop %v2678
  %v2680 = vrot.slane %v2677, 4
  %v2681 = vadd.f32 %v2677, %v2680
  %v2682 = vrot.slane %v2681, 2
  %v2683 = vadd.f32 %v2681, %v2682
  %v2684 = vrot.slane %v2683, 1
  %v2685 = vadd.f32 %v2683, %v2684
  %v2686 = vrot.slane %v2679, 4
  %v2687 = vadd.f32 %v2679, %v2686
  %v2688 = vrot.slane %v2687, 2
  %v2689 = vadd.f32 %v2687, %v2688
  %v2690 = vrot.slane %v2689, 1
  %v2691 = vadd.f32 %v2689, %v2690
  %v2692 = vrcp.pop %v2685
  %v2693 = vrcp.pop %v2691
  %v2694 = vmul.f32 %v2677, %v2692
  %v2695 = vmul.f32 %v2679, %v2693
  %v2696 = vmul.f32 %v2694, %v1240
  %v2697 = vmul.f32 %v2695, %v1241
  %v2698 = vsel %vm199, %v2696, 0.0
  %v2699 = vrot.slane %v2698, 4
  %v2700 = vadd.f32 %v2698, %v2699
  %v2701 = vrot.slane %v2700, 2
  %v2702 = vadd.f32 %v2700, %v2701
  %v2703 = vrot.slane %v2702, 1
  %v2704 = vadd.f32 %v2702, %v2703
  %v2705 = vsel %vm199, %v2697, 0.0
  %v2706 = vrot.slane %v2705, 4
  %v2707 = vadd.f32 %v2705, %v2706
  %v2708 = vrot.slane %v2707, 2
  %v2709 = vadd.f32 %v2707, %v2708
  %v2710 = vrot.slane %v2709, 1
  %v2711 = vadd.f32 %v2709, %v2710
  %v2714 = vsel %vm195, %v2711, %v2704
  %2716 = vrot.lane.b32.xlu0 %v2541, 96
  %v2717 = vpop.permute.xlu0 %2716
  %v2719 = vsel %vm199, %v2714, %v2717
  %v2721 = vsel %vm1334, %v2719, 0
  %2723 = vmatprep.subr.mxu0 0.0
  %2724 = vmatpush1.msra.mxu0 0.0
  %2725 = vmatprep.subr.mxu0 0.0
  %2726 = vmatpush1.msra.mxu0 0.0
  %2727 = vmatprep.subr.mxu0 0.0
  %2728 = vmatpush1.msra.mxu0 0.0
  %2729 = vmatprep.subr.mxu0 0.0
  %2730 = vmatpush1.msra.mxu0 0.0
  %2731 = vmatprep.subr.mxu0 0.0
  %2732 = vmatpush1.msra.mxu0 0.0
  %2733 = vmatprep.subr.mxu0 0.0
  %2734 = vmatpush1.msra.mxu0 0.0
  %2735 = vmatprep.subr.mxu0 0.0
  %2736 = vmatpush1.msra.mxu0 0.0
  %2737 = vmatprep.subr.mxu0 0.0
  %2738 = vmatpush1.msra.mxu0 0.0
  %2739 = vmatprep.subr.mxu0 0.0
  %2740 = vmatpush1.msra.mxu0 %v37
  %2741 = vmatprep.subr.mxu0 0.0
  %2742 = vmatpush1.msra.mxu0 %v36
  %2743 = vmatprep.subr.mxu0 0.0
  %2744 = vmatpush1.msra.mxu0 %v35
  %2745 = vmatprep.subr.mxu0 0.0
  %2746 = vmatpush1.msra.mxu0 %v34
  %2747 = vmatprep.subr.mxu0 0.0
  %2748 = vmatpush1.msra.mxu0 %v33
  %2749 = vmatprep.subr.mxu0 0.0
  %2750 = vmatpush1.msra.mxu0 %v32
  %2751 = vmatprep.subr.mxu0 0.0
  %2752 = vmatpush1.msra.mxu0 %v31
  %2753 = vmatprep.subr.mxu0 0.0
  %2754 = vmatpush1.msra.mxu0 %v30
  %2755 = vmatprep.subr.mxu0 0.0
  %2756 = vmatpush2.msra.mxu0 0.0
  %2757 = vmatprep.subr.mxu0 0.0
  %2758 = vmatpush2.msra.mxu0 0.0
  %2759 = vmatprep.subr.mxu0 0.0
  %2760 = vmatpush2.msra.mxu0 0.0
  %2761 = vmatprep.subr.mxu0 0.0
  %2762 = vmatpush2.msra.mxu0 0.0
  %2763 = vmatprep.subr.mxu0 0.0
  %2764 = vmatpush2.msra.mxu0 0.0
  %2765 = vmatprep.subr.mxu0 0.0
  %2766 = vmatpush2.msra.mxu0 0.0
  %2767 = vmatprep.subr.mxu0 0.0
  %2768 = vmatpush2.msra.mxu0 0.0
  %2769 = vmatprep.subr.mxu0 0.0
  %2770 = vmatpush2.msra.mxu0 0.0
  %2771 = vmatprep.subr.mxu0 0.0
  %2772 = vmatpush2.msra.mxu0 0.0
  %2773 = vmatprep.subr.mxu0 0.0
  %2774 = vmatpush2.msra.mxu0 0.0
  %2775 = vmatprep.subr.mxu0 0.0
  %2776 = vmatpush2.msra.mxu0 0.0
  %2777 = vmatprep.subr.mxu0 0.0
  %2778 = vmatpush2.msra.mxu0 0.0
  %2779 = vmatprep.subr.mxu0 0.0
  %2780 = vmatpush2.msra.mxu0 0.0
  %2781 = vmatprep.subr.mxu0 0.0
  %2782 = vmatpush2.msra.mxu0 0.0
  %2783 = vmatprep.subr.mxu0 0.0
  %2784 = vmatpush2.msra.mxu0 0.0
  %2785 = vmatprep.subr.mxu0 0.0
  %2786 = vmatpush2.msra.mxu0 0.0
  %2787 = vmatprep.mubr.f32.mxu0 0.0
  %2788 = vmatmul.mubr.f32.gmra.mxu0 %v2721
  %v2789 = vpop.f32.mrf.mxu0
  %v2790 = vadd.f32 %v1333, %v2789
  %v2791 = vpop.f32.mrf.mxu0
  %2792 = vdwg.mxu0
  %v2793 = vxor.u32 %v2790, 2147483648
  %v2794 = vmul.f32 %v2793, 1.442695
  %v2795 = vpow.pop %v2794
  %v2796 = vadd.f32 %v2795, 1.0
  %v2797 = vrcp.pop %v2796
  %v2798 = vmul.f32 1.0, %v2797
  %v2799 = vtanh.pop %v2790
  %v2800 = vmul.f32 %v2798, %v2535
  %2802 = vrot.lane.b32.xlu0 %v2799, 32
  %v2803 = vpop.permute.xlu0 %2802
  %v2805 = vmul.f32 %v2798, %v2803
  %2807 = vrot.lane.b32.xlu0 %v2805, 32
  %v2808 = vpop.permute.xlu0 %2807
  %v2810 = vadd.f32 %v2800, %v2808
  %v2811 = vtanh.pop %v2810
  %2813 = vrot.lane.b32.xlu0 %v2811, 32
  %v2814 = vpop.permute.xlu0 %2813
  %v2816 = vmul.f32 %v2798, %v2814
  %2818 = vrot.lane.b32.xlu0 %v2816, 64
  %v2819 = vpop.permute.xlu0 %2818
  %v2820 = vsel %vm199, %v2819, 0
  %2822 = vmatprep.subr.mxu0 0.0
  %2823 = vmatpush1.msra.mxu0 0.0
  %2824 = vmatprep.subr.mxu0 0.0
  %2825 = vmatpush1.msra.mxu0 0.0
  %2826 = vmatprep.subr.mxu0 0.0
  %2827 = vmatpush1.msra.mxu0 0.0
  %2828 = vmatprep.subr.mxu0 0.0
  %2829 = vmatpush1.msra.mxu0 0.0
  %2830 = vmatprep.subr.mxu0 0.0
  %2831 = vmatpush1.msra.mxu0 0.0
  %2832 = vmatprep.subr.mxu0 0.0
  %2833 = vmatpush1.msra.mxu0 0.0
  %2834 = vmatprep.subr.mxu0 0.0
  %2835 = vmatpush1.msra.mxu0 0.0
  %2836 = vmatprep.subr.mxu0 0.0
  %2837 = vmatpush1.msra.mxu0 0.0
  %2838 = vmatprep.subr.mxu0 0.0
  %2839 = vmatpush1.msra.mxu0 0.0
  %2840 = vmatprep.subr.mxu0 0.0
  %2841 = vmatpush1.msra.mxu0 0.0
  %2842 = vmatprep.subr.mxu0 0.0
  %2843 = vmatpush1.msra.mxu0 0.0
  %2844 = vmatprep.subr.mxu0 0.0
  %2845 = vmatpush1.msra.mxu0 0.0
  %2846 = vmatprep.subr.mxu0 0.0
  %2847 = vmatpush1.msra.mxu0 %v46
  %2848 = vmatprep.subr.mxu0 0.0
  %2849 = vmatpush1.msra.mxu0 %v45
  %2850 = vmatprep.subr.mxu0 0.0
  %2851 = vmatpush1.msra.mxu0 %v44
  %2852 = vmatprep.subr.mxu0 0.0
  %2853 = vmatpush1.msra.mxu0 %v43
  %2854 = vmatprep.subr.mxu0 0.0
  %2855 = vmatpush2.msra.mxu0 0.0
  %2856 = vmatprep.subr.mxu0 0.0
  %2857 = vmatpush2.msra.mxu0 0.0
  %2858 = vmatprep.subr.mxu0 0.0
  %2859 = vmatpush2.msra.mxu0 0.0
  %2860 = vmatprep.subr.mxu0 0.0
  %2861 = vmatpush2.msra.mxu0 0.0
  %2862 = vmatprep.subr.mxu0 0.0
  %2863 = vmatpush2.msra.mxu0 0.0
  %2864 = vmatprep.subr.mxu0 0.0
  %2865 = vmatpush2.msra.mxu0 0.0
  %2866 = vmatprep.subr.mxu0 0.0
  %2867 = vmatpush2.msra.mxu0 0.0
  %2868 = vmatprep.subr.mxu0 0.0
  %2869 = vmatpush2.msra.mxu0 0.0
  %2870 = vmatprep.subr.mxu0 0.0
  %2871 = vmatpush2.msra.mxu0 0.0
  %2872 = vmatprep.subr.mxu0 0.0
  %2873 = vmatpush2.msra.mxu0 0.0
  %2874 = vmatprep.subr.mxu0 0.0
  %2875 = vmatpush2.msra.mxu0 0.0
  %2876 = vmatprep.subr.mxu0 0.0
  %2877 = vmatpush2.msra.mxu0 0.0
  %2878 = vmatprep.subr.mxu0 0.0
  %2879 = vmatpush2.msra.mxu0 0.0
  %2880 = vmatprep.subr.mxu0 0.0
  %2881 = vmatpush2.msra.mxu0 0.0
  %2882 = vmatprep.subr.mxu0 0.0
  %2883 = vmatpush2.msra.mxu0 0.0
  %2884 = vmatprep.subr.mxu0 0.0
  %2885 = vmatpush2.msra.mxu0 0.0
  %2886 = vmatprep.mubr.f32.mxu0 0.0
  %2887 = vmatmul.mubr.f32.gmra.mxu0 %v2820
  %v2888 = vpop.f32.mrf.mxu0
  %v2889 = vadd.f32 0.0, %v2888
  %v2890 = vpop.f32.mrf.mxu0
  %2891 = vdwg.mxu0
  %v2894 = vunpack.c.l.s4 1966171168
  %v2895 = vunpack.c.0.s8 %v2894
  %v2896 = vlaneseq
  %v2897 = vshrl.u32 %v2896, 7
  %v2898 = vsub.s32 %v2895, %v2897
  %v2899 = vrot.slane %v2889, %v2898
  %v2900 = vcombine.high %v2899, %v2899
  %v2902 = vunpack.c.l.s4 1966171168
  %v2903 = vunpack.c.0.s8 %v2902
  %v2904 = vlaneseq
  %v2905 = vshrl.u32 %v2904, 7
  %v2906 = vsub.s32 %v2903, %v2905
  %v2907 = vrot.slane %v2899, %v2906
  %v2909 = vunpack.c.l.s4 1966171168
  %v2910 = vunpack.c.0.s8 %v2909
  %v2911 = vlaneseq
  %v2912 = vshrl.u32 %v2911, 7
  %v2913 = vsub.s32 %v2910, %v2912
  %v2914 = vrot.slane %v2900, %v2913
  %v2915 = vlaneseq
  %v2916 = vshrl.u32 %v2915, 7
  %v2917 = vsub.s32 0, %v2916
  %v2918 = vrot.slane %v2907, %v2917
  %v2919 = vlaneseq
  %v2920 = vshrl.u32 %v2919, 7
  %v2921 = vsub.s32 0, %v2920
  %v2922 = vrot.slane %v2914, %v2921
  %v2925 = vadd.f32 %v1315, %v2918
  %v2926 = vadd.f32 %v1320, %v2922
  %v2927 = vtanh.pop %v2925
  %v2928 = vtanh.pop %v2926
  %v2929 = vmul.f32 %v2927, %v1553
  %v2930 = vmul.f32 %v2928, %v1553
  %v2931 = vsel %vm199, %v2929, 0.0
  %2932 = vadd.xlane.f32.xlu0 %v2931
  %v2933 = vpop.xlane.xlu0 %2932
  %v2934 = vsel %vm199, %v2930, 0.0
  %2935 = vadd.xlane.f32.xlu0 %v2934
  %v2936 = vpop.xlane.xlu0 %2935
  %v2937 = vrot.slane %v2933, 4
  %v2938 = vmax.f32 %v2933, %v2937
  %v2939 = vrot.slane %v2938, 2
  %v2940 = vmax.f32 %v2938, %v2939
  %v2941 = vrot.slane %v2940, 1
  %v2942 = vmax.f32 %v2940, %v2941
  %v2943 = vrot.slane %v2936, 4
  %v2944 = vmax.f32 %v2936, %v2943
  %v2945 = vrot.slane %v2944, 2
  %v2946 = vmax.f32 %v2944, %v2945
  %v2947 = vrot.slane %v2946, 1
  %v2948 = vmax.f32 %v2946, %v2947
  %v2949 = vsub.f32 %v2933, %v2942
  %v2950 = vsub.f32 %v2936, %v2948
  %v2951 = vmul.f32 %v2949, 1.442695
  %v2952 = vpow.pop %v2951
  %v2953 = vmul.f32 %v2950, 1.442695
  %v2954 = vpow.pop %v2953
  %v2955 = vrot.slane %v2952, 4
  %v2956 = vadd.f32 %v2952, %v2955
  %v2957 = vrot.slane %v2956, 2
  %v2958 = vadd.f32 %v2956, %v2957
  %v2959 = vrot.slane %v2958, 1
  %v2960 = vadd.f32 %v2958, %v2959
  %v2961 = vrot.slane %v2954, 4
  %v2962 = vadd.f32 %v2954, %v2961
  %v2963 = vrot.slane %v2962, 2
  %v2964 = vadd.f32 %v2962, %v2963
  %v2965 = vrot.slane %v2964, 1
  %v2966 = vadd.f32 %v2964, %v2965
  %v2967 = vrcp.pop %v2960
  %v2968 = vrcp.pop %v2966
  %v2969 = vmul.f32 %v2952, %v2967
  %v2970 = vmul.f32 %v2954, %v2968
  %v2971 = vmul.f32 %v2969, %v1240
  %v2972 = vmul.f32 %v2970, %v1241
  %v2973 = vsel %vm199, %v2971, 0.0
  %v2974 = vrot.slane %v2973, 4
  %v2975 = vadd.f32 %v2973, %v2974
  %v2976 = vrot.slane %v2975, 2
  %v2977 = vadd.f32 %v2975, %v2976
  %v2978 = vrot.slane %v2977, 1
  %v2979 = vadd.f32 %v2977, %v2978
  %v2980 = vsel %vm199, %v2972, 0.0
  %v2981 = vrot.slane %v2980, 4
  %v2982 = vadd.f32 %v2980, %v2981
  %v2983 = vrot.slane %v2982, 2
  %v2984 = vadd.f32 %v2982, %v2983
  %v2985 = vrot.slane %v2984, 1
  %v2986 = vadd.f32 %v2984, %v2985
  %v2989 = vsel %vm195, %v2986, %v2979
  %2991 = vrot.lane.b32.xlu0 %v2816, 96
  %v2992 = vpop.permute.xlu0 %2991
  %v2994 = vsel %vm199, %v2989, %v2992
  %v2996 = vsel %vm1334, %v2994, 0
  %2998 = vmatprep.subr.mxu0 0.0
  %2999 = vmatpush1.msra.mxu0 0.0
  %3000 = vmatprep.subr.mxu0 0.0
  %3001 = vmatpush1.msra.mxu0 0.0
  %3002 = vmatprep.subr.mxu0 0.0
  %3003 = vmatpush1.msra.mxu0 0.0
  %3004 = vmatprep.subr.mxu0 0.0
  %3005 = vmatpush1.msra.mxu0 0.0
  %3006 = vmatprep.subr.mxu0 0.0
  %3007 = vmatpush1.msra.mxu0 0.0
  %3008 = vmatprep.subr.mxu0 0.0
  %3009 = vmatpush1.msra.mxu0 0.0
  %3010 = vmatprep.subr.mxu0 0.0
  %3011 = vmatpush1.msra.mxu0 0.0
  %3012 = vmatprep.subr.mxu0 0.0
  %3013 = vmatpush1.msra.mxu0 0.0
  %3014 = vmatprep.subr.mxu0 0.0
  %3015 = vmatpush1.msra.mxu0 %v37
  %3016 = vmatprep.subr.mxu0 0.0
  %3017 = vmatpush1.msra.mxu0 %v36
  %3018 = vmatprep.subr.mxu0 0.0
  %3019 = vmatpush1.msra.mxu0 %v35
  %3020 = vmatprep.subr.mxu0 0.0
  %3021 = vmatpush1.msra.mxu0 %v34
  %3022 = vmatprep.subr.mxu0 0.0
  %3023 = vmatpush1.msra.mxu0 %v33
  %3024 = vmatprep.subr.mxu0 0.0
  %3025 = vmatpush1.msra.mxu0 %v32
  %3026 = vmatprep.subr.mxu0 0.0
  %3027 = vmatpush1.msra.mxu0 %v31
  %3028 = vmatprep.subr.mxu0 0.0
  %3029 = vmatpush1.msra.mxu0 %v30
  %3030 = vmatprep.subr.mxu0 0.0
  %3031 = vmatpush2.msra.mxu0 0.0
  %3032 = vmatprep.subr.mxu0 0.0
  %3033 = vmatpush2.msra.mxu0 0.0
  %3034 = vmatprep.subr.mxu0 0.0
  %3035 = vmatpush2.msra.mxu0 0.0
  %3036 = vmatprep.subr.mxu0 0.0
  %3037 = vmatpush2.msra.mxu0 0.0
  %3038 = vmatprep.subr.mxu0 0.0
  %3039 = vmatpush2.msra.mxu0 0.0
  %3040 = vmatprep.subr.mxu0 0.0
  %3041 = vmatpush2.msra.mxu0 0.0
  %3042 = vmatprep.subr.mxu0 0.0
  %3043 = vmatpush2.msra.mxu0 0.0
  %3044 = vmatprep.subr.mxu0 0.0
  %3045 = vmatpush2.msra.mxu0 0.0
  %3046 = vmatprep.subr.mxu0 0.0
  %3047 = vmatpush2.msra.mxu0 0.0
  %3048 = vmatprep.subr.mxu0 0.0
  %3049 = vmatpush2.msra.mxu0 0.0
  %3050 = vmatprep.subr.mxu0 0.0
  %3051 = vmatpush2.msra.mxu0 0.0
  %3052 = vmatprep.subr.mxu0 0.0
  %3053 = vmatpush2.msra.mxu0 0.0
  %3054 = vmatprep.subr.mxu0 0.0
  %3055 = vmatpush2.msra.mxu0 0.0
  %3056 = vmatprep.subr.mxu0 0.0
  %3057 = vmatpush2.msra.mxu0 0.0
  %3058 = vmatprep.subr.mxu0 0.0
  %3059 = vmatpush2.msra.mxu0 0.0
  %3060 = vmatprep.subr.mxu0 0.0
  %3061 = vmatpush2.msra.mxu0 0.0
  %3062 = vmatprep.mubr.f32.mxu0 0.0
  %3063 = vmatmul.mubr.f32.gmra.mxu0 %v2996
  %v3064 = vpop.f32.mrf.mxu0
  %v3065 = vadd.f32 %v1333, %v3064
  %v3066 = vpop.f32.mrf.mxu0
  %3067 = vdwg.mxu0
  %v3068 = vxor.u32 %v3065, 2147483648
  %v3069 = vmul.f32 %v3068, 1.442695
  %v3070 = vpow.pop %v3069
  %v3071 = vadd.f32 %v3070, 1.0
  %v3072 = vrcp.pop %v3071
  %v3073 = vmul.f32 1.0, %v3072
  %v3074 = vtanh.pop %v3065
  %v3075 = vmul.f32 %v3073, %v2810
  %3077 = vrot.lane.b32.xlu0 %v3074, 32
  %v3078 = vpop.permute.xlu0 %3077
  %v3080 = vmul.f32 %v3073, %v3078
  %3082 = vrot.lane.b32.xlu0 %v3080, 32
  %v3083 = vpop.permute.xlu0 %3082
  %v3085 = vadd.f32 %v3075, %v3083
  %v3086 = vtanh.pop %v3085
  %3088 = vrot.lane.b32.xlu0 %v3086, 32
  %v3089 = vpop.permute.xlu0 %3088
  %v3091 = vmul.f32 %v3073, %v3089
  %3093 = vrot.lane.b32.xlu0 %v3091, 64
  %v3094 = vpop.permute.xlu0 %3093
  %v3095 = vsel %vm199, %v3094, 0
  %3097 = vmatprep.subr.mxu0 0.0
  %3098 = vmatpush1.msra.mxu0 0.0
  %3099 = vmatprep.subr.mxu0 0.0
  %3100 = vmatpush1.msra.mxu0 0.0
  %3101 = vmatprep.subr.mxu0 0.0
  %3102 = vmatpush1.msra.mxu0 0.0
  %3103 = vmatprep.subr.mxu0 0.0
  %3104 = vmatpush1.msra.mxu0 0.0
  %3105 = vmatprep.subr.mxu0 0.0
  %3106 = vmatpush1.msra.mxu0 0.0
  %3107 = vmatprep.subr.mxu0 0.0
  %3108 = vmatpush1.msra.mxu0 0.0
  %3109 = vmatprep.subr.mxu0 0.0
  %3110 = vmatpush1.msra.mxu0 0.0
  %3111 = vmatprep.subr.mxu0 0.0
  %3112 = vmatpush1.msra.mxu0 0.0
  %3113 = vmatprep.subr.mxu0 0.0
  %3114 = vmatpush1.msra.mxu0 0.0
  %3115 = vmatprep.subr.mxu0 0.0
  %3116 = vmatpush1.msra.mxu0 0.0
  %3117 = vmatprep.subr.mxu0 0.0
  %3118 = vmatpush1.msra.mxu0 0.0
  %3119 = vmatprep.subr.mxu0 0.0
  %3120 = vmatpush1.msra.mxu0 0.0
  %3121 = vmatprep.subr.mxu0 0.0
  %3122 = vmatpush1.msra.mxu0 %v46
  %3123 = vmatprep.subr.mxu0 0.0
  %3124 = vmatpush1.msra.mxu0 %v45
  %3125 = vmatprep.subr.mxu0 0.0
  %3126 = vmatpush1.msra.mxu0 %v44
  %3127 = vmatprep.subr.mxu0 0.0
  %3128 = vmatpush1.msra.mxu0 %v43
  %3129 = vmatprep.subr.mxu0 0.0
  %3130 = vmatpush2.msra.mxu0 0.0
  %3131 = vmatprep.subr.mxu0 0.0
  %3132 = vmatpush2.msra.mxu0 0.0
  %3133 = vmatprep.subr.mxu0 0.0
  %3134 = vmatpush2.msra.mxu0 0.0
  %3135 = vmatprep.subr.mxu0 0.0
  %3136 = vmatpush2.msra.mxu0 0.0
  %3137 = vmatprep.subr.mxu0 0.0
  %3138 = vmatpush2.msra.mxu0 0.0
  %3139 = vmatprep.subr.mxu0 0.0
  %3140 = vmatpush2.msra.mxu0 0.0
  %3141 = vmatprep.subr.mxu0 0.0
  %3142 = vmatpush2.msra.mxu0 0.0
  %3143 = vmatprep.subr.mxu0 0.0
  %3144 = vmatpush2.msra.mxu0 0.0
  %3145 = vmatprep.subr.mxu0 0.0
  %3146 = vmatpush2.msra.mxu0 0.0
  %3147 = vmatprep.subr.mxu0 0.0
  %3148 = vmatpush2.msra.mxu0 0.0
  %3149 = vmatprep.subr.mxu0 0.0
  %3150 = vmatpush2.msra.mxu0 0.0
  %3151 = vmatprep.subr.mxu0 0.0
  %3152 = vmatpush2.msra.mxu0 0.0
  %3153 = vmatprep.subr.mxu0 0.0
  %3154 = vmatpush2.msra.mxu0 0.0
  %3155 = vmatprep.subr.mxu0 0.0
  %3156 = vmatpush2.msra.mxu0 0.0
  %3157 = vmatprep.subr.mxu0 0.0
  %3158 = vmatpush2.msra.mxu0 0.0
  %3159 = vmatprep.subr.mxu0 0.0
  %3160 = vmatpush2.msra.mxu0 0.0
  %3161 = vmatprep.mubr.f32.mxu0 0.0
  %3162 = vmatmul.mubr.f32.gmra.mxu0 %v3095
  %v3163 = vpop.f32.mrf.mxu0
  %v3164 = vadd.f32 0.0, %v3163
  %v3165 = vpop.f32.mrf.mxu0
  %3166 = vdwg.mxu0
  %v3169 = vunpack.c.l.s4 1966171168
  %v3170 = vunpack.c.0.s8 %v3169
  %v3171 = vlaneseq
  %v3172 = vshrl.u32 %v3171, 7
  %v3173 = vsub.s32 %v3170, %v3172
  %v3174 = vrot.slane %v3164, %v3173
  %v3175 = vcombine.high %v3174, %v3174
  %v3177 = vunpack.c.l.s4 1966171168
  %v3178 = vunpack.c.0.s8 %v3177
  %v3179 = vlaneseq
  %v3180 = vshrl.u32 %v3179, 7
  %v3181 = vsub.s32 %v3178, %v3180
  %v3182 = vrot.slane %v3174, %v3181
  %v3184 = vunpack.c.l.s4 1966171168
  %v3185 = vunpack.c.0.s8 %v3184
  %v3186 = vlaneseq
  %v3187 = vshrl.u32 %v3186, 7
  %v3188 = vsub.s32 %v3185, %v3187
  %v3189 = vrot.slane %v3175, %v3188
  %v3190 = vlaneseq
  %v3191 = vshrl.u32 %v3190, 7
  %v3192 = vsub.s32 0, %v3191
  %v3193 = vrot.slane %v3182, %v3192
  %v3194 = vlaneseq
  %v3195 = vshrl.u32 %v3194, 7
  %v3196 = vsub.s32 0, %v3195
  %v3197 = vrot.slane %v3189, %v3196
  %v3200 = vadd.f32 %v1315, %v3193
  %v3201 = vadd.f32 %v1320, %v3197
  %v3202 = vtanh.pop %v3200
  %v3203 = vtanh.pop %v3201
  %v3204 = vmul.f32 %v3202, %v1553
  %v3205 = vmul.f32 %v3203, %v1553
  %v3206 = vsel %vm199, %v3204, 0.0
  %3207 = vadd.xlane.f32.xlu0 %v3206
  %v3208 = vpop.xlane.xlu0 %3207
  %v3209 = vsel %vm199, %v3205, 0.0
  %3210 = vadd.xlane.f32.xlu0 %v3209
  %v3211 = vpop.xlane.xlu0 %3210
  %v3212 = vrot.slane %v3208, 4
  %v3213 = vmax.f32 %v3208, %v3212
  %v3214 = vrot.slane %v3213, 2
  %v3215 = vmax.f32 %v3213, %v3214
  %v3216 = vrot.slane %v3215, 1
  %v3217 = vmax.f32 %v3215, %v3216
  %v3218 = vrot.slane %v3211, 4
  %v3219 = vmax.f32 %v3211, %v3218
  %v3220 = vrot.slane %v3219, 2
  %v3221 = vmax.f32 %v3219, %v3220
  %v3222 = vrot.slane %v3221, 1
  %v3223 = vmax.f32 %v3221, %v3222
  %v3224 = vsub.f32 %v3208, %v3217
  %v3225 = vsub.f32 %v3211, %v3223
  %v3226 = vmul.f32 %v3224, 1.442695
  %v3227 = vpow.pop %v3226
  %v3228 = vmul.f32 %v3225, 1.442695
  %v3229 = vpow.pop %v3228
  %v3230 = vrot.slane %v3227, 4
  %v3231 = vadd.f32 %v3227, %v3230
  %v3232 = vrot.slane %v3231, 2
  %v3233 = vadd.f32 %v3231, %v3232
  %v3234 = vrot.slane %v3233, 1
  %v3235 = vadd.f32 %v3233, %v3234
  %v3236 = vrot.slane %v3229, 4
  %v3237 = vadd.f32 %v3229, %v3236
  %v3238 = vrot.slane %v3237, 2
  %v3239 = vadd.f32 %v3237, %v3238
  %v3240 = vrot.slane %v3239, 1
  %v3241 = vadd.f32 %v3239, %v3240
  %v3242 = vrcp.pop %v3235
  %v3243 = vrcp.pop %v3241
  %v3244 = vmul.f32 %v3227, %v3242
  %v3245 = vmul.f32 %v3229, %v3243
  %v3246 = vmul.f32 %v3244, %v1240
  %v3247 = vmul.f32 %v3245, %v1241
  %v3248 = vsel %vm199, %v3246, 0.0
  %v3249 = vrot.slane %v3248, 4
  %v3250 = vadd.f32 %v3248, %v3249
  %v3251 = vrot.slane %v3250, 2
  %v3252 = vadd.f32 %v3250, %v3251
  %v3253 = vrot.slane %v3252, 1
  %v3254 = vadd.f32 %v3252, %v3253
  %v3255 = vsel %vm199, %v3247, 0.0
  %v3256 = vrot.slane %v3255, 4
  %v3257 = vadd.f32 %v3255, %v3256
  %v3258 = vrot.slane %v3257, 2
  %v3259 = vadd.f32 %v3257, %v3258
  %v3260 = vrot.slane %v3259, 1
  %v3261 = vadd.f32 %v3259, %v3260
  %v3264 = vsel %vm195, %v3261, %v3254
  %3266 = vrot.lane.b32.xlu0 %v3091, 96
  %v3267 = vpop.permute.xlu0 %3266
  %v3269 = vsel %vm199, %v3264, %v3267
  %v3271 = vsel %vm1334, %v3269, 0
  %3273 = vmatprep.subr.mxu0 0.0
  %3274 = vmatpush1.msra.mxu0 0.0
  %3275 = vmatprep.subr.mxu0 0.0
  %3276 = vmatpush1.msra.mxu0 0.0
  %3277 = vmatprep.subr.mxu0 0.0
  %3278 = vmatpush1.msra.mxu0 0.0
  %3279 = vmatprep.subr.mxu0 0.0
  %3280 = vmatpush1.msra.mxu0 0.0
  %3281 = vmatprep.subr.mxu0 0.0
  %3282 = vmatpush1.msra.mxu0 0.0
  %3283 = vmatprep.subr.mxu0 0.0
  %3284 = vmatpush1.msra.mxu0 0.0
  %3285 = vmatprep.subr.mxu0 0.0
  %3286 = vmatpush1.msra.mxu0 0.0
  %3287 = vmatprep.subr.mxu0 0.0
  %3288 = vmatpush1.msra.mxu0 0.0
  %3289 = vmatprep.subr.mxu0 0.0
  %3290 = vmatpush1.msra.mxu0 %v37
  %3291 = vmatprep.subr.mxu0 0.0
  %3292 = vmatpush1.msra.mxu0 %v36
  %3293 = vmatprep.subr.mxu0 0.0
  %3294 = vmatpush1.msra.mxu0 %v35
  %3295 = vmatprep.subr.mxu0 0.0
  %3296 = vmatpush1.msra.mxu0 %v34
  %3297 = vmatprep.subr.mxu0 0.0
  %3298 = vmatpush1.msra.mxu0 %v33
  %3299 = vmatprep.subr.mxu0 0.0
  %3300 = vmatpush1.msra.mxu0 %v32
  %3301 = vmatprep.subr.mxu0 0.0
  %3302 = vmatpush1.msra.mxu0 %v31
  %3303 = vmatprep.subr.mxu0 0.0
  %3304 = vmatpush1.msra.mxu0 %v30
  %3305 = vmatprep.subr.mxu0 0.0
  %3306 = vmatpush2.msra.mxu0 0.0
  %3307 = vmatprep.subr.mxu0 0.0
  %3308 = vmatpush2.msra.mxu0 0.0
  %3309 = vmatprep.subr.mxu0 0.0
  %3310 = vmatpush2.msra.mxu0 0.0
  %3311 = vmatprep.subr.mxu0 0.0
  %3312 = vmatpush2.msra.mxu0 0.0
  %3313 = vmatprep.subr.mxu0 0.0
  %3314 = vmatpush2.msra.mxu0 0.0
  %3315 = vmatprep.subr.mxu0 0.0
  %3316 = vmatpush2.msra.mxu0 0.0
  %3317 = vmatprep.subr.mxu0 0.0
  %3318 = vmatpush2.msra.mxu0 0.0
  %3319 = vmatprep.subr.mxu0 0.0
  %3320 = vmatpush2.msra.mxu0 0.0
  %3321 = vmatprep.subr.mxu0 0.0
  %3322 = vmatpush2.msra.mxu0 0.0
  %3323 = vmatprep.subr.mxu0 0.0
  %3324 = vmatpush2.msra.mxu0 0.0
  %3325 = vmatprep.subr.mxu0 0.0
  %3326 = vmatpush2.msra.mxu0 0.0
  %3327 = vmatprep.subr.mxu0 0.0
  %3328 = vmatpush2.msra.mxu0 0.0
  %3329 = vmatprep.subr.mxu0 0.0
  %3330 = vmatpush2.msra.mxu0 0.0
  %3331 = vmatprep.subr.mxu0 0.0
  %3332 = vmatpush2.msra.mxu0 0.0
  %3333 = vmatprep.subr.mxu0 0.0
  %3334 = vmatpush2.msra.mxu0 0.0
  %3335 = vmatprep.subr.mxu0 0.0
  %3336 = vmatpush2.msra.mxu0 0.0
  %3337 = vmatprep.mubr.f32.mxu0 0.0
  %3338 = vmatmul.mubr.f32.gmra.mxu0 %v3271
  %v3339 = vpop.f32.mrf.mxu0
  %v3340 = vadd.f32 %v1333, %v3339
  %v3341 = vpop.f32.mrf.mxu0
  %3342 = vdwg.mxu0
  %v3343 = vxor.u32 %v3340, 2147483648
  %v3344 = vmul.f32 %v3343, 1.442695
  %v3345 = vpow.pop %v3344
  %v3346 = vadd.f32 %v3345, 1.0
  %v3347 = vrcp.pop %v3346
  %v3348 = vmul.f32 1.0, %v3347
  %v3349 = vtanh.pop %v3340
  %v3350 = vmul.f32 %v3348, %v3085
  %3352 = vrot.lane.b32.xlu0 %v3349, 32
  %v3353 = vpop.permute.xlu0 %3352
  %v3355 = vmul.f32 %v3348, %v3353
  %3357 = vrot.lane.b32.xlu0 %v3355, 32
  %v3358 = vpop.permute.xlu0 %3357
  %v3360 = vadd.f32 %v3350, %v3358
  %v3361 = vtanh.pop %v3360
  %3363 = vrot.lane.b32.xlu0 %v3361, 32
  %v3364 = vpop.permute.xlu0 %3363
  %v3366 = vmul.f32 %v3348, %v3364
  %3368 = vrot.lane.b32.xlu0 %v3366, 64
  %v3369 = vpop.permute.xlu0 %3368
  %v3370 = vsel %vm199, %v3369, 0
  %3372 = vmatprep.subr.mxu0 0.0
  %3373 = vmatpush1.msra.mxu0 0.0
  %3374 = vmatprep.subr.mxu0 0.0
  %3375 = vmatpush1.msra.mxu0 0.0
  %3376 = vmatprep.subr.mxu0 0.0
  %3377 = vmatpush1.msra.mxu0 0.0
  %3378 = vmatprep.subr.mxu0 0.0
  %3379 = vmatpush1.msra.mxu0 0.0
  %3380 = vmatprep.subr.mxu0 0.0
  %3381 = vmatpush1.msra.mxu0 0.0
  %3382 = vmatprep.subr.mxu0 0.0
  %3383 = vmatpush1.msra.mxu0 0.0
  %3384 = vmatprep.subr.mxu0 0.0
  %3385 = vmatpush1.msra.mxu0 0.0
  %3386 = vmatprep.subr.mxu0 0.0
  %3387 = vmatpush1.msra.mxu0 0.0
  %3388 = vmatprep.subr.mxu0 0.0
  %3389 = vmatpush1.msra.mxu0 0.0
  %3390 = vmatprep.subr.mxu0 0.0
  %3391 = vmatpush1.msra.mxu0 0.0
  %3392 = vmatprep.subr.mxu0 0.0
  %3393 = vmatpush1.msra.mxu0 0.0
  %3394 = vmatprep.subr.mxu0 0.0
  %3395 = vmatpush1.msra.mxu0 0.0
  %3396 = vmatprep.subr.mxu0 0.0
  %3397 = vmatpush1.msra.mxu0 %v46
  %3398 = vmatprep.subr.mxu0 0.0
  %3399 = vmatpush1.msra.mxu0 %v45
  %3400 = vmatprep.subr.mxu0 0.0
  %3401 = vmatpush1.msra.mxu0 %v44
  %3402 = vmatprep.subr.mxu0 0.0
  %3403 = vmatpush1.msra.mxu0 %v43
  %3404 = vmatprep.subr.mxu0 0.0
  %3405 = vmatpush2.msra.mxu0 0.0
  %3406 = vmatprep.subr.mxu0 0.0
  %3407 = vmatpush2.msra.mxu0 0.0
  %3408 = vmatprep.subr.mxu0 0.0
  %3409 = vmatpush2.msra.mxu0 0.0
  %3410 = vmatprep.subr.mxu0 0.0
  %3411 = vmatpush2.msra.mxu0 0.0
  %3412 = vmatprep.subr.mxu0 0.0
  %3413 = vmatpush2.msra.mxu0 0.0
  %3414 = vmatprep.subr.mxu0 0.0
  %3415 = vmatpush2.msra.mxu0 0.0
  %3416 = vmatprep.subr.mxu0 0.0
  %3417 = vmatpush2.msra.mxu0 0.0
  %3418 = vmatprep.subr.mxu0 0.0
  %3419 = vmatpush2.msra.mxu0 0.0
  %3420 = vmatprep.subr.mxu0 0.0
  %3421 = vmatpush2.msra.mxu0 0.0
  %3422 = vmatprep.subr.mxu0 0.0
  %3423 = vmatpush2.msra.mxu0 0.0
  %3424 = vmatprep.subr.mxu0 0.0
  %3425 = vmatpush2.msra.mxu0 0.0
  %3426 = vmatprep.subr.mxu0 0.0
  %3427 = vmatpush2.msra.mxu0 0.0
  %3428 = vmatprep.subr.mxu0 0.0
  %3429 = vmatpush2.msra.mxu0 0.0
  %3430 = vmatprep.subr.mxu0 0.0
  %3431 = vmatpush2.msra.mxu0 0.0
  %3432 = vmatprep.subr.mxu0 0.0
  %3433 = vmatpush2.msra.mxu0 0.0
  %3434 = vmatprep.subr.mxu0 0.0
  %3435 = vmatpush2.msra.mxu0 0.0
  %3436 = vmatprep.mubr.f32.mxu0 0.0
  %3437 = vmatmul.mubr.f32.gmra.mxu0 %v3370
  %v3438 = vpop.f32.mrf.mxu0
  %v3439 = vadd.f32 0.0, %v3438
  %v3440 = vpop.f32.mrf.mxu0
  %3441 = vdwg.mxu0
  %v3444 = vunpack.c.l.s4 1966171168
  %v3445 = vunpack.c.0.s8 %v3444
  %v3446 = vlaneseq
  %v3447 = vshrl.u32 %v3446, 7
  %v3448 = vsub.s32 %v3445, %v3447
  %v3449 = vrot.slane %v3439, %v3448
  %v3450 = vcombine.high %v3449, %v3449
  %v3452 = vunpack.c.l.s4 1966171168
  %v3453 = vunpack.c.0.s8 %v3452
  %v3454 = vlaneseq
  %v3455 = vshrl.u32 %v3454, 7
  %v3456 = vsub.s32 %v3453, %v3455
  %v3457 = vrot.slane %v3449, %v3456
  %v3459 = vunpack.c.l.s4 1966171168
  %v3460 = vunpack.c.0.s8 %v3459
  %v3461 = vlaneseq
  %v3462 = vshrl.u32 %v3461, 7
  %v3463 = vsub.s32 %v3460, %v3462
  %v3464 = vrot.slane %v3450, %v3463
  %v3465 = vlaneseq
  %v3466 = vshrl.u32 %v3465, 7
  %v3467 = vsub.s32 0, %v3466
  %v3468 = vrot.slane %v3457, %v3467
  %v3469 = vlaneseq
  %v3470 = vshrl.u32 %v3469, 7
  %v3471 = vsub.s32 0, %v3470
  %v3472 = vrot.slane %v3464, %v3471
  %v3475 = vadd.f32 %v1315, %v3468
  %v3476 = vadd.f32 %v1320, %v3472
  %v3477 = vtanh.pop %v3475
  %v3478 = vtanh.pop %v3476
  %v3479 = vmul.f32 %v3477, %v1553
  %v3480 = vmul.f32 %v3478, %v1553
  %v3481 = vsel %vm199, %v3479, 0.0
  %3482 = vadd.xlane.f32.xlu0 %v3481
  %v3483 = vpop.xlane.xlu0 %3482
  %v3484 = vsel %vm199, %v3480, 0.0
  %3485 = vadd.xlane.f32.xlu0 %v3484
  %v3486 = vpop.xlane.xlu0 %3485
  %v3487 = vrot.slane %v3483, 4
  %v3488 = vmax.f32 %v3483, %v3487
  %v3489 = vrot.slane %v3488, 2
  %v3490 = vmax.f32 %v3488, %v3489
  %v3491 = vrot.slane %v3490, 1
  %v3492 = vmax.f32 %v3490, %v3491
  %v3493 = vrot.slane %v3486, 4
  %v3494 = vmax.f32 %v3486, %v3493
  %v3495 = vrot.slane %v3494, 2
  %v3496 = vmax.f32 %v3494, %v3495
  %v3497 = vrot.slane %v3496, 1
  %v3498 = vmax.f32 %v3496, %v3497
  %v3499 = vsub.f32 %v3483, %v3492
  %v3500 = vsub.f32 %v3486, %v3498
  %v3501 = vmul.f32 %v3499, 1.442695
  %v3502 = vpow.pop %v3501
  %v3503 = vmul.f32 %v3500, 1.442695
  %v3504 = vpow.pop %v3503
  %v3505 = vrot.slane %v3502, 4
  %v3506 = vadd.f32 %v3502, %v3505
  %v3507 = vrot.slane %v3506, 2
  %v3508 = vadd.f32 %v3506, %v3507
  %v3509 = vrot.slane %v3508, 1
  %v3510 = vadd.f32 %v3508, %v3509
  %v3511 = vrot.slane %v3504, 4
  %v3512 = vadd.f32 %v3504, %v3511
  %v3513 = vrot.slane %v3512, 2
  %v3514 = vadd.f32 %v3512, %v3513
  %v3515 = vrot.slane %v3514, 1
  %v3516 = vadd.f32 %v3514, %v3515
  %v3517 = vrcp.pop %v3510
  %v3518 = vrcp.pop %v3516
  %v3519 = vmul.f32 %v3502, %v3517
  %v3520 = vmul.f32 %v3504, %v3518
  %v3521 = vmul.f32 %v3519, %v1240
  %v3522 = vmul.f32 %v3520, %v1241
  %v3523 = vsel %vm199, %v3521, 0.0
  %v3524 = vrot.slane %v3523, 4
  %v3525 = vadd.f32 %v3523, %v3524
  %v3526 = vrot.slane %v3525, 2
  %v3527 = vadd.f32 %v3525, %v3526
  %v3528 = vrot.slane %v3527, 1
  %v3529 = vadd.f32 %v3527, %v3528
  %v3530 = vsel %vm199, %v3522, 0.0
  %v3531 = vrot.slane %v3530, 4
  %v3532 = vadd.f32 %v3530, %v3531
  %v3533 = vrot.slane %v3532, 2
  %v3534 = vadd.f32 %v3532, %v3533
  %v3535 = vrot.slane %v3534, 1
  %v3536 = vadd.f32 %v3534, %v3535
  %v3539 = vsel %vm195, %v3536, %v3529
  %3541 = vrot.lane.b32.xlu0 %v3366, 96
  %v3542 = vpop.permute.xlu0 %3541
  %v3544 = vsel %vm199, %v3539, %v3542
  %v3546 = vsel %vm1334, %v3544, 0
  %3548 = vmatprep.subr.mxu0 0.0
  %3549 = vmatpush1.msra.mxu0 0.0
  %3550 = vmatprep.subr.mxu0 0.0
  %3551 = vmatpush1.msra.mxu0 0.0
  %3552 = vmatprep.subr.mxu0 0.0
  %3553 = vmatpush1.msra.mxu0 0.0
  %3554 = vmatprep.subr.mxu0 0.0
  %3555 = vmatpush1.msra.mxu0 0.0
  %3556 = vmatprep.subr.mxu0 0.0
  %3557 = vmatpush1.msra.mxu0 0.0
  %3558 = vmatprep.subr.mxu0 0.0
  %3559 = vmatpush1.msra.mxu0 0.0
  %3560 = vmatprep.subr.mxu0 0.0
  %3561 = vmatpush1.msra.mxu0 0.0
  %3562 = vmatprep.subr.mxu0 0.0
  %3563 = vmatpush1.msra.mxu0 0.0
  %3564 = vmatprep.subr.mxu0 0.0
  %3565 = vmatpush1.msra.mxu0 %v37
  %3566 = vmatprep.subr.mxu0 0.0
  %3567 = vmatpush1.msra.mxu0 %v36
  %3568 = vmatprep.subr.mxu0 0.0
  %3569 = vmatpush1.msra.mxu0 %v35
  %3570 = vmatprep.subr.mxu0 0.0
  %3571 = vmatpush1.msra.mxu0 %v34
  %3572 = vmatprep.subr.mxu0 0.0
  %3573 = vmatpush1.msra.mxu0 %v33
  %3574 = vmatprep.subr.mxu0 0.0
  %3575 = vmatpush1.msra.mxu0 %v32
  %3576 = vmatprep.subr.mxu0 0.0
  %3577 = vmatpush1.msra.mxu0 %v31
  %3578 = vmatprep.subr.mxu0 0.0
  %3579 = vmatpush1.msra.mxu0 %v30
  %3580 = vmatprep.subr.mxu0 0.0
  %3581 = vmatpush2.msra.mxu0 0.0
  %3582 = vmatprep.subr.mxu0 0.0
  %3583 = vmatpush2.msra.mxu0 0.0
  %3584 = vmatprep.subr.mxu0 0.0
  %3585 = vmatpush2.msra.mxu0 0.0
  %3586 = vmatprep.subr.mxu0 0.0
  %3587 = vmatpush2.msra.mxu0 0.0
  %3588 = vmatprep.subr.mxu0 0.0
  %3589 = vmatpush2.msra.mxu0 0.0
  %3590 = vmatprep.subr.mxu0 0.0
  %3591 = vmatpush2.msra.mxu0 0.0
  %3592 = vmatprep.subr.mxu0 0.0
  %3593 = vmatpush2.msra.mxu0 0.0
  %3594 = vmatprep.subr.mxu0 0.0
  %3595 = vmatpush2.msra.mxu0 0.0
  %3596 = vmatprep.subr.mxu0 0.0
  %3597 = vmatpush2.msra.mxu0 0.0
  %3598 = vmatprep.subr.mxu0 0.0
  %3599 = vmatpush2.msra.mxu0 0.0
  %3600 = vmatprep.subr.mxu0 0.0
  %3601 = vmatpush2.msra.mxu0 0.0
  %3602 = vmatprep.subr.mxu0 0.0
  %3603 = vmatpush2.msra.mxu0 0.0
  %3604 = vmatprep.subr.mxu0 0.0
  %3605 = vmatpush2.msra.mxu0 0.0
  %3606 = vmatprep.subr.mxu0 0.0
  %3607 = vmatpush2.msra.mxu0 0.0
  %3608 = vmatprep.subr.mxu0 0.0
  %3609 = vmatpush2.msra.mxu0 0.0
  %3610 = vmatprep.subr.mxu0 0.0
  %3611 = vmatpush2.msra.mxu0 0.0
  %3612 = vmatprep.mubr.f32.mxu0 0.0
  %3613 = vmatmul.mubr.f32.gmra.mxu0 %v3546
  %v3614 = vpop.f32.mrf.mxu0
  %v3615 = vadd.f32 %v1333, %v3614
  %v3616 = vpop.f32.mrf.mxu0
  %3617 = vdwg.mxu0
  %v3618 = vxor.u32 %v3615, 2147483648
  %v3619 = vmul.f32 %v3618, 1.442695
  %v3620 = vpow.pop %v3619
  %v3621 = vadd.f32 %v3620, 1.0
  %v3622 = vrcp.pop %v3621
  %v3623 = vmul.f32 1.0, %v3622
  %v3624 = vtanh.pop %v3615
  %v3625 = vmul.f32 %v3623, %v3360
  %3627 = vrot.lane.b32.xlu0 %v3624, 32
  %v3628 = vpop.permute.xlu0 %3627
  %v3630 = vmul.f32 %v3623, %v3628
  %3632 = vrot.lane.b32.xlu0 %v3630, 32
  %v3633 = vpop.permute.xlu0 %3632
  %v3635 = vadd.f32 %v3625, %v3633
  %v3636 = vtanh.pop %v3635
  %3638 = vrot.lane.b32.xlu0 %v3636, 32
  %v3639 = vpop.permute.xlu0 %3638
  %v3641 = vmul.f32 %v3623, %v3639
  %3643 = vrot.lane.b32.xlu0 %v3641, 64
  %v3644 = vpop.permute.xlu0 %3643
  %v3645 = vsel %vm199, %v3644, 0
  %3647 = vmatprep.subr.mxu0 0.0
  %3648 = vmatpush1.msra.mxu0 0.0
  %3649 = vmatprep.subr.mxu0 0.0
  %3650 = vmatpush1.msra.mxu0 0.0
  %3651 = vmatprep.subr.mxu0 0.0
  %3652 = vmatpush1.msra.mxu0 0.0
  %3653 = vmatprep.subr.mxu0 0.0
  %3654 = vmatpush1.msra.mxu0 0.0
  %3655 = vmatprep.subr.mxu0 0.0
  %3656 = vmatpush1.msra.mxu0 0.0
  %3657 = vmatprep.subr.mxu0 0.0
  %3658 = vmatpush1.msra.mxu0 0.0
  %3659 = vmatprep.subr.mxu0 0.0
  %3660 = vmatpush1.msra.mxu0 0.0
  %3661 = vmatprep.subr.mxu0 0.0
  %3662 = vmatpush1.msra.mxu0 0.0
  %3663 = vmatprep.subr.mxu0 0.0
  %3664 = vmatpush1.msra.mxu0 0.0
  %3665 = vmatprep.subr.mxu0 0.0
  %3666 = vmatpush1.msra.mxu0 0.0
  %3667 = vmatprep.subr.mxu0 0.0
  %3668 = vmatpush1.msra.mxu0 0.0
  %3669 = vmatprep.subr.mxu0 0.0
  %3670 = vmatpush1.msra.mxu0 0.0
  %3671 = vmatprep.subr.mxu0 0.0
  %3672 = vmatpush1.msra.mxu0 %v46
  %3673 = vmatprep.subr.mxu0 0.0
  %3674 = vmatpush1.msra.mxu0 %v45
  %3675 = vmatprep.subr.mxu0 0.0
  %3676 = vmatpush1.msra.mxu0 %v44
  %3677 = vmatprep.subr.mxu0 0.0
  %3678 = vmatpush1.msra.mxu0 %v43
  %3679 = vmatprep.subr.mxu0 0.0
  %3680 = vmatpush2.msra.mxu0 0.0
  %3681 = vmatprep.subr.mxu0 0.0
  %3682 = vmatpush2.msra.mxu0 0.0
  %3683 = vmatprep.subr.mxu0 0.0
  %3684 = vmatpush2.msra.mxu0 0.0
  %3685 = vmatprep.subr.mxu0 0.0
  %3686 = vmatpush2.msra.mxu0 0.0
  %3687 = vmatprep.subr.mxu0 0.0
  %3688 = vmatpush2.msra.mxu0 0.0
  %3689 = vmatprep.subr.mxu0 0.0
  %3690 = vmatpush2.msra.mxu0 0.0
  %3691 = vmatprep.subr.mxu0 0.0
  %3692 = vmatpush2.msra.mxu0 0.0
  %3693 = vmatprep.subr.mxu0 0.0
  %3694 = vmatpush2.msra.mxu0 0.0
  %3695 = vmatprep.subr.mxu0 0.0
  %3696 = vmatpush2.msra.mxu0 0.0
  %3697 = vmatprep.subr.mxu0 0.0
  %3698 = vmatpush2.msra.mxu0 0.0
  %3699 = vmatprep.subr.mxu0 0.0
  %3700 = vmatpush2.msra.mxu0 0.0
  %3701 = vmatprep.subr.mxu0 0.0
  %3702 = vmatpush2.msra.mxu0 0.0
  %3703 = vmatprep.subr.mxu0 0.0
  %3704 = vmatpush2.msra.mxu0 0.0
  %3705 = vmatprep.subr.mxu0 0.0
  %3706 = vmatpush2.msra.mxu0 0.0
  %3707 = vmatprep.subr.mxu0 0.0
  %3708 = vmatpush2.msra.mxu0 0.0
  %3709 = vmatprep.subr.mxu0 0.0
  %3710 = vmatpush2.msra.mxu0 0.0
  %3711 = vmatprep.mubr.f32.mxu0 0.0
  %3712 = vmatmul.mubr.f32.gmra.mxu0 %v3645
  %v3713 = vpop.f32.mrf.mxu0
  %v3714 = vadd.f32 0.0, %v3713
  %v3715 = vpop.f32.mrf.mxu0
  %3716 = vdwg.mxu0
  %v3719 = vunpack.c.l.s4 1966171168
  %v3720 = vunpack.c.0.s8 %v3719
  %v3721 = vlaneseq
  %v3722 = vshrl.u32 %v3721, 7
  %v3723 = vsub.s32 %v3720, %v3722
  %v3724 = vrot.slane %v3714, %v3723
  %v3725 = vcombine.high %v3724, %v3724
  %v3727 = vunpack.c.l.s4 1966171168
  %v3728 = vunpack.c.0.s8 %v3727
  %v3729 = vlaneseq
  %v3730 = vshrl.u32 %v3729, 7
  %v3731 = vsub.s32 %v3728, %v3730
  %v3732 = vrot.slane %v3724, %v3731
  %v3734 = vunpack.c.l.s4 1966171168
  %v3735 = vunpack.c.0.s8 %v3734
  %v3736 = vlaneseq
  %v3737 = vshrl.u32 %v3736, 7
  %v3738 = vsub.s32 %v3735, %v3737
  %v3739 = vrot.slane %v3725, %v3738
  %v3740 = vlaneseq
  %v3741 = vshrl.u32 %v3740, 7
  %v3742 = vsub.s32 0, %v3741
  %v3743 = vrot.slane %v3732, %v3742
  %v3744 = vlaneseq
  %v3745 = vshrl.u32 %v3744, 7
  %v3746 = vsub.s32 0, %v3745
  %v3747 = vrot.slane %v3739, %v3746
  %v3750 = vadd.f32 %v1315, %v3743
  %v3751 = vadd.f32 %v1320, %v3747
  %v3752 = vtanh.pop %v3750
  %v3753 = vtanh.pop %v3751
  %v3754 = vmul.f32 %v3752, %v1553
  %v3755 = vmul.f32 %v3753, %v1553
  %v3756 = vsel %vm199, %v3754, 0.0
  %3757 = vadd.xlane.f32.xlu0 %v3756
  %v3758 = vpop.xlane.xlu0 %3757
  %v3759 = vsel %vm199, %v3755, 0.0
  %3760 = vadd.xlane.f32.xlu0 %v3759
  %v3761 = vpop.xlane.xlu0 %3760
  %v3762 = vrot.slane %v3758, 4
  %v3763 = vmax.f32 %v3758, %v3762
  %v3764 = vrot.slane %v3763, 2
  %v3765 = vmax.f32 %v3763, %v3764
  %v3766 = vrot.slane %v3765, 1
  %v3767 = vmax.f32 %v3765, %v3766
  %v3768 = vrot.slane %v3761, 4
  %v3769 = vmax.f32 %v3761, %v3768
  %v3770 = vrot.slane %v3769, 2
  %v3771 = vmax.f32 %v3769, %v3770
  %v3772 = vrot.slane %v3771, 1
  %v3773 = vmax.f32 %v3771, %v3772
  %v3774 = vsub.f32 %v3758, %v3767
  %v3775 = vsub.f32 %v3761, %v3773
  %v3776 = vmul.f32 %v3774, 1.442695
  %v3777 = vpow.pop %v3776
  %v3778 = vmul.f32 %v3775, 1.442695
  %v3779 = vpow.pop %v3778
  %v3780 = vrot.slane %v3777, 4
  %v3781 = vadd.f32 %v3777, %v3780
  %v3782 = vrot.slane %v3781, 2
  %v3783 = vadd.f32 %v3781, %v3782
  %v3784 = vrot.slane %v3783, 1
  %v3785 = vadd.f32 %v3783, %v3784
  %v3786 = vrot.slane %v3779, 4
  %v3787 = vadd.f32 %v3779, %v3786
  %v3788 = vrot.slane %v3787, 2
  %v3789 = vadd.f32 %v3787, %v3788
  %v3790 = vrot.slane %v3789, 1
  %v3791 = vadd.f32 %v3789, %v3790
  %v3792 = vrcp.pop %v3785
  %v3793 = vrcp.pop %v3791
  %v3794 = vmul.f32 %v3777, %v3792
  %v3795 = vmul.f32 %v3779, %v3793
  %v3796 = vmul.f32 %v3794, %v1240
  %v3797 = vmul.f32 %v3795, %v1241
  %v3798 = vsel %vm199, %v3796, 0.0
  %v3799 = vrot.slane %v3798, 4
  %v3800 = vadd.f32 %v3798, %v3799
  %v3801 = vrot.slane %v3800, 2
  %v3802 = vadd.f32 %v3800, %v3801
  %v3803 = vrot.slane %v3802, 1
  %v3804 = vadd.f32 %v3802, %v3803
  %v3805 = vsel %vm199, %v3797, 0.0
  %v3806 = vrot.slane %v3805, 4
  %v3807 = vadd.f32 %v3805, %v3806
  %v3808 = vrot.slane %v3807, 2
  %v3809 = vadd.f32 %v3807, %v3808
  %v3810 = vrot.slane %v3809, 1
  %v3811 = vadd.f32 %v3809, %v3810
  %v3814 = vsel %vm195, %v3811, %v3804
  %3816 = vrot.lane.b32.xlu0 %v3641, 96
  %v3817 = vpop.permute.xlu0 %3816
  %v3819 = vsel %vm199, %v3814, %v3817
  %v3821 = vsel %vm1334, %v3819, 0
  %3823 = vmatprep.subr.mxu0 0.0
  %3824 = vmatpush1.msra.mxu0 0.0
  %3825 = vmatprep.subr.mxu0 0.0
  %3826 = vmatpush1.msra.mxu0 0.0
  %3827 = vmatprep.subr.mxu0 0.0
  %3828 = vmatpush1.msra.mxu0 0.0
  %3829 = vmatprep.subr.mxu0 0.0
  %3830 = vmatpush1.msra.mxu0 0.0
  %3831 = vmatprep.subr.mxu0 0.0
  %3832 = vmatpush1.msra.mxu0 0.0
  %3833 = vmatprep.subr.mxu0 0.0
  %3834 = vmatpush1.msra.mxu0 0.0
  %3835 = vmatprep.subr.mxu0 0.0
  %3836 = vmatpush1.msra.mxu0 0.0
  %3837 = vmatprep.subr.mxu0 0.0
  %3838 = vmatpush1.msra.mxu0 0.0
  %3839 = vmatprep.subr.mxu0 0.0
  %3840 = vmatpush1.msra.mxu0 %v37
  %3841 = vmatprep.subr.mxu0 0.0
  %3842 = vmatpush1.msra.mxu0 %v36
  %3843 = vmatprep.subr.mxu0 0.0
  %3844 = vmatpush1.msra.mxu0 %v35
  %3845 = vmatprep.subr.mxu0 0.0
  %3846 = vmatpush1.msra.mxu0 %v34
  %3847 = vmatprep.subr.mxu0 0.0
  %3848 = vmatpush1.msra.mxu0 %v33
  %3849 = vmatprep.subr.mxu0 0.0
  %3850 = vmatpush1.msra.mxu0 %v32
  %3851 = vmatprep.subr.mxu0 0.0
  %3852 = vmatpush1.msra.mxu0 %v31
  %3853 = vmatprep.subr.mxu0 0.0
  %3854 = vmatpush1.msra.mxu0 %v30
  %3855 = vmatprep.subr.mxu0 0.0
  %3856 = vmatpush2.msra.mxu0 0.0
  %3857 = vmatprep.subr.mxu0 0.0
  %3858 = vmatpush2.msra.mxu0 0.0
  %3859 = vmatprep.subr.mxu0 0.0
  %3860 = vmatpush2.msra.mxu0 0.0
  %3861 = vmatprep.subr.mxu0 0.0
  %3862 = vmatpush2.msra.mxu0 0.0
  %3863 = vmatprep.subr.mxu0 0.0
  %3864 = vmatpush2.msra.mxu0 0.0
  %3865 = vmatprep.subr.mxu0 0.0
  %3866 = vmatpush2.msra.mxu0 0.0
  %3867 = vmatprep.subr.mxu0 0.0
  %3868 = vmatpush2.msra.mxu0 0.0
  %3869 = vmatprep.subr.mxu0 0.0
  %3870 = vmatpush2.msra.mxu0 0.0
  %3871 = vmatprep.subr.mxu0 0.0
  %3872 = vmatpush2.msra.mxu0 0.0
  %3873 = vmatprep.subr.mxu0 0.0
  %3874 = vmatpush2.msra.mxu0 0.0
  %3875 = vmatprep.subr.mxu0 0.0
  %3876 = vmatpush2.msra.mxu0 0.0
  %3877 = vmatprep.subr.mxu0 0.0
  %3878 = vmatpush2.msra.mxu0 0.0
  %3879 = vmatprep.subr.mxu0 0.0
  %3880 = vmatpush2.msra.mxu0 0.0
  %3881 = vmatprep.subr.mxu0 0.0
  %3882 = vmatpush2.msra.mxu0 0.0
  %3883 = vmatprep.subr.mxu0 0.0
  %3884 = vmatpush2.msra.mxu0 0.0
  %3885 = vmatprep.subr.mxu0 0.0
  %3886 = vmatpush2.msra.mxu0 0.0
  %3887 = vmatprep.mubr.f32.mxu0 0.0
  %3888 = vmatmul.mubr.f32.gmra.mxu0 %v3821
  %v3889 = vpop.f32.mrf.mxu0
  %v3890 = vadd.f32 %v1333, %v3889
  %v3891 = vpop.f32.mrf.mxu0
  %3892 = vdwg.mxu0
  %v3893 = vxor.u32 %v3890, 2147483648
  %v3894 = vmul.f32 %v3893, 1.442695
  %v3895 = vpow.pop %v3894
  %v3896 = vadd.f32 %v3895, 1.0
  %v3897 = vrcp.pop %v3896
  %v3898 = vmul.f32 1.0, %v3897
  %v3899 = vtanh.pop %v3890
  %v3900 = vmul.f32 %v3898, %v3635
  %3902 = vrot.lane.b32.xlu0 %v3899, 32
  %v3903 = vpop.permute.xlu0 %3902
  %v3905 = vmul.f32 %v3898, %v3903
  %3907 = vrot.lane.b32.xlu0 %v3905, 32
  %v3908 = vpop.permute.xlu0 %3907
  %v3910 = vadd.f32 %v3900, %v3908
  %v3911 = vtanh.pop %v3910
  %3913 = vrot.lane.b32.xlu0 %v3911, 32
  %v3914 = vpop.permute.xlu0 %3913
  %v3916 = vmul.f32 %v3898, %v3914
  %v3917 = vlaneseq
  %v3918 = vshrl.u32 %v3917, 7
  %v3919 = vsub.s32 0, %v3918
  %v3920 = vrot.slane %v52, %v3919
  %3922 = vrot.lane.b32.xlu0 %v3916, 64
  %v3923 = vpop.permute.xlu0 %3922
  %v3924 = vsel %vm199, %v3923, 0
  %3926 = vmatprep.subr.mxu0 0.0
  %3927 = vmatpush1.msra.mxu0 0.0
  %3928 = vmatprep.subr.mxu0 0.0
  %3929 = vmatpush1.msra.mxu0 0.0
  %3930 = vmatprep.subr.mxu0 0.0
  %3931 = vmatpush1.msra.mxu0 0.0
  %3932 = vmatprep.subr.mxu0 0.0
  %3933 = vmatpush1.msra.mxu0 0.0
  %3934 = vmatprep.subr.mxu0 0.0
  %3935 = vmatpush1.msra.mxu0 0.0
  %3936 = vmatprep.subr.mxu0 0.0
  %3937 = vmatpush1.msra.mxu0 0.0
  %3938 = vmatprep.subr.mxu0 0.0
  %3939 = vmatpush1.msra.mxu0 0.0
  %3940 = vmatprep.subr.mxu0 0.0
  %3941 = vmatpush1.msra.mxu0 0.0
  %3942 = vmatprep.subr.mxu0 0.0
  %3943 = vmatpush1.msra.mxu0 0.0
  %3944 = vmatprep.subr.mxu0 0.0
  %3945 = vmatpush1.msra.mxu0 0.0
  %3946 = vmatprep.subr.mxu0 0.0
  %3947 = vmatpush1.msra.mxu0 0.0
  %3948 = vmatprep.subr.mxu0 0.0
  %3949 = vmatpush1.msra.mxu0 0.0
  %3950 = vmatprep.subr.mxu0 0.0
  %3951 = vmatpush1.msra.mxu0 %v51
  %3952 = vmatprep.subr.mxu0 0.0
  %3953 = vmatpush1.msra.mxu0 %v50
  %3954 = vmatprep.subr.mxu0 0.0
  %3955 = vmatpush1.msra.mxu0 %v49
  %3956 = vmatprep.subr.mxu0 0.0
  %3957 = vmatpush1.msra.mxu0 %v48
  %3958 = vmatprep.subr.mxu0 0.0
  %3959 = vmatpush2.msra.mxu0 0.0
  %3960 = vmatprep.subr.mxu0 0.0
  %3961 = vmatpush2.msra.mxu0 0.0
  %3962 = vmatprep.subr.mxu0 0.0
  %3963 = vmatpush2.msra.mxu0 0.0
  %3964 = vmatprep.subr.mxu0 0.0
  %3965 = vmatpush2.msra.mxu0 0.0
  %3966 = vmatprep.subr.mxu0 0.0
  %3967 = vmatpush2.msra.mxu0 0.0
  %3968 = vmatprep.subr.mxu0 0.0
  %3969 = vmatpush2.msra.mxu0 0.0
  %3970 = vmatprep.subr.mxu0 0.0
  %3971 = vmatpush2.msra.mxu0 0.0
  %3972 = vmatprep.subr.mxu0 0.0
  %3973 = vmatpush2.msra.mxu0 0.0
  %3974 = vmatprep.subr.mxu0 0.0
  %3975 = vmatpush2.msra.mxu0 0.0
  %3976 = vmatprep.subr.mxu0 0.0
  %3977 = vmatpush2.msra.mxu0 0.0
  %3978 = vmatprep.subr.mxu0 0.0
  %3979 = vmatpush2.msra.mxu0 0.0
  %3980 = vmatprep.subr.mxu0 0.0
  %3981 = vmatpush2.msra.mxu0 0.0
  %3982 = vmatprep.subr.mxu0 0.0
  %3983 = vmatpush2.msra.mxu0 0.0
  %3984 = vmatprep.subr.mxu0 0.0
  %3985 = vmatpush2.msra.mxu0 0.0
  %3986 = vmatprep.subr.mxu0 0.0
  %3987 = vmatpush2.msra.mxu0 0.0
  %3988 = vmatprep.subr.mxu0 0.0
  %3989 = vmatpush2.msra.mxu0 0.0
  %3990 = vmatprep.mubr.f32.mxu0 0.0
  %3991 = vmatmul.mubr.f32.gmra.mxu0 %v3924
  %v3992 = vpop.f32.mrf.mxu0
  %v3993 = vadd.f32 %v3920, %v3992
  %v3994 = vpop.f32.mrf.mxu0
  %3995 = vdwg.mxu0
  %v3996 = vmax.f32 %v3993, 0.0
  %v3997 = vlaneseq
  %v3998 = vshrl.u32 %v3997, 7
  %v3999 = vsub.s32 0, %v3998
  %v4000 = vrot.slane %v53, %v3999
  %v4001 = vmul.f32 %v3996, %v4000
  %vm4002 = vcmask 254976
  %v4003 = vsel %vm4002, %v4001, 0.0
  %4004 = vadd.xlane.f32.xlu0 %v4003
  %v4005 = vpop.xlane.xlu0 %4004
  %v4006 = vstv %s54
  %v4007 = vadd.f32 %v4005, %v4006
  %vm4008 = vcmask 1024
  %4009 = vst.msk [vmem:[%s6] sm:$0x3] %vm4008, %v4007
  // Predicated region
  $region26: #{critic_forward.1} parent=0 // pred_check
    _
  $region27: #{critic_forward.1} parent=0 // pred_check_branch
    %4011 = sbr.rel (0) target = $region29
  $region28: #{critic_forward.1} parent=0 // pred_region
    _
  $region29: #{critic_forward.1} parent=0 // pred_fallthru
    _
  // Predicated region
  $region30: #{critic_forward.1} parent=0 // pred_check
    _
  $region31: #{critic_forward.1} parent=0 // pred_check_branch
    %4013 = sbr.rel (0) target = $region33
  $region32: #{critic_forward.1} parent=0 // pred_region
    _
  $region33: #{critic_forward.1} parent=0 // pred_fallthru
    _

</llo_original>
